<compile_context>
chip_gen: v6e
topology: v6e:2x2x1
jax: 0.10.0
libtpu: 0.0.40
codegen_flags: <defaults>
</compile_context>

<pallas_src>
import jax
import jax.numpy as jnp
from jax.experimental import pallas as pl
from jax.experimental.pallas import tpu as pltpu


# ----------------------------------------------------------------------------
# Pallas kernel: fused "Cblock" head.
#   hs0_ref : (tile_n, D)      l0 node-feature tile
#   w_ref   : (D, NTYPES)      column i == weight of Cblock[i] (Linear(D,1,no-bias))
#   cs_ref  : (tile_n, NTYPES) == torch.stack([W_i @ hs0 ...], 0).T.squeeze(0)
# ----------------------------------------------------------------------------
def _grid_se3_head_kernel(hs0_ref, w_ref, cs_ref):
    # 15 bias-free Linear(D,1) heads fused into a single MXU matmul, f32 accum.
    cs = jnp.dot(hs0_ref[...], w_ref[...], preferred_element_type=jnp.float32)
    cs_ref[...] = cs.astype(cs_ref.dtype)


def _round_up(x, m):
    return ((x + m - 1) // m) * m


def _device_kind():
    try:
        return jax.devices()[0].device_kind.lower()
    except Exception:  # CPU interpret / unknown backend — fall back to generic
        return ""


def _tile_policy(N, D, NT, itemsize):
    """Generation-aware tile size for the mem-bound head kernel."""
    kind = _device_kind()
    # Chips where one JAX device fronts 2 TensorCores sharing HBM: the
    # "parallel" grid axis is sharded across them, so we want ≥2 grid steps.
    two_core = ("v7" in kind) or ("v4" in kind) or ("v5p" in kind)
    num_cores = 2 if two_core else 1

    # VMEM bytes per row of tile_n (double-buffered pipeline):
    #   input block  (tile_n, 32) -> last dim padded to 128 lanes
    #   output block (tile_n, 15) -> last dim padded to 128 lanes (the hog)
    per_row = 2 * (_round_up(D, 128) + _round_up(NT, 128)) * itemsize

    # VMEM budget for the pipelined blocks: tighter on v7x (64 MiB physical,
    # 32 MiB scoped default) than on v5e/v6e (128 MiB physical).
    is_v7 = "v7" in kind
    vmem_budget = (16 << 20) if is_v7 else (24 << 20)

    sublane = 8 * (4 // itemsize)  # 8 for f32, 16 for bf16 sublane packing
    cap_rows = max((vmem_budget // per_row) // sublane * sublane, sublane)

    # Fewest steps that (a) cover N and (b) give each TensorCore work.
    rows_per_core = _round_up(-(-N // num_cores), sublane)
    tile_n = min(cap_rows, rows_per_core)
    return tile_n, per_row


def grid_se3_head(hs0, w_cblock, *, tile_n=None):
    """Fused Cblock head.  hs0: (N, D), w_cblock: (D, NTYPES).

    Returns cs: (N, NTYPES).  hs0 itself is returned by the caller unchanged
    (no pass-through copy through the kernel).
    """
    N, D = hs0.shape
    Dw, NT = w_cblock.shape
    assert D == Dw, "weight fan_in must match hs0 channels"
    itemsize = jnp.dtype(hs0.dtype).itemsize
    sublane = 8 * (4 // itemsize)

    if tile_n is None:
        tile_n, per_row = _tile_policy(N, D, NT, itemsize)
    else:
        tile_n = min(_round_up(tile_n, sublane), _round_up(N, sublane))
        per_row = 2 * (_round_up(D, 128) + _round_up(NT, 128)) * itemsize

    grid = (pl.cdiv(N, tile_n),)

    # Explicit VMEM limit with headroom (pipelined blocks + resident weights),
    # capped well under every generation's physical VMEM (v7x: 64 MiB).
    weights_bytes = 2 * _round_up(D, sublane) * _round_up(NT, 128) * itemsize
    vmem_needed = tile_n * per_row + weights_bytes
    vmem_limit = int(min(max(vmem_needed * 5 // 4 + (1 << 20), 8 << 20), 30 << 20))

    # Advisory cost hint so XLA schedules surrounding HLOs (e.g. the SE3
    # transformer producing hs0) around this tiny mem-bound custom call.
    cost = pl.CostEstimate(
        flops=2 * N * D * NT,
        transcendentals=0,
        bytes_accessed=(N * D + N * NT + D * NT) * itemsize,
    )

    cs = pl.pallas_call(
        _grid_se3_head_kernel,
        out_shape=jax.ShapeDtypeStruct((N, NT), hs0.dtype),
        grid_spec=pltpu.PrefetchScalarGridSpec(
            num_scalar_prefetch=0,
            grid=grid,
            in_specs=[
                pl.BlockSpec((tile_n, D), lambda i: (i, 0)),   # hs0 tile (pipelined)
                pl.BlockSpec((D, NT), lambda i: (0, 0)),       # weights (VMEM-resident)
            ],
            out_specs=pl.BlockSpec((tile_n, NT), lambda i: (i, 0)),
        ),
        compiler_params=pltpu.CompilerParams(
            dimension_semantics=("parallel",),
            vmem_limit_bytes=vmem_limit,
        ),
        cost_estimate=cost,
    )(hs0, w_cblock)
    return cs


# ----------------------------------------------------------------------------
# Grid_SE3 forward (JAX wrapper)
# ----------------------------------------------------------------------------
def grid_se3_forward(node_features_l0, w_cblock, drop_out=False):
    """node_features_l0: (N, l0_in_features, 1) — the `{'0': ...}` node feature dict entry.

    Returns (hs0, cs) matching the PyTorch module's return tuple shapes:
      hs0: (N, l0_out_features), cs: (N, ntypes).
    """
    # TODO(synk): self.se3 (SE3Transformer from the external equivariant-attention /
    # DGL library) has no source in the provided module and is not translated;
    # hs['0'] is taken as the degree-0 node features passed through unchanged.
    hs_0 = node_features_l0                      # stand-in for hs['0'] : (N, C, 1)
    # Trailing size-1 squeeze is a free reshape under jit; no HBM copy.
    hs0 = jnp.squeeze(hs_0, axis=2)              # hs['0'].squeeze(2)   : (N, C)

    # drop_out=False path (inference); nn.Dropout is identity when not applied.
    # Cblock heads + stack + .T.squeeze(0) fused into the Pallas kernel.
    # hs0 is returned as-is (bit-identical pass-through, no kernel copy).
    # NOTE: if the upstream SE3 transformer ever emits hs0 natively in bf16,
    # this kernel handles it (sublane rounding becomes 16) — but do NOT add a
    # wrapper-side f32->bf16 cast here; that costs an extra full HBM pass.
    cs = grid_se3_head(hs0, w_cblock)
    return hs0, cs


# ----------------------------------------------------------------------------
# Deterministic parameter init (mirrors nn.Linear(l0_out_features, 1, bias=False)
# default kaiming-uniform-ish bound: U(-1/sqrt(fan_in), 1/sqrt(fan_in)))
# ----------------------------------------------------------------------------
def init_cblock_weights(key, l0_out_features=32, ntypes=15, dtype=jnp.float32):
    bound = 1.0 / jnp.sqrt(jnp.asarray(l0_out_features, dtype))
    # Per-type weight is (1, l0_out_features) in torch; stack as columns -> (D, ntypes)
    w = jax.random.uniform(
        key, (l0_out_features, ntypes), dtype=dtype, minval=-bound, maxval=bound
    )
    return w


if __name__ == "__main__":
    key = jax.random.PRNGKey(0)
    k_feat, k_w = jax.random.split(key)

    N = 4096               # number of grid nodes in the graph G
    L0_IN = 32             # l0_in_features == l0_out_features == 32
    NTYPES = 15

    # node_features['0'] has shape (N, l0_in_features, 1) in the SE3 convention
    node_features_l0 = jax.random.normal(k_feat, (N, L0_IN, 1), dtype=jnp.float32)
    w_cblock = init_cblock_weights(k_w, L0_IN, NTYPES)

    hs0, cs = grid_se3_forward(node_features_l0, w_cblock, drop_out=False)
    jax.block_until_ready((hs0, cs))

    # sanity: shapes match the PyTorch return (hs0: (N,32), cs: (N,15)); and the
    # fused matmul equals applying the 15 heads independently.
    assert hs0.shape == (N, L0_IN)
    assert cs.shape == (N, NTYPES)
    hs0_ref = jnp.squeeze(node_features_l0, axis=2)
    assert jnp.allclose(hs0, hs0_ref)
    ref_cs = hs0_ref @ w_cblock
    assert jnp.allclose(cs, ref_cs, atol=1e-5, rtol=1e-5)

    # ragged-N check (partial last block / masked stores handled by Pallas)
    N2 = 1000
    hs0_r = jax.random.normal(jax.random.PRNGKey(1), (N2, L0_IN), dtype=jnp.float32)
    cs_r = grid_se3_head(hs0_r, w_cblock)
    jax.block_until_ready(cs_r)
    assert cs_r.shape == (N2, NTYPES)
    assert jnp.allclose(cs_r, hs0_r @ w_cblock, atol=1e-5, rtol=1e-5)

    print("KERNEL_OK")
</pallas_src>

<mosaic_0001>
module attributes {stable_mosaic.version = 11 : i64} {
  func.func @_grid_se3_head_kernel(%arg0: i32, %arg1: memref<4096x32xf32, #tpu.memory_space<vmem>>, %arg2: memref<32x15xf32, #tpu.memory_space<vmem>>, %arg3: memref<4096x15xf32, #tpu.memory_space<vmem>>) attributes {dimension_semantics = [#tpu.dimension_semantics<parallel>], iteration_bounds = array<i64: 1>, scalar_prefetch = 0 : i64, scratch_operands = 0 : i64, tpu.core_type = #tpu.core_type<tc>, window_params = [{transform_indices = @transform_0, window_bounds = array<i64: 4096, 32>}, {pipeline_mode = #tpu.pipeline_mode<synchronous>, transform_indices = @transform_1, window_bounds = array<i64: 32, 15>}, {transform_indices = @transform_2, window_bounds = array<i64: 4096, 15>}]} {
    %c0 = arith.constant 0 : index
    %c0_0 = arith.constant 0 : index
    %0 = vector.load %arg1[%c0, %c0_0] : memref<4096x32xf32, #tpu.memory_space<vmem>>, vector<4096x32xf32>
    %c0_1 = arith.constant 0 : index
    %c0_2 = arith.constant 0 : index
    %1 = vector.load %arg2[%c0_1, %c0_2] : memref<32x15xf32, #tpu.memory_space<vmem>>, vector<32x15xf32>
    %cst = arith.constant dense<0.000000e+00> : vector<4096x15xf32>
    %2 = tpu.matmul %0, %1, %cst {dimension_numbers = #tpu.dot_dimension_numbers<[1], [0], [0], [1], [0, 0, 1, 1], [], []>} : vector<4096x32xf32>, vector<32x15xf32>, vector<4096x15xf32> -> vector<4096x15xf32>
    %c0_3 = arith.constant 0 : index
    %c0_4 = arith.constant 0 : index
    %3 = vector.load %arg3[%c0_3, %c0_4] : memref<4096x15xf32, #tpu.memory_space<vmem>>, vector<4096x15xf32>
    tpu.vector_store %arg3[%c0_3, %c0_4], %2 {strides = array<i32>} : memref<4096x15xf32, #tpu.memory_space<vmem>>, vector<4096x15xf32>,
    return
  }
  func.func @transform_0(%arg0: i32) -> (i32, i32) {
    %c0_i32 = arith.constant 0 : i32
    %c0_i32_0 = arith.constant 0 : i32
    return %arg0, %c0_i32 : i32, i32
  }
  func.func @transform_1(%arg0: i32) -> (i32, i32) {
    %c0_i32 = arith.constant 0 : i32
    %c0_i32_0 = arith.constant 0 : i32
    %c0_i32_1 = arith.constant 0 : i32
    return %c0_i32, %c0_i32_0 : i32, i32
  }
  func.func @transform_2(%arg0: i32) -> (i32, i32) {
    %c0_i32 = arith.constant 0 : i32
    %c0_i32_0 = arith.constant 0 : i32
    return %arg0, %c0_i32 : i32, i32
  }
}

</mosaic_0001>

<llo_original>
// kernel: tpu_custom_call.1
$region0: #{tpu_custom_call.1}
  #allocation0 [shape = 'u32[]', space=smem, size = 0x4, offset = 0x4, fixed_abs, tag = 'smem constant byte address 0x4 - core index']
  #allocation1 [shape = 'u32[144,128]{1,0:T(1,128)}', space=vmem, size = 0x12000, scoped, tag = 'internal scratch']
  %s0 = inlined_call_operand.vmem [shape: f32[4096,32], index: 0, kind: input, shape index: {}]
  %s1 = inlined_call_operand.vmem [shape: f32[32,15], index: 1, kind: input, shape index: {}]
  %s2 = inlined_call_operand.vmem [shape: f32[4096,15], index: 2, kind: output, shape index: {}]
  %s3 = sld [smem:[#allocation0]]
  $region18: #{tpu_custom_call.1} parent=0
    _
  %s5 = ssub.s32 1, %s3
  %s6 = scalar_select 0, %s5, %s3
  // Predicated region
  $region2: #{tpu_custom_call.1} parent=0 // pred_check
    _
  $region3: #{tpu_custom_call.1} parent=0 // pred_check_branch
    %8 = sbr.rel (0) target = $region5
  $region4: #{tpu_custom_call.1} parent=0 // pred_region
    _
  $region5: #{tpu_custom_call.1} parent=0 // pred_fallthru
    _
  // Predicated region
  $region6: #{tpu_custom_call.1} parent=0 // pred_check
    _
  $region7: #{tpu_custom_call.1} parent=0 // pred_check_branch
    %10 = sbr.rel (0) target = $region9
  $region8: #{tpu_custom_call.1} parent=0 // pred_region
    _
  $region9: #{tpu_custom_call.1} parent=0 // pred_fallthru
    _
  %v11 = vld [vmem:[%s0] sm:$0xff]
  %v12 = vld [vmem:[%s0 + $0x8] sm:$0xff]
  %v13 = vld [vmem:[%s0 + $0x10] sm:$0xff]
  %v14 = vld [vmem:[%s0 + $0x18] sm:$0xff]
  %v15 = vld [vmem:[%s0 + $0x20] sm:$0xff]
  %v16 = vld [vmem:[%s0 + $0x28] sm:$0xff]
  %v17 = vld [vmem:[%s0 + $0x30] sm:$0xff]
  %v18 = vld [vmem:[%s0 + $0x38] sm:$0xff]
  %v19 = vld [vmem:[%s0 + $0x40] sm:$0xff]
  %v20 = vld [vmem:[%s0 + $0x48] sm:$0xff]
  %v21 = vld [vmem:[%s0 + $0x50] sm:$0xff]
  %v22 = vld [vmem:[%s0 + $0x58] sm:$0xff]
  %v23 = vld [vmem:[%s0 + $0x60] sm:$0xff]
  %v24 = vld [vmem:[%s0 + $0x68] sm:$0xff]
  %v25 = vld [vmem:[%s0 + $0x70] sm:$0xff]
  %v26 = vld [vmem:[%s0 + $0x78] sm:$0xff]
  %v27 = vld [vmem:[%s0 + $0x80] sm:$0xff]
  %v28 = vld [vmem:[%s0 + $0x88] sm:$0xff]
  %v29 = vld [vmem:[%s0 + $0x90] sm:$0xff]
  %v30 = vld [vmem:[%s0 + $0x98] sm:$0xff]
  %v31 = vld [vmem:[%s0 + $0xa0] sm:$0xff]
  %v32 = vld [vmem:[%s0 + $0xa8] sm:$0xff]
  %v33 = vld [vmem:[%s0 + $0xb0] sm:$0xff]
  %v34 = vld [vmem:[%s0 + $0xb8] sm:$0xff]
  %v35 = vld [vmem:[%s0 + $0xc0] sm:$0xff]
  %v36 = vld [vmem:[%s0 + $0xc8] sm:$0xff]
  %v37 = vld [vmem:[%s0 + $0xd0] sm:$0xff]
  %v38 = vld [vmem:[%s0 + $0xd8] sm:$0xff]
  %v39 = vld [vmem:[%s0 + $0xe0] sm:$0xff]
  %v40 = vld [vmem:[%s0 + $0xe8] sm:$0xff]
  %v41 = vld [vmem:[%s0 + $0xf0] sm:$0xff]
  %v42 = vld [vmem:[%s0 + $0xf8] sm:$0xff]
  %v43 = vld [vmem:[%s0 + $0x100] sm:$0xff]
  %v44 = vld [vmem:[%s0 + $0x108] sm:$0xff]
  %v45 = vld [vmem:[%s0 + $0x110] sm:$0xff]
  %v46 = vld [vmem:[%s0 + $0x118] sm:$0xff]
  %v47 = vld [vmem:[%s0 + $0x120] sm:$0xff]
  %v48 = vld [vmem:[%s0 + $0x128] sm:$0xff]
  %v49 = vld [vmem:[%s0 + $0x130] sm:$0xff]
  %v50 = vld [vmem:[%s0 + $0x138] sm:$0xff]
  %v51 = vld [vmem:[%s0 + $0x140] sm:$0xff]
  %v52 = vld [vmem:[%s0 + $0x148] sm:$0xff]
  %v53 = vld [vmem:[%s0 + $0x150] sm:$0xff]
  %v54 = vld [vmem:[%s0 + $0x158] sm:$0xff]
  %v55 = vld [vmem:[%s0 + $0x160] sm:$0xff]
  %v56 = vld [vmem:[%s0 + $0x168] sm:$0xff]
  %v57 = vld [vmem:[%s0 + $0x170] sm:$0xff]
  %v58 = vld [vmem:[%s0 + $0x178] sm:$0xff]
  %v59 = vld [vmem:[%s0 + $0x180] sm:$0xff]
  %v60 = vld [vmem:[%s0 + $0x188] sm:$0xff]
  %v61 = vld [vmem:[%s0 + $0x190] sm:$0xff]
  %v62 = vld [vmem:[%s0 + $0x198] sm:$0xff]
  %v63 = vld [vmem:[%s0 + $0x1a0] sm:$0xff]
  %v64 = vld [vmem:[%s0 + $0x1a8] sm:$0xff]
  %v65 = vld [vmem:[%s0 + $0x1b0] sm:$0xff]
  %v66 = vld [vmem:[%s0 + $0x1b8] sm:$0xff]
  %v67 = vld [vmem:[%s0 + $0x1c0] sm:$0xff]
  %v68 = vld [vmem:[%s0 + $0x1c8] sm:$0xff]
  %v69 = vld [vmem:[%s0 + $0x1d0] sm:$0xff]
  %v70 = vld [vmem:[%s0 + $0x1d8] sm:$0xff]
  %v71 = vld [vmem:[%s0 + $0x1e0] sm:$0xff]
  %v72 = vld [vmem:[%s0 + $0x1e8] sm:$0xff]
  %v73 = vld [vmem:[%s0 + $0x1f0] sm:$0xff]
  %v74 = vld [vmem:[%s0 + $0x1f8] sm:$0xff]
  %v75 = vld [vmem:[%s0 + $0x200] sm:$0xff]
  %v76 = vld [vmem:[%s0 + $0x208] sm:$0xff]
  %v77 = vld [vmem:[%s0 + $0x210] sm:$0xff]
  %v78 = vld [vmem:[%s0 + $0x218] sm:$0xff]
  %v79 = vld [vmem:[%s0 + $0x220] sm:$0xff]
  %v80 = vld [vmem:[%s0 + $0x228] sm:$0xff]
  %v81 = vld [vmem:[%s0 + $0x230] sm:$0xff]
  %v82 = vld [vmem:[%s0 + $0x238] sm:$0xff]
  %v83 = vld [vmem:[%s0 + $0x240] sm:$0xff]
  %v84 = vld [vmem:[%s0 + $0x248] sm:$0xff]
  %v85 = vld [vmem:[%s0 + $0x250] sm:$0xff]
  %v86 = vld [vmem:[%s0 + $0x258] sm:$0xff]
  %v87 = vld [vmem:[%s0 + $0x260] sm:$0xff]
  %v88 = vld [vmem:[%s0 + $0x268] sm:$0xff]
  %v89 = vld [vmem:[%s0 + $0x270] sm:$0xff]
  %v90 = vld [vmem:[%s0 + $0x278] sm:$0xff]
  %v91 = vld [vmem:[%s0 + $0x280] sm:$0xff]
  %v92 = vld [vmem:[%s0 + $0x288] sm:$0xff]
  %v93 = vld [vmem:[%s0 + $0x290] sm:$0xff]
  %v94 = vld [vmem:[%s0 + $0x298] sm:$0xff]
  %v95 = vld [vmem:[%s0 + $0x2a0] sm:$0xff]
  %v96 = vld [vmem:[%s0 + $0x2a8] sm:$0xff]
  %v97 = vld [vmem:[%s0 + $0x2b0] sm:$0xff]
  %v98 = vld [vmem:[%s0 + $0x2b8] sm:$0xff]
  %v99 = vld [vmem:[%s0 + $0x2c0] sm:$0xff]
  %v100 = vld [vmem:[%s0 + $0x2c8] sm:$0xff]
  %v101 = vld [vmem:[%s0 + $0x2d0] sm:$0xff]
  %v102 = vld [vmem:[%s0 + $0x2d8] sm:$0xff]
  %v103 = vld [vmem:[%s0 + $0x2e0] sm:$0xff]
  %v104 = vld [vmem:[%s0 + $0x2e8] sm:$0xff]
  %v105 = vld [vmem:[%s0 + $0x2f0] sm:$0xff]
  %v106 = vld [vmem:[%s0 + $0x2f8] sm:$0xff]
  %v107 = vld [vmem:[%s0 + $0x300] sm:$0xff]
  %v108 = vld [vmem:[%s0 + $0x308] sm:$0xff]
  %v109 = vld [vmem:[%s0 + $0x310] sm:$0xff]
  %v110 = vld [vmem:[%s0 + $0x318] sm:$0xff]
  %v111 = vld [vmem:[%s0 + $0x320] sm:$0xff]
  %v112 = vld [vmem:[%s0 + $0x328] sm:$0xff]
  %v113 = vld [vmem:[%s0 + $0x330] sm:$0xff]
  %v114 = vld [vmem:[%s0 + $0x338] sm:$0xff]
  %v115 = vld [vmem:[%s0 + $0x340] sm:$0xff]
  %v116 = vld [vmem:[%s0 + $0x348] sm:$0xff]
  %v117 = vld [vmem:[%s0 + $0x350] sm:$0xff]
  %v118 = vld [vmem:[%s0 + $0x358] sm:$0xff]
  %v119 = vld [vmem:[%s0 + $0x360] sm:$0xff]
  %v120 = vld [vmem:[%s0 + $0x368] sm:$0xff]
  %v121 = vld [vmem:[%s0 + $0x370] sm:$0xff]
  %v122 = vld [vmem:[%s0 + $0x378] sm:$0xff]
  %v123 = vld [vmem:[%s0 + $0x380] sm:$0xff]
  %v124 = vld [vmem:[%s0 + $0x388] sm:$0xff]
  %v125 = vld [vmem:[%s0 + $0x390] sm:$0xff]
  %v126 = vld [vmem:[%s0 + $0x398] sm:$0xff]
  %v127 = vld [vmem:[%s0 + $0x3a0] sm:$0xff]
  %v128 = vld [vmem:[%s0 + $0x3a8] sm:$0xff]
  %v129 = vld [vmem:[%s0 + $0x3b0] sm:$0xff]
  %v130 = vld [vmem:[%s0 + $0x3b8] sm:$0xff]
  %v131 = vld [vmem:[%s0 + $0x3c0] sm:$0xff]
  %v132 = vld [vmem:[%s0 + $0x3c8] sm:$0xff]
  %v133 = vld [vmem:[%s0 + $0x3d0] sm:$0xff]
  %v134 = vld [vmem:[%s0 + $0x3d8] sm:$0xff]
  %v135 = vld [vmem:[%s0 + $0x3e0] sm:$0xff]
  %v136 = vld [vmem:[%s0 + $0x3e8] sm:$0xff]
  %v137 = vld [vmem:[%s0 + $0x3f0] sm:$0xff]
  %v138 = vld [vmem:[%s0 + $0x3f8] sm:$0xff]
  %v139 = vld [vmem:[%s0 + $0x400] sm:$0xff]
  %v140 = vld [vmem:[%s0 + $0x408] sm:$0xff]
  %v141 = vld [vmem:[%s0 + $0x410] sm:$0xff]
  %v142 = vld [vmem:[%s0 + $0x418] sm:$0xff]
  %v143 = vld [vmem:[%s0 + $0x420] sm:$0xff]
  %v144 = vld [vmem:[%s0 + $0x428] sm:$0xff]
  %v145 = vld [vmem:[%s0 + $0x430] sm:$0xff]
  %v146 = vld [vmem:[%s0 + $0x438] sm:$0xff]
  %v147 = vld [vmem:[%s0 + $0x440] sm:$0xff]
  %v148 = vld [vmem:[%s0 + $0x448] sm:$0xff]
  %v149 = vld [vmem:[%s0 + $0x450] sm:$0xff]
  %v150 = vld [vmem:[%s0 + $0x458] sm:$0xff]
  %v151 = vld [vmem:[%s0 + $0x460] sm:$0xff]
  %v152 = vld [vmem:[%s0 + $0x468] sm:$0xff]
  %v153 = vld [vmem:[%s0 + $0x470] sm:$0xff]
  %v154 = vld [vmem:[%s0 + $0x478] sm:$0xff]
  %v155 = vld [vmem:[%s0 + $0x480] sm:$0xff]
  %v156 = vld [vmem:[%s0 + $0x488] sm:$0xff]
  %v157 = vld [vmem:[%s0 + $0x490] sm:$0xff]
  %v158 = vld [vmem:[%s0 + $0x498] sm:$0xff]
  %v159 = vld [vmem:[%s0 + $0x4a0] sm:$0xff]
  %v160 = vld [vmem:[%s0 + $0x4a8] sm:$0xff]
  %v161 = vld [vmem:[%s0 + $0x4b0] sm:$0xff]
  %v162 = vld [vmem:[%s0 + $0x4b8] sm:$0xff]
  %v163 = vld [vmem:[%s0 + $0x4c0] sm:$0xff]
  %v164 = vld [vmem:[%s0 + $0x4c8] sm:$0xff]
  %v165 = vld [vmem:[%s0 + $0x4d0] sm:$0xff]
  %v166 = vld [vmem:[%s0 + $0x4d8] sm:$0xff]
  %v167 = vld [vmem:[%s0 + $0x4e0] sm:$0xff]
  %v168 = vld [vmem:[%s0 + $0x4e8] sm:$0xff]
  %v169 = vld [vmem:[%s0 + $0x4f0] sm:$0xff]
  %v170 = vld [vmem:[%s0 + $0x4f8] sm:$0xff]
  %v171 = vld [vmem:[%s0 + $0x500] sm:$0xff]
  %v172 = vld [vmem:[%s0 + $0x508] sm:$0xff]
  %v173 = vld [vmem:[%s0 + $0x510] sm:$0xff]
  %v174 = vld [vmem:[%s0 + $0x518] sm:$0xff]
  %v175 = vld [vmem:[%s0 + $0x520] sm:$0xff]
  %v176 = vld [vmem:[%s0 + $0x528] sm:$0xff]
  %v177 = vld [vmem:[%s0 + $0x530] sm:$0xff]
  %v178 = vld [vmem:[%s0 + $0x538] sm:$0xff]
  %v179 = vld [vmem:[%s0 + $0x540] sm:$0xff]
  %v180 = vld [vmem:[%s0 + $0x548] sm:$0xff]
  %v181 = vld [vmem:[%s0 + $0x550] sm:$0xff]
  %v182 = vld [vmem:[%s0 + $0x558] sm:$0xff]
  %v183 = vld [vmem:[%s0 + $0x560] sm:$0xff]
  %v184 = vld [vmem:[%s0 + $0x568] sm:$0xff]
  %v185 = vld [vmem:[%s0 + $0x570] sm:$0xff]
  %v186 = vld [vmem:[%s0 + $0x578] sm:$0xff]
  %v187 = vld [vmem:[%s0 + $0x580] sm:$0xff]
  %v188 = vld [vmem:[%s0 + $0x588] sm:$0xff]
  %v189 = vld [vmem:[%s0 + $0x590] sm:$0xff]
  %v190 = vld [vmem:[%s0 + $0x598] sm:$0xff]
  %v191 = vld [vmem:[%s0 + $0x5a0] sm:$0xff]
  %v192 = vld [vmem:[%s0 + $0x5a8] sm:$0xff]
  %v193 = vld [vmem:[%s0 + $0x5b0] sm:$0xff]
  %v194 = vld [vmem:[%s0 + $0x5b8] sm:$0xff]
  %v195 = vld [vmem:[%s0 + $0x5c0] sm:$0xff]
  %v196 = vld [vmem:[%s0 + $0x5c8] sm:$0xff]
  %v197 = vld [vmem:[%s0 + $0x5d0] sm:$0xff]
  %v198 = vld [vmem:[%s0 + $0x5d8] sm:$0xff]
  %v199 = vld [vmem:[%s0 + $0x5e0] sm:$0xff]
  %v200 = vld [vmem:[%s0 + $0x5e8] sm:$0xff]
  %v201 = vld [vmem:[%s0 + $0x5f0] sm:$0xff]
  %v202 = vld [vmem:[%s0 + $0x5f8] sm:$0xff]
  %v203 = vld [vmem:[%s0 + $0x600] sm:$0xff]
  %v204 = vld [vmem:[%s0 + $0x608] sm:$0xff]
  %v205 = vld [vmem:[%s0 + $0x610] sm:$0xff]
  %v206 = vld [vmem:[%s0 + $0x618] sm:$0xff]
  %v207 = vld [vmem:[%s0 + $0x620] sm:$0xff]
  %v208 = vld [vmem:[%s0 + $0x628] sm:$0xff]
  %v209 = vld [vmem:[%s0 + $0x630] sm:$0xff]
  %v210 = vld [vmem:[%s0 + $0x638] sm:$0xff]
  %v211 = vld [vmem:[%s0 + $0x640] sm:$0xff]
  %v212 = vld [vmem:[%s0 + $0x648] sm:$0xff]
  %v213 = vld [vmem:[%s0 + $0x650] sm:$0xff]
  %v214 = vld [vmem:[%s0 + $0x658] sm:$0xff]
  %v215 = vld [vmem:[%s0 + $0x660] sm:$0xff]
  %v216 = vld [vmem:[%s0 + $0x668] sm:$0xff]
  %v217 = vld [vmem:[%s0 + $0x670] sm:$0xff]
  %v218 = vld [vmem:[%s0 + $0x678] sm:$0xff]
  %v219 = vld [vmem:[%s0 + $0x680] sm:$0xff]
  %v220 = vld [vmem:[%s0 + $0x688] sm:$0xff]
  %v221 = vld [vmem:[%s0 + $0x690] sm:$0xff]
  %v222 = vld [vmem:[%s0 + $0x698] sm:$0xff]
  %v223 = vld [vmem:[%s0 + $0x6a0] sm:$0xff]
  %v224 = vld [vmem:[%s0 + $0x6a8] sm:$0xff]
  %v225 = vld [vmem:[%s0 + $0x6b0] sm:$0xff]
  %v226 = vld [vmem:[%s0 + $0x6b8] sm:$0xff]
  %v227 = vld [vmem:[%s0 + $0x6c0] sm:$0xff]
  %v228 = vld [vmem:[%s0 + $0x6c8] sm:$0xff]
  %v229 = vld [vmem:[%s0 + $0x6d0] sm:$0xff]
  %v230 = vld [vmem:[%s0 + $0x6d8] sm:$0xff]
  %v231 = vld [vmem:[%s0 + $0x6e0] sm:$0xff]
  %v232 = vld [vmem:[%s0 + $0x6e8] sm:$0xff]
  %v233 = vld [vmem:[%s0 + $0x6f0] sm:$0xff]
  %v234 = vld [vmem:[%s0 + $0x6f8] sm:$0xff]
  %v235 = vld [vmem:[%s0 + $0x700] sm:$0xff]
  %v236 = vld [vmem:[%s0 + $0x708] sm:$0xff]
  %v237 = vld [vmem:[%s0 + $0x710] sm:$0xff]
  %v238 = vld [vmem:[%s0 + $0x718] sm:$0xff]
  %v239 = vld [vmem:[%s0 + $0x720] sm:$0xff]
  %v240 = vld [vmem:[%s0 + $0x728] sm:$0xff]
  %v241 = vld [vmem:[%s0 + $0x730] sm:$0xff]
  %v242 = vld [vmem:[%s0 + $0x738] sm:$0xff]
  %v243 = vld [vmem:[%s0 + $0x740] sm:$0xff]
  %v244 = vld [vmem:[%s0 + $0x748] sm:$0xff]
  %v245 = vld [vmem:[%s0 + $0x750] sm:$0xff]
  %v246 = vld [vmem:[%s0 + $0x758] sm:$0xff]
  %v247 = vld [vmem:[%s0 + $0x760] sm:$0xff]
  %v248 = vld [vmem:[%s0 + $0x768] sm:$0xff]
  %v249 = vld [vmem:[%s0 + $0x770] sm:$0xff]
  %v250 = vld [vmem:[%s0 + $0x778] sm:$0xff]
  %v251 = vld [vmem:[%s0 + $0x780] sm:$0xff]
  %v252 = vld [vmem:[%s0 + $0x788] sm:$0xff]
  %v253 = vld [vmem:[%s0 + $0x790] sm:$0xff]
  %v254 = vld [vmem:[%s0 + $0x798] sm:$0xff]
  %v255 = vld [vmem:[%s0 + $0x7a0] sm:$0xff]
  %v256 = vld [vmem:[%s0 + $0x7a8] sm:$0xff]
  %v257 = vld [vmem:[%s0 + $0x7b0] sm:$0xff]
  %v258 = vld [vmem:[%s0 + $0x7b8] sm:$0xff]
  %v259 = vld [vmem:[%s0 + $0x7c0] sm:$0xff]
  %v260 = vld [vmem:[%s0 + $0x7c8] sm:$0xff]
  %v261 = vld [vmem:[%s0 + $0x7d0] sm:$0xff]
  %v262 = vld [vmem:[%s0 + $0x7d8] sm:$0xff]
  %v263 = vld [vmem:[%s0 + $0x7e0] sm:$0xff]
  %v264 = vld [vmem:[%s0 + $0x7e8] sm:$0xff]
  %v265 = vld [vmem:[%s0 + $0x7f0] sm:$0xff]
  %v266 = vld [vmem:[%s0 + $0x7f8] sm:$0xff]
  %v267 = vld [vmem:[%s0 + $0x800] sm:$0xff]
  %v268 = vld [vmem:[%s0 + $0x808] sm:$0xff]
  %v269 = vld [vmem:[%s0 + $0x810] sm:$0xff]
  %v270 = vld [vmem:[%s0 + $0x818] sm:$0xff]
  %v271 = vld [vmem:[%s0 + $0x820] sm:$0xff]
  %v272 = vld [vmem:[%s0 + $0x828] sm:$0xff]
  %v273 = vld [vmem:[%s0 + $0x830] sm:$0xff]
  %v274 = vld [vmem:[%s0 + $0x838] sm:$0xff]
  %v275 = vld [vmem:[%s0 + $0x840] sm:$0xff]
  %v276 = vld [vmem:[%s0 + $0x848] sm:$0xff]
  %v277 = vld [vmem:[%s0 + $0x850] sm:$0xff]
  %v278 = vld [vmem:[%s0 + $0x858] sm:$0xff]
  %v279 = vld [vmem:[%s0 + $0x860] sm:$0xff]
  %v280 = vld [vmem:[%s0 + $0x868] sm:$0xff]
  %v281 = vld [vmem:[%s0 + $0x870] sm:$0xff]
  %v282 = vld [vmem:[%s0 + $0x878] sm:$0xff]
  %v283 = vld [vmem:[%s0 + $0x880] sm:$0xff]
  %v284 = vld [vmem:[%s0 + $0x888] sm:$0xff]
  %v285 = vld [vmem:[%s0 + $0x890] sm:$0xff]
  %v286 = vld [vmem:[%s0 + $0x898] sm:$0xff]
  %v287 = vld [vmem:[%s0 + $0x8a0] sm:$0xff]
  %v288 = vld [vmem:[%s0 + $0x8a8] sm:$0xff]
  %v289 = vld [vmem:[%s0 + $0x8b0] sm:$0xff]
  %v290 = vld [vmem:[%s0 + $0x8b8] sm:$0xff]
  %v291 = vld [vmem:[%s0 + $0x8c0] sm:$0xff]
  %v292 = vld [vmem:[%s0 + $0x8c8] sm:$0xff]
  %v293 = vld [vmem:[%s0 + $0x8d0] sm:$0xff]
  %v294 = vld [vmem:[%s0 + $0x8d8] sm:$0xff]
  %v295 = vld [vmem:[%s0 + $0x8e0] sm:$0xff]
  %v296 = vld [vmem:[%s0 + $0x8e8] sm:$0xff]
  %v297 = vld [vmem:[%s0 + $0x8f0] sm:$0xff]
  %v298 = vld [vmem:[%s0 + $0x8f8] sm:$0xff]
  %v299 = vld [vmem:[%s0 + $0x900] sm:$0xff]
  %v300 = vld [vmem:[%s0 + $0x908] sm:$0xff]
  %v301 = vld [vmem:[%s0 + $0x910] sm:$0xff]
  %v302 = vld [vmem:[%s0 + $0x918] sm:$0xff]
  %v303 = vld [vmem:[%s0 + $0x920] sm:$0xff]
  %v304 = vld [vmem:[%s0 + $0x928] sm:$0xff]
  %v305 = vld [vmem:[%s0 + $0x930] sm:$0xff]
  %v306 = vld [vmem:[%s0 + $0x938] sm:$0xff]
  %v307 = vld [vmem:[%s0 + $0x940] sm:$0xff]
  %v308 = vld [vmem:[%s0 + $0x948] sm:$0xff]
  %v309 = vld [vmem:[%s0 + $0x950] sm:$0xff]
  %v310 = vld [vmem:[%s0 + $0x958] sm:$0xff]
  %v311 = vld [vmem:[%s0 + $0x960] sm:$0xff]
  %v312 = vld [vmem:[%s0 + $0x968] sm:$0xff]
  %v313 = vld [vmem:[%s0 + $0x970] sm:$0xff]
  %v314 = vld [vmem:[%s0 + $0x978] sm:$0xff]
  %v315 = vld [vmem:[%s0 + $0x980] sm:$0xff]
  %v316 = vld [vmem:[%s0 + $0x988] sm:$0xff]
  %v317 = vld [vmem:[%s0 + $0x990] sm:$0xff]
  %v318 = vld [vmem:[%s0 + $0x998] sm:$0xff]
  %v319 = vld [vmem:[%s0 + $0x9a0] sm:$0xff]
  %v320 = vld [vmem:[%s0 + $0x9a8] sm:$0xff]
  %v321 = vld [vmem:[%s0 + $0x9b0] sm:$0xff]
  %v322 = vld [vmem:[%s0 + $0x9b8] sm:$0xff]
  %v323 = vld [vmem:[%s0 + $0x9c0] sm:$0xff]
  %v324 = vld [vmem:[%s0 + $0x9c8] sm:$0xff]
  %v325 = vld [vmem:[%s0 + $0x9d0] sm:$0xff]
  %v326 = vld [vmem:[%s0 + $0x9d8] sm:$0xff]
  %v327 = vld [vmem:[%s0 + $0x9e0] sm:$0xff]
  %v328 = vld [vmem:[%s0 + $0x9e8] sm:$0xff]
  %v329 = vld [vmem:[%s0 + $0x9f0] sm:$0xff]
  %v330 = vld [vmem:[%s0 + $0x9f8] sm:$0xff]
  %v331 = vld [vmem:[%s0 + $0xa00] sm:$0xff]
  %v332 = vld [vmem:[%s0 + $0xa08] sm:$0xff]
  %v333 = vld [vmem:[%s0 + $0xa10] sm:$0xff]
  %v334 = vld [vmem:[%s0 + $0xa18] sm:$0xff]
  %v335 = vld [vmem:[%s0 + $0xa20] sm:$0xff]
  %v336 = vld [vmem:[%s0 + $0xa28] sm:$0xff]
  %v337 = vld [vmem:[%s0 + $0xa30] sm:$0xff]
  %v338 = vld [vmem:[%s0 + $0xa38] sm:$0xff]
  %v339 = vld [vmem:[%s0 + $0xa40] sm:$0xff]
  %v340 = vld [vmem:[%s0 + $0xa48] sm:$0xff]
  %v341 = vld [vmem:[%s0 + $0xa50] sm:$0xff]
  %v342 = vld [vmem:[%s0 + $0xa58] sm:$0xff]
  %v343 = vld [vmem:[%s0 + $0xa60] sm:$0xff]
  %v344 = vld [vmem:[%s0 + $0xa68] sm:$0xff]
  %v345 = vld [vmem:[%s0 + $0xa70] sm:$0xff]
  %v346 = vld [vmem:[%s0 + $0xa78] sm:$0xff]
  %v347 = vld [vmem:[%s0 + $0xa80] sm:$0xff]
  %v348 = vld [vmem:[%s0 + $0xa88] sm:$0xff]
  %v349 = vld [vmem:[%s0 + $0xa90] sm:$0xff]
  %v350 = vld [vmem:[%s0 + $0xa98] sm:$0xff]
  %v351 = vld [vmem:[%s0 + $0xaa0] sm:$0xff]
  %v352 = vld [vmem:[%s0 + $0xaa8] sm:$0xff]
  %v353 = vld [vmem:[%s0 + $0xab0] sm:$0xff]
  %v354 = vld [vmem:[%s0 + $0xab8] sm:$0xff]
  %v355 = vld [vmem:[%s0 + $0xac0] sm:$0xff]
  %v356 = vld [vmem:[%s0 + $0xac8] sm:$0xff]
  %v357 = vld [vmem:[%s0 + $0xad0] sm:$0xff]
  %v358 = vld [vmem:[%s0 + $0xad8] sm:$0xff]
  %v359 = vld [vmem:[%s0 + $0xae0] sm:$0xff]
  %v360 = vld [vmem:[%s0 + $0xae8] sm:$0xff]
  %v361 = vld [vmem:[%s0 + $0xaf0] sm:$0xff]
  %v362 = vld [vmem:[%s0 + $0xaf8] sm:$0xff]
  %v363 = vld [vmem:[%s0 + $0xb00] sm:$0xff]
  %v364 = vld [vmem:[%s0 + $0xb08] sm:$0xff]
  %v365 = vld [vmem:[%s0 + $0xb10] sm:$0xff]
  %v366 = vld [vmem:[%s0 + $0xb18] sm:$0xff]
  %v367 = vld [vmem:[%s0 + $0xb20] sm:$0xff]
  %v368 = vld [vmem:[%s0 + $0xb28] sm:$0xff]
  %v369 = vld [vmem:[%s0 + $0xb30] sm:$0xff]
  %v370 = vld [vmem:[%s0 + $0xb38] sm:$0xff]
  %v371 = vld [vmem:[%s0 + $0xb40] sm:$0xff]
  %v372 = vld [vmem:[%s0 + $0xb48] sm:$0xff]
  %v373 = vld [vmem:[%s0 + $0xb50] sm:$0xff]
  %v374 = vld [vmem:[%s0 + $0xb58] sm:$0xff]
  %v375 = vld [vmem:[%s0 + $0xb60] sm:$0xff]
  %v376 = vld [vmem:[%s0 + $0xb68] sm:$0xff]
  %v377 = vld [vmem:[%s0 + $0xb70] sm:$0xff]
  %v378 = vld [vmem:[%s0 + $0xb78] sm:$0xff]
  %v379 = vld [vmem:[%s0 + $0xb80] sm:$0xff]
  %v380 = vld [vmem:[%s0 + $0xb88] sm:$0xff]
  %v381 = vld [vmem:[%s0 + $0xb90] sm:$0xff]
  %v382 = vld [vmem:[%s0 + $0xb98] sm:$0xff]
  %v383 = vld [vmem:[%s0 + $0xba0] sm:$0xff]
  %v384 = vld [vmem:[%s0 + $0xba8] sm:$0xff]
  %v385 = vld [vmem:[%s0 + $0xbb0] sm:$0xff]
  %v386 = vld [vmem:[%s0 + $0xbb8] sm:$0xff]
  %v387 = vld [vmem:[%s0 + $0xbc0] sm:$0xff]
  %v388 = vld [vmem:[%s0 + $0xbc8] sm:$0xff]
  %v389 = vld [vmem:[%s0 + $0xbd0] sm:$0xff]
  %v390 = vld [vmem:[%s0 + $0xbd8] sm:$0xff]
  %v391 = vld [vmem:[%s0 + $0xbe0] sm:$0xff]
  %v392 = vld [vmem:[%s0 + $0xbe8] sm:$0xff]
  %v393 = vld [vmem:[%s0 + $0xbf0] sm:$0xff]
  %v394 = vld [vmem:[%s0 + $0xbf8] sm:$0xff]
  %v395 = vld [vmem:[%s0 + $0xc00] sm:$0xff]
  %v396 = vld [vmem:[%s0 + $0xc08] sm:$0xff]
  %v397 = vld [vmem:[%s0 + $0xc10] sm:$0xff]
  %v398 = vld [vmem:[%s0 + $0xc18] sm:$0xff]
  %v399 = vld [vmem:[%s0 + $0xc20] sm:$0xff]
  %v400 = vld [vmem:[%s0 + $0xc28] sm:$0xff]
  %v401 = vld [vmem:[%s0 + $0xc30] sm:$0xff]
  %v402 = vld [vmem:[%s0 + $0xc38] sm:$0xff]
  %v403 = vld [vmem:[%s0 + $0xc40] sm:$0xff]
  %v404 = vld [vmem:[%s0 + $0xc48] sm:$0xff]
  %v405 = vld [vmem:[%s0 + $0xc50] sm:$0xff]
  %v406 = vld [vmem:[%s0 + $0xc58] sm:$0xff]
  %v407 = vld [vmem:[%s0 + $0xc60] sm:$0xff]
  %v408 = vld [vmem:[%s0 + $0xc68] sm:$0xff]
  %v409 = vld [vmem:[%s0 + $0xc70] sm:$0xff]
  %v410 = vld [vmem:[%s0 + $0xc78] sm:$0xff]
  %v411 = vld [vmem:[%s0 + $0xc80] sm:$0xff]
  %v412 = vld [vmem:[%s0 + $0xc88] sm:$0xff]
  %v413 = vld [vmem:[%s0 + $0xc90] sm:$0xff]
  %v414 = vld [vmem:[%s0 + $0xc98] sm:$0xff]
  %v415 = vld [vmem:[%s0 + $0xca0] sm:$0xff]
  %v416 = vld [vmem:[%s0 + $0xca8] sm:$0xff]
  %v417 = vld [vmem:[%s0 + $0xcb0] sm:$0xff]
  %v418 = vld [vmem:[%s0 + $0xcb8] sm:$0xff]
  %v419 = vld [vmem:[%s0 + $0xcc0] sm:$0xff]
  %v420 = vld [vmem:[%s0 + $0xcc8] sm:$0xff]
  %v421 = vld [vmem:[%s0 + $0xcd0] sm:$0xff]
  %v422 = vld [vmem:[%s0 + $0xcd8] sm:$0xff]
  %v423 = vld [vmem:[%s0 + $0xce0] sm:$0xff]
  %v424 = vld [vmem:[%s0 + $0xce8] sm:$0xff]
  %v425 = vld [vmem:[%s0 + $0xcf0] sm:$0xff]
  %v426 = vld [vmem:[%s0 + $0xcf8] sm:$0xff]
  %v427 = vld [vmem:[%s0 + $0xd00] sm:$0xff]
  %v428 = vld [vmem:[%s0 + $0xd08] sm:$0xff]
  %v429 = vld [vmem:[%s0 + $0xd10] sm:$0xff]
  %v430 = vld [vmem:[%s0 + $0xd18] sm:$0xff]
  %v431 = vld [vmem:[%s0 + $0xd20] sm:$0xff]
  %v432 = vld [vmem:[%s0 + $0xd28] sm:$0xff]
  %v433 = vld [vmem:[%s0 + $0xd30] sm:$0xff]
  %v434 = vld [vmem:[%s0 + $0xd38] sm:$0xff]
  %v435 = vld [vmem:[%s0 + $0xd40] sm:$0xff]
  %v436 = vld [vmem:[%s0 + $0xd48] sm:$0xff]
  %v437 = vld [vmem:[%s0 + $0xd50] sm:$0xff]
  %v438 = vld [vmem:[%s0 + $0xd58] sm:$0xff]
  %v439 = vld [vmem:[%s0 + $0xd60] sm:$0xff]
  %v440 = vld [vmem:[%s0 + $0xd68] sm:$0xff]
  %v441 = vld [vmem:[%s0 + $0xd70] sm:$0xff]
  %v442 = vld [vmem:[%s0 + $0xd78] sm:$0xff]
  %v443 = vld [vmem:[%s0 + $0xd80] sm:$0xff]
  %v444 = vld [vmem:[%s0 + $0xd88] sm:$0xff]
  %v445 = vld [vmem:[%s0 + $0xd90] sm:$0xff]
  %v446 = vld [vmem:[%s0 + $0xd98] sm:$0xff]
  %v447 = vld [vmem:[%s0 + $0xda0] sm:$0xff]
  %v448 = vld [vmem:[%s0 + $0xda8] sm:$0xff]
  %v449 = vld [vmem:[%s0 + $0xdb0] sm:$0xff]
  %v450 = vld [vmem:[%s0 + $0xdb8] sm:$0xff]
  %v451 = vld [vmem:[%s0 + $0xdc0] sm:$0xff]
  %v452 = vld [vmem:[%s0 + $0xdc8] sm:$0xff]
  %v453 = vld [vmem:[%s0 + $0xdd0] sm:$0xff]
  %v454 = vld [vmem:[%s0 + $0xdd8] sm:$0xff]
  %v455 = vld [vmem:[%s0 + $0xde0] sm:$0xff]
  %v456 = vld [vmem:[%s0 + $0xde8] sm:$0xff]
  %v457 = vld [vmem:[%s0 + $0xdf0] sm:$0xff]
  %v458 = vld [vmem:[%s0 + $0xdf8] sm:$0xff]
  %v459 = vld [vmem:[%s0 + $0xe00] sm:$0xff]
  %v460 = vld [vmem:[%s0 + $0xe08] sm:$0xff]
  %v461 = vld [vmem:[%s0 + $0xe10] sm:$0xff]
  %v462 = vld [vmem:[%s0 + $0xe18] sm:$0xff]
  %v463 = vld [vmem:[%s0 + $0xe20] sm:$0xff]
  %v464 = vld [vmem:[%s0 + $0xe28] sm:$0xff]
  %v465 = vld [vmem:[%s0 + $0xe30] sm:$0xff]
  %v466 = vld [vmem:[%s0 + $0xe38] sm:$0xff]
  %v467 = vld [vmem:[%s0 + $0xe40] sm:$0xff]
  %v468 = vld [vmem:[%s0 + $0xe48] sm:$0xff]
  %v469 = vld [vmem:[%s0 + $0xe50] sm:$0xff]
  %v470 = vld [vmem:[%s0 + $0xe58] sm:$0xff]
  %v471 = vld [vmem:[%s0 + $0xe60] sm:$0xff]
  %v472 = vld [vmem:[%s0 + $0xe68] sm:$0xff]
  %v473 = vld [vmem:[%s0 + $0xe70] sm:$0xff]
  %v474 = vld [vmem:[%s0 + $0xe78] sm:$0xff]
  %v475 = vld [vmem:[%s0 + $0xe80] sm:$0xff]
  %v476 = vld [vmem:[%s0 + $0xe88] sm:$0xff]
  %v477 = vld [vmem:[%s0 + $0xe90] sm:$0xff]
  %v478 = vld [vmem:[%s0 + $0xe98] sm:$0xff]
  %v479 = vld [vmem:[%s0 + $0xea0] sm:$0xff]
  %v480 = vld [vmem:[%s0 + $0xea8] sm:$0xff]
  %v481 = vld [vmem:[%s0 + $0xeb0] sm:$0xff]
  %v482 = vld [vmem:[%s0 + $0xeb8] sm:$0xff]
  %v483 = vld [vmem:[%s0 + $0xec0] sm:$0xff]
  %v484 = vld [vmem:[%s0 + $0xec8] sm:$0xff]
  %v485 = vld [vmem:[%s0 + $0xed0] sm:$0xff]
  %v486 = vld [vmem:[%s0 + $0xed8] sm:$0xff]
  %v487 = vld [vmem:[%s0 + $0xee0] sm:$0xff]
  %v488 = vld [vmem:[%s0 + $0xee8] sm:$0xff]
  %v489 = vld [vmem:[%s0 + $0xef0] sm:$0xff]
  %v490 = vld [vmem:[%s0 + $0xef8] sm:$0xff]
  %v491 = vld [vmem:[%s0 + $0xf00] sm:$0xff]
  %v492 = vld [vmem:[%s0 + $0xf08] sm:$0xff]
  %v493 = vld [vmem:[%s0 + $0xf10] sm:$0xff]
  %v494 = vld [vmem:[%s0 + $0xf18] sm:$0xff]
  %v495 = vld [vmem:[%s0 + $0xf20] sm:$0xff]
  %v496 = vld [vmem:[%s0 + $0xf28] sm:$0xff]
  %v497 = vld [vmem:[%s0 + $0xf30] sm:$0xff]
  %v498 = vld [vmem:[%s0 + $0xf38] sm:$0xff]
  %v499 = vld [vmem:[%s0 + $0xf40] sm:$0xff]
  %v500 = vld [vmem:[%s0 + $0xf48] sm:$0xff]
  %v501 = vld [vmem:[%s0 + $0xf50] sm:$0xff]
  %v502 = vld [vmem:[%s0 + $0xf58] sm:$0xff]
  %v503 = vld [vmem:[%s0 + $0xf60] sm:$0xff]
  %v504 = vld [vmem:[%s0 + $0xf68] sm:$0xff]
  %v505 = vld [vmem:[%s0 + $0xf70] sm:$0xff]
  %v506 = vld [vmem:[%s0 + $0xf78] sm:$0xff]
  %v507 = vld [vmem:[%s0 + $0xf80] sm:$0xff]
  %v508 = vld [vmem:[%s0 + $0xf88] sm:$0xff]
  %v509 = vld [vmem:[%s0 + $0xf90] sm:$0xff]
  %v510 = vld [vmem:[%s0 + $0xf98] sm:$0xff]
  %v511 = vld [vmem:[%s0 + $0xfa0] sm:$0xff]
  %v512 = vld [vmem:[%s0 + $0xfa8] sm:$0xff]
  %v513 = vld [vmem:[%s0 + $0xfb0] sm:$0xff]
  %v514 = vld [vmem:[%s0 + $0xfb8] sm:$0xff]
  %v515 = vld [vmem:[%s0 + $0xfc0] sm:$0xff]
  %v516 = vld [vmem:[%s0 + $0xfc8] sm:$0xff]
  %v517 = vld [vmem:[%s0 + $0xfd0] sm:$0xff]
  %v518 = vld [vmem:[%s0 + $0xfd8] sm:$0xff]
  %v519 = vld [vmem:[%s0 + $0xfe0] sm:$0xff]
  %v520 = vld [vmem:[%s0 + $0xfe8] sm:$0xff]
  %v521 = vld [vmem:[%s0 + $0xff0] sm:$0xff]
  %v522 = vld [vmem:[%s0 + $0xff8] sm:$0xff]
  %v523 = vld [vmem:[%s1] sm:$0xff]
  %v524 = vld [vmem:[%s1 + $0x8] sm:$0xff]
  %v525 = vld [vmem:[%s1 + $0x10] sm:$0xff]
  %v526 = vld [vmem:[%s1 + $0x18] sm:$0xff]
  %vm527 = vcmask 261120
  %v529 = vsel %vm527, %v11, 0
  %v532 = vsel %vm527, %v12, 0
  %v535 = vsel %vm527, %v13, 0
  %v538 = vsel %vm527, %v14, 0
  %v541 = vsel %vm527, %v15, 0
  %v544 = vsel %vm527, %v16, 0
  %v547 = vsel %vm527, %v17, 0
  %v550 = vsel %vm527, %v18, 0
  %v553 = vsel %vm527, %v19, 0
  %v556 = vsel %vm527, %v20, 0
  %v559 = vsel %vm527, %v21, 0
  %v562 = vsel %vm527, %v22, 0
  %v565 = vsel %vm527, %v23, 0
  %v568 = vsel %vm527, %v24, 0
  %v571 = vsel %vm527, %v25, 0
  %v574 = vsel %vm527, %v26, 0
  %v577 = vsel %vm527, %v27, 0
  %v580 = vsel %vm527, %v28, 0
  %v583 = vsel %vm527, %v29, 0
  %v586 = vsel %vm527, %v30, 0
  %v589 = vsel %vm527, %v31, 0
  %v592 = vsel %vm527, %v32, 0
  %v595 = vsel %vm527, %v33, 0
  %v598 = vsel %vm527, %v34, 0
  %v601 = vsel %vm527, %v35, 0
  %v604 = vsel %vm527, %v36, 0
  %v607 = vsel %vm527, %v37, 0
  %v610 = vsel %vm527, %v38, 0
  %v613 = vsel %vm527, %v39, 0
  %v616 = vsel %vm527, %v40, 0
  %v619 = vsel %vm527, %v41, 0
  %v622 = vsel %vm527, %v42, 0
  %v625 = vsel %vm527, %v43, 0
  %v628 = vsel %vm527, %v44, 0
  %v631 = vsel %vm527, %v45, 0
  %v634 = vsel %vm527, %v46, 0
  %v637 = vsel %vm527, %v47, 0
  %v640 = vsel %vm527, %v48, 0
  %v643 = vsel %vm527, %v49, 0
  %v646 = vsel %vm527, %v50, 0
  %v649 = vsel %vm527, %v51, 0
  %v652 = vsel %vm527, %v52, 0
  %v655 = vsel %vm527, %v53, 0
  %v658 = vsel %vm527, %v54, 0
  %v661 = vsel %vm527, %v55, 0
  %v664 = vsel %vm527, %v56, 0
  %v667 = vsel %vm527, %v57, 0
  %v670 = vsel %vm527, %v58, 0
  %v673 = vsel %vm527, %v59, 0
  %v676 = vsel %vm527, %v60, 0
  %v679 = vsel %vm527, %v61, 0
  %v682 = vsel %vm527, %v62, 0
  %v685 = vsel %vm527, %v63, 0
  %v688 = vsel %vm527, %v64, 0
  %v691 = vsel %vm527, %v65, 0
  %v694 = vsel %vm527, %v66, 0
  %v697 = vsel %vm527, %v67, 0
  %v700 = vsel %vm527, %v68, 0
  %v703 = vsel %vm527, %v69, 0
  %v706 = vsel %vm527, %v70, 0
  %v709 = vsel %vm527, %v71, 0
  %v712 = vsel %vm527, %v72, 0
  %v715 = vsel %vm527, %v73, 0
  %v718 = vsel %vm527, %v74, 0
  %v721 = vsel %vm527, %v75, 0
  %v724 = vsel %vm527, %v76, 0
  %v727 = vsel %vm527, %v77, 0
  %v730 = vsel %vm527, %v78, 0
  %v733 = vsel %vm527, %v79, 0
  %v736 = vsel %vm527, %v80, 0
  %v739 = vsel %vm527, %v81, 0
  %v742 = vsel %vm527, %v82, 0
  %v745 = vsel %vm527, %v83, 0
  %v748 = vsel %vm527, %v84, 0
  %v751 = vsel %vm527, %v85, 0
  %v754 = vsel %vm527, %v86, 0
  %v757 = vsel %vm527, %v87, 0
  %v760 = vsel %vm527, %v88, 0
  %v763 = vsel %vm527, %v89, 0
  %v766 = vsel %vm527, %v90, 0
  %v769 = vsel %vm527, %v91, 0
  %v772 = vsel %vm527, %v92, 0
  %v775 = vsel %vm527, %v93, 0
  %v778 = vsel %vm527, %v94, 0
  %v781 = vsel %vm527, %v95, 0
  %v784 = vsel %vm527, %v96, 0
  %v787 = vsel %vm527, %v97, 0
  %v790 = vsel %vm527, %v98, 0
  %v793 = vsel %vm527, %v99, 0
  %v796 = vsel %vm527, %v100, 0
  %v799 = vsel %vm527, %v101, 0
  %v802 = vsel %vm527, %v102, 0
  %v805 = vsel %vm527, %v103, 0
  %v808 = vsel %vm527, %v104, 0
  %v811 = vsel %vm527, %v105, 0
  %v814 = vsel %vm527, %v106, 0
  %v817 = vsel %vm527, %v107, 0
  %v820 = vsel %vm527, %v108, 0
  %v823 = vsel %vm527, %v109, 0
  %v826 = vsel %vm527, %v110, 0
  %v829 = vsel %vm527, %v111, 0
  %v832 = vsel %vm527, %v112, 0
  %v835 = vsel %vm527, %v113, 0
  %v838 = vsel %vm527, %v114, 0
  %v841 = vsel %vm527, %v115, 0
  %v844 = vsel %vm527, %v116, 0
  %v847 = vsel %vm527, %v117, 0
  %v850 = vsel %vm527, %v118, 0
  %v853 = vsel %vm527, %v119, 0
  %v856 = vsel %vm527, %v120, 0
  %v859 = vsel %vm527, %v121, 0
  %v862 = vsel %vm527, %v122, 0
  %v865 = vsel %vm527, %v123, 0
  %v868 = vsel %vm527, %v124, 0
  %v871 = vsel %vm527, %v125, 0
  %v874 = vsel %vm527, %v126, 0
  %v877 = vsel %vm527, %v127, 0
  %v880 = vsel %vm527, %v128, 0
  %v883 = vsel %vm527, %v129, 0
  %v886 = vsel %vm527, %v130, 0
  %v889 = vsel %vm527, %v131, 0
  %v892 = vsel %vm527, %v132, 0
  %v895 = vsel %vm527, %v133, 0
  %v898 = vsel %vm527, %v134, 0
  %v901 = vsel %vm527, %v135, 0
  %v904 = vsel %vm527, %v136, 0
  %v907 = vsel %vm527, %v137, 0
  %v910 = vsel %vm527, %v138, 0
  %v913 = vsel %vm527, %v139, 0
  %v916 = vsel %vm527, %v140, 0
  %v919 = vsel %vm527, %v141, 0
  %v922 = vsel %vm527, %v142, 0
  %v925 = vsel %vm527, %v143, 0
  %v928 = vsel %vm527, %v144, 0
  %v931 = vsel %vm527, %v145, 0
  %v934 = vsel %vm527, %v146, 0
  %v937 = vsel %vm527, %v147, 0
  %v940 = vsel %vm527, %v148, 0
  %v943 = vsel %vm527, %v149, 0
  %v946 = vsel %vm527, %v150, 0
  %v949 = vsel %vm527, %v151, 0
  %v952 = vsel %vm527, %v152, 0
  %v955 = vsel %vm527, %v153, 0
  %v958 = vsel %vm527, %v154, 0
  %v961 = vsel %vm527, %v155, 0
  %v964 = vsel %vm527, %v156, 0
  %v967 = vsel %vm527, %v157, 0
  %v970 = vsel %vm527, %v158, 0
  %v973 = vsel %vm527, %v159, 0
  %v976 = vsel %vm527, %v160, 0
  %v979 = vsel %vm527, %v161, 0
  %v982 = vsel %vm527, %v162, 0
  %v985 = vsel %vm527, %v163, 0
  %v988 = vsel %vm527, %v164, 0
  %v991 = vsel %vm527, %v165, 0
  %v994 = vsel %vm527, %v166, 0
  %v997 = vsel %vm527, %v167, 0
  %v1000 = vsel %vm527, %v168, 0
  %v1003 = vsel %vm527, %v169, 0
  %v1006 = vsel %vm527, %v170, 0
  %v1009 = vsel %vm527, %v171, 0
  %v1012 = vsel %vm527, %v172, 0
  %v1015 = vsel %vm527, %v173, 0
  %v1018 = vsel %vm527, %v174, 0
  %v1021 = vsel %vm527, %v175, 0
  %v1024 = vsel %vm527, %v176, 0
  %v1027 = vsel %vm527, %v177, 0
  %v1030 = vsel %vm527, %v178, 0
  %v1033 = vsel %vm527, %v179, 0
  %v1036 = vsel %vm527, %v180, 0
  %v1039 = vsel %vm527, %v181, 0
  %v1042 = vsel %vm527, %v182, 0
  %v1045 = vsel %vm527, %v183, 0
  %v1048 = vsel %vm527, %v184, 0
  %v1051 = vsel %vm527, %v185, 0
  %v1054 = vsel %vm527, %v186, 0
  %v1057 = vsel %vm527, %v187, 0
  %v1060 = vsel %vm527, %v188, 0
  %v1063 = vsel %vm527, %v189, 0
  %v1066 = vsel %vm527, %v190, 0
  %v1069 = vsel %vm527, %v191, 0
  %v1072 = vsel %vm527, %v192, 0
  %v1075 = vsel %vm527, %v193, 0
  %v1078 = vsel %vm527, %v194, 0
  %v1081 = vsel %vm527, %v195, 0
  %v1084 = vsel %vm527, %v196, 0
  %v1087 = vsel %vm527, %v197, 0
  %v1090 = vsel %vm527, %v198, 0
  %v1093 = vsel %vm527, %v199, 0
  %v1096 = vsel %vm527, %v200, 0
  %v1099 = vsel %vm527, %v201, 0
  %v1102 = vsel %vm527, %v202, 0
  %v1105 = vsel %vm527, %v203, 0
  %v1108 = vsel %vm527, %v204, 0
  %v1111 = vsel %vm527, %v205, 0
  %v1114 = vsel %vm527, %v206, 0
  %v1117 = vsel %vm527, %v207, 0
  %v1120 = vsel %vm527, %v208, 0
  %v1123 = vsel %vm527, %v209, 0
  %v1126 = vsel %vm527, %v210, 0
  %v1129 = vsel %vm527, %v211, 0
  %v1132 = vsel %vm527, %v212, 0
  %v1135 = vsel %vm527, %v213, 0
  %v1138 = vsel %vm527, %v214, 0
  %v1141 = vsel %vm527, %v215, 0
  %v1144 = vsel %vm527, %v216, 0
  %v1147 = vsel %vm527, %v217, 0
  %v1150 = vsel %vm527, %v218, 0
  %v1153 = vsel %vm527, %v219, 0
  %v1156 = vsel %vm527, %v220, 0
  %v1159 = vsel %vm527, %v221, 0
  %v1162 = vsel %vm527, %v222, 0
  %v1165 = vsel %vm527, %v223, 0
  %v1168 = vsel %vm527, %v224, 0
  %v1171 = vsel %vm527, %v225, 0
  %v1174 = vsel %vm527, %v226, 0
  %v1177 = vsel %vm527, %v227, 0
  %v1180 = vsel %vm527, %v228, 0
  %v1183 = vsel %vm527, %v229, 0
  %v1186 = vsel %vm527, %v230, 0
  %v1189 = vsel %vm527, %v231, 0
  %v1192 = vsel %vm527, %v232, 0
  %v1195 = vsel %vm527, %v233, 0
  %v1198 = vsel %vm527, %v234, 0
  %v1201 = vsel %vm527, %v235, 0
  %v1204 = vsel %vm527, %v236, 0
  %v1207 = vsel %vm527, %v237, 0
  %v1210 = vsel %vm527, %v238, 0
  %v1213 = vsel %vm527, %v239, 0
  %v1216 = vsel %vm527, %v240, 0
  %v1219 = vsel %vm527, %v241, 0
  %v1222 = vsel %vm527, %v242, 0
  %v1225 = vsel %vm527, %v243, 0
  %v1228 = vsel %vm527, %v244, 0
  %v1231 = vsel %vm527, %v245, 0
  %v1234 = vsel %vm527, %v246, 0
  %v1237 = vsel %vm527, %v247, 0
  %v1240 = vsel %vm527, %v248, 0
  %v1243 = vsel %vm527, %v249, 0
  %v1246 = vsel %vm527, %v250, 0
  %v1249 = vsel %vm527, %v251, 0
  %v1252 = vsel %vm527, %v252, 0
  %v1255 = vsel %vm527, %v253, 0
  %v1258 = vsel %vm527, %v254, 0
  %v1261 = vsel %vm527, %v255, 0
  %v1264 = vsel %vm527, %v256, 0
  %v1267 = vsel %vm527, %v257, 0
  %v1270 = vsel %vm527, %v258, 0
  %v1273 = vsel %vm527, %v259, 0
  %v1276 = vsel %vm527, %v260, 0
  %v1279 = vsel %vm527, %v261, 0
  %v1282 = vsel %vm527, %v262, 0
  %v1285 = vsel %vm527, %v263, 0
  %v1288 = vsel %vm527, %v264, 0
  %v1291 = vsel %vm527, %v265, 0
  %v1294 = vsel %vm527, %v266, 0
  %v1297 = vsel %vm527, %v267, 0
  %v1300 = vsel %vm527, %v268, 0
  %v1303 = vsel %vm527, %v269, 0
  %v1306 = vsel %vm527, %v270, 0
  %v1309 = vsel %vm527, %v271, 0
  %v1312 = vsel %vm527, %v272, 0
  %v1315 = vsel %vm527, %v273, 0
  %v1318 = vsel %vm527, %v274, 0
  %v1321 = vsel %vm527, %v275, 0
  %v1324 = vsel %vm527, %v276, 0
  %v1327 = vsel %vm527, %v277, 0
  %v1330 = vsel %vm527, %v278, 0
  %v1333 = vsel %vm527, %v279, 0
  %v1336 = vsel %vm527, %v280, 0
  %v1339 = vsel %vm527, %v281, 0
  %v1342 = vsel %vm527, %v282, 0
  %v1345 = vsel %vm527, %v283, 0
  %v1348 = vsel %vm527, %v284, 0
  %v1351 = vsel %vm527, %v285, 0
  %v1354 = vsel %vm527, %v286, 0
  %v1357 = vsel %vm527, %v287, 0
  %v1360 = vsel %vm527, %v288, 0
  %v1363 = vsel %vm527, %v289, 0
  %v1366 = vsel %vm527, %v290, 0
  %v1369 = vsel %vm527, %v291, 0
  %v1372 = vsel %vm527, %v292, 0
  %v1375 = vsel %vm527, %v293, 0
  %v1378 = vsel %vm527, %v294, 0
  %v1381 = vsel %vm527, %v295, 0
  %v1384 = vsel %vm527, %v296, 0
  %v1387 = vsel %vm527, %v297, 0
  %v1390 = vsel %vm527, %v298, 0
  %v1393 = vsel %vm527, %v299, 0
  %v1396 = vsel %vm527, %v300, 0
  %v1399 = vsel %vm527, %v301, 0
  %v1402 = vsel %vm527, %v302, 0
  %v1405 = vsel %vm527, %v303, 0
  %v1408 = vsel %vm527, %v304, 0
  %v1411 = vsel %vm527, %v305, 0
  %v1414 = vsel %vm527, %v306, 0
  %v1417 = vsel %vm527, %v307, 0
  %v1420 = vsel %vm527, %v308, 0
  %v1423 = vsel %vm527, %v309, 0
  %v1426 = vsel %vm527, %v310, 0
  %v1429 = vsel %vm527, %v311, 0
  %v1432 = vsel %vm527, %v312, 0
  %v1435 = vsel %vm527, %v313, 0
  %v1438 = vsel %vm527, %v314, 0
  %v1441 = vsel %vm527, %v315, 0
  %v1444 = vsel %vm527, %v316, 0
  %v1447 = vsel %vm527, %v317, 0
  %v1450 = vsel %vm527, %v318, 0
  %v1453 = vsel %vm527, %v319, 0
  %v1456 = vsel %vm527, %v320, 0
  %v1459 = vsel %vm527, %v321, 0
  %v1462 = vsel %vm527, %v322, 0
  %v1465 = vsel %vm527, %v323, 0
  %v1468 = vsel %vm527, %v324, 0
  %v1471 = vsel %vm527, %v325, 0
  %v1474 = vsel %vm527, %v326, 0
  %v1477 = vsel %vm527, %v327, 0
  %v1480 = vsel %vm527, %v328, 0
  %v1483 = vsel %vm527, %v329, 0
  %v1486 = vsel %vm527, %v330, 0
  %v1489 = vsel %vm527, %v331, 0
  %v1492 = vsel %vm527, %v332, 0
  %v1495 = vsel %vm527, %v333, 0
  %v1498 = vsel %vm527, %v334, 0
  %v1501 = vsel %vm527, %v335, 0
  %v1504 = vsel %vm527, %v336, 0
  %v1507 = vsel %vm527, %v337, 0
  %v1510 = vsel %vm527, %v338, 0
  %v1513 = vsel %vm527, %v339, 0
  %v1516 = vsel %vm527, %v340, 0
  %v1519 = vsel %vm527, %v341, 0
  %v1522 = vsel %vm527, %v342, 0
  %v1525 = vsel %vm527, %v343, 0
  %v1528 = vsel %vm527, %v344, 0
  %v1531 = vsel %vm527, %v345, 0
  %v1534 = vsel %vm527, %v346, 0
  %v1537 = vsel %vm527, %v347, 0
  %v1540 = vsel %vm527, %v348, 0
  %v1543 = vsel %vm527, %v349, 0
  %v1546 = vsel %vm527, %v350, 0
  %v1549 = vsel %vm527, %v351, 0
  %v1552 = vsel %vm527, %v352, 0
  %v1555 = vsel %vm527, %v353, 0
  %v1558 = vsel %vm527, %v354, 0
  %v1561 = vsel %vm527, %v355, 0
  %v1564 = vsel %vm527, %v356, 0
  %v1567 = vsel %vm527, %v357, 0
  %v1570 = vsel %vm527, %v358, 0
  %v1573 = vsel %vm527, %v359, 0
  %v1576 = vsel %vm527, %v360, 0
  %v1579 = vsel %vm527, %v361, 0
  %v1582 = vsel %vm527, %v362, 0
  %v1585 = vsel %vm527, %v363, 0
  %v1588 = vsel %vm527, %v364, 0
  %v1591 = vsel %vm527, %v365, 0
  %v1594 = vsel %vm527, %v366, 0
  %v1597 = vsel %vm527, %v367, 0
  %v1600 = vsel %vm527, %v368, 0
  %v1603 = vsel %vm527, %v369, 0
  %v1606 = vsel %vm527, %v370, 0
  %v1609 = vsel %vm527, %v371, 0
  %v1612 = vsel %vm527, %v372, 0
  %v1615 = vsel %vm527, %v373, 0
  %v1618 = vsel %vm527, %v374, 0
  %v1621 = vsel %vm527, %v375, 0
  %v1624 = vsel %vm527, %v376, 0
  %v1627 = vsel %vm527, %v377, 0
  %v1630 = vsel %vm527, %v378, 0
  %v1633 = vsel %vm527, %v379, 0
  %v1636 = vsel %vm527, %v380, 0
  %v1639 = vsel %vm527, %v381, 0
  %v1642 = vsel %vm527, %v382, 0
  %v1645 = vsel %vm527, %v383, 0
  %v1648 = vsel %vm527, %v384, 0
  %v1651 = vsel %vm527, %v385, 0
  %v1654 = vsel %vm527, %v386, 0
  %v1657 = vsel %vm527, %v387, 0
  %v1660 = vsel %vm527, %v388, 0
  %v1663 = vsel %vm527, %v389, 0
  %v1666 = vsel %vm527, %v390, 0
  %v1669 = vsel %vm527, %v391, 0
  %v1672 = vsel %vm527, %v392, 0
  %v1675 = vsel %vm527, %v393, 0
  %v1678 = vsel %vm527, %v394, 0
  %v1681 = vsel %vm527, %v395, 0
  %v1684 = vsel %vm527, %v396, 0
  %v1687 = vsel %vm527, %v397, 0
  %v1690 = vsel %vm527, %v398, 0
  %v1693 = vsel %vm527, %v399, 0
  %v1696 = vsel %vm527, %v400, 0
  %v1699 = vsel %vm527, %v401, 0
  %v1702 = vsel %vm527, %v402, 0
  %v1705 = vsel %vm527, %v403, 0
  %v1708 = vsel %vm527, %v404, 0
  %v1711 = vsel %vm527, %v405, 0
  %v1714 = vsel %vm527, %v406, 0
  %v1717 = vsel %vm527, %v407, 0
  %v1720 = vsel %vm527, %v408, 0
  %v1723 = vsel %vm527, %v409, 0
  %v1726 = vsel %vm527, %v410, 0
  %v1729 = vsel %vm527, %v411, 0
  %v1732 = vsel %vm527, %v412, 0
  %v1735 = vsel %vm527, %v413, 0
  %v1738 = vsel %vm527, %v414, 0
  %v1741 = vsel %vm527, %v415, 0
  %v1744 = vsel %vm527, %v416, 0
  %v1747 = vsel %vm527, %v417, 0
  %v1750 = vsel %vm527, %v418, 0
  %v1753 = vsel %vm527, %v419, 0
  %v1756 = vsel %vm527, %v420, 0
  %v1759 = vsel %vm527, %v421, 0
  %v1762 = vsel %vm527, %v422, 0
  %v1765 = vsel %vm527, %v423, 0
  %v1768 = vsel %vm527, %v424, 0
  %v1771 = vsel %vm527, %v425, 0
  %v1774 = vsel %vm527, %v426, 0
  %v1777 = vsel %vm527, %v427, 0
  %v1780 = vsel %vm527, %v428, 0
  %v1783 = vsel %vm527, %v429, 0
  %v1786 = vsel %vm527, %v430, 0
  %v1789 = vsel %vm527, %v431, 0
  %v1792 = vsel %vm527, %v432, 0
  %v1795 = vsel %vm527, %v433, 0
  %v1798 = vsel %vm527, %v434, 0
  %v1801 = vsel %vm527, %v435, 0
  %v1804 = vsel %vm527, %v436, 0
  %v1807 = vsel %vm527, %v437, 0
  %v1810 = vsel %vm527, %v438, 0
  %v1813 = vsel %vm527, %v439, 0
  %v1816 = vsel %vm527, %v440, 0
  %v1819 = vsel %vm527, %v441, 0
  %v1822 = vsel %vm527, %v442, 0
  %v1825 = vsel %vm527, %v443, 0
  %v1828 = vsel %vm527, %v444, 0
  %v1831 = vsel %vm527, %v445, 0
  %v1834 = vsel %vm527, %v446, 0
  %v1837 = vsel %vm527, %v447, 0
  %v1840 = vsel %vm527, %v448, 0
  %v1843 = vsel %vm527, %v449, 0
  %v1846 = vsel %vm527, %v450, 0
  %v1849 = vsel %vm527, %v451, 0
  %v1852 = vsel %vm527, %v452, 0
  %v1855 = vsel %vm527, %v453, 0
  %v1858 = vsel %vm527, %v454, 0
  %v1861 = vsel %vm527, %v455, 0
  %v1864 = vsel %vm527, %v456, 0
  %v1867 = vsel %vm527, %v457, 0
  %v1870 = vsel %vm527, %v458, 0
  %v1873 = vsel %vm527, %v459, 0
  %v1876 = vsel %vm527, %v460, 0
  %v1879 = vsel %vm527, %v461, 0
  %v1882 = vsel %vm527, %v462, 0
  %v1885 = vsel %vm527, %v463, 0
  %v1888 = vsel %vm527, %v464, 0
  %v1891 = vsel %vm527, %v465, 0
  %v1894 = vsel %vm527, %v466, 0
  %v1897 = vsel %vm527, %v467, 0
  %v1900 = vsel %vm527, %v468, 0
  %v1903 = vsel %vm527, %v469, 0
  %v1906 = vsel %vm527, %v470, 0
  %v1909 = vsel %vm527, %v471, 0
  %v1912 = vsel %vm527, %v472, 0
  %v1915 = vsel %vm527, %v473, 0
  %v1918 = vsel %vm527, %v474, 0
  %v1921 = vsel %vm527, %v475, 0
  %v1924 = vsel %vm527, %v476, 0
  %v1927 = vsel %vm527, %v477, 0
  %v1930 = vsel %vm527, %v478, 0
  %v1933 = vsel %vm527, %v479, 0
  %v1936 = vsel %vm527, %v480, 0
  %v1939 = vsel %vm527, %v481, 0
  %v1942 = vsel %vm527, %v482, 0
  %v1945 = vsel %vm527, %v483, 0
  %v1948 = vsel %vm527, %v484, 0
  %v1951 = vsel %vm527, %v485, 0
  %v1954 = vsel %vm527, %v486, 0
  %v1957 = vsel %vm527, %v487, 0
  %v1960 = vsel %vm527, %v488, 0
  %v1963 = vsel %vm527, %v489, 0
  %v1966 = vsel %vm527, %v490, 0
  %v1969 = vsel %vm527, %v491, 0
  %v1972 = vsel %vm527, %v492, 0
  %v1975 = vsel %vm527, %v493, 0
  %v1978 = vsel %vm527, %v494, 0
  %v1981 = vsel %vm527, %v495, 0
  %v1984 = vsel %vm527, %v496, 0
  %v1987 = vsel %vm527, %v497, 0
  %v1990 = vsel %vm527, %v498, 0
  %v1993 = vsel %vm527, %v499, 0
  %v1996 = vsel %vm527, %v500, 0
  %v1999 = vsel %vm527, %v501, 0
  %v2002 = vsel %vm527, %v502, 0
  %v2005 = vsel %vm527, %v503, 0
  %v2008 = vsel %vm527, %v504, 0
  %v2011 = vsel %vm527, %v505, 0
  %v2014 = vsel %vm527, %v506, 0
  %v2017 = vsel %vm527, %v507, 0
  %v2020 = vsel %vm527, %v508, 0
  %v2023 = vsel %vm527, %v509, 0
  %v2026 = vsel %vm527, %v510, 0
  %v2029 = vsel %vm527, %v511, 0
  %v2032 = vsel %vm527, %v512, 0
  %v2035 = vsel %vm527, %v513, 0
  %v2038 = vsel %vm527, %v514, 0
  %v2041 = vsel %vm527, %v515, 0
  %v2044 = vsel %vm527, %v516, 0
  %v2047 = vsel %vm527, %v517, 0
  %v2050 = vsel %vm527, %v518, 0
  %v2053 = vsel %vm527, %v519, 0
  %v2056 = vsel %vm527, %v520, 0
  %v2059 = vsel %vm527, %v521, 0
  %v2062 = vsel %vm527, %v522, 0
  %2064 = vmatprep.subr.mxu0 0.0
  %2065 = vmatpush1.msra.mxu0 0.0
  %2066 = vmatprep.subr.mxu0 0.0
  %2067 = vmatpush1.msra.mxu0 0.0
  %2068 = vmatprep.subr.mxu0 0.0
  %2069 = vmatpush1.msra.mxu0 0.0
  %2070 = vmatprep.subr.mxu0 0.0
  %2071 = vmatpush1.msra.mxu0 0.0
  %2072 = vmatprep.subr.mxu0 0.0
  %2073 = vmatpush1.msra.mxu0 0.0
  %2074 = vmatprep.subr.mxu0 0.0
  %2075 = vmatpush1.msra.mxu0 0.0
  %2076 = vmatprep.subr.mxu0 0.0
  %2077 = vmatpush1.msra.mxu0 0.0
  %2078 = vmatprep.subr.mxu0 0.0
  %2079 = vmatpush1.msra.mxu0 0.0
  %2080 = vmatprep.subr.mxu0 0.0
  %2081 = vmatpush1.msra.mxu0 0.0
  %2082 = vmatprep.subr.mxu0 0.0
  %2083 = vmatpush1.msra.mxu0 0.0
  %2084 = vmatprep.subr.mxu0 0.0
  %2085 = vmatpush1.msra.mxu0 0.0
  %2086 = vmatprep.subr.mxu0 0.0
  %2087 = vmatpush1.msra.mxu0 0.0
  %2088 = vmatprep.subr.mxu0 0.0
  %2089 = vmatpush1.msra.mxu0 %v526
  %2090 = vmatprep.subr.mxu0 0.0
  %2091 = vmatpush1.msra.mxu0 %v525
  %2092 = vmatprep.subr.mxu0 0.0
  %2093 = vmatpush1.msra.mxu0 %v524
  %2094 = vmatprep.subr.mxu0 0.0
  %2095 = vmatpush1.msra.mxu0 %v523
  %2096 = vmatprep.subr.mxu0 0.0
  %2097 = vmatpush2.msra.mxu0 0.0
  %2098 = vmatprep.subr.mxu0 0.0
  %2099 = vmatpush2.msra.mxu0 0.0
  %2100 = vmatprep.subr.mxu0 0.0
  %2101 = vmatpush2.msra.mxu0 0.0
  %2102 = vmatprep.subr.mxu0 0.0
  %2103 = vmatpush2.msra.mxu0 0.0
  %2104 = vmatprep.subr.mxu0 0.0
  %2105 = vmatpush2.msra.mxu0 0.0
  %2106 = vmatprep.subr.mxu0 0.0
  %2107 = vmatpush2.msra.mxu0 0.0
  %2108 = vmatprep.subr.mxu0 0.0
  %2109 = vmatpush2.msra.mxu0 0.0
  %2110 = vmatprep.subr.mxu0 0.0
  %2111 = vmatpush2.msra.mxu0 0.0
  %2112 = vmatprep.subr.mxu0 0.0
  %2113 = vmatpush2.msra.mxu0 0.0
  %2114 = vmatprep.subr.mxu0 0.0
  %2115 = vmatpush2.msra.mxu0 0.0
  %2116 = vmatprep.subr.mxu0 0.0
  %2117 = vmatpush2.msra.mxu0 0.0
  %2118 = vmatprep.subr.mxu0 0.0
  %2119 = vmatpush2.msra.mxu0 0.0
  %2120 = vmatprep.subr.mxu0 0.0
  %2121 = vmatpush2.msra.mxu0 0.0
  %2122 = vmatprep.subr.mxu0 0.0
  %2123 = vmatpush2.msra.mxu0 0.0
  %2124 = vmatprep.subr.mxu0 0.0
  %2125 = vmatpush2.msra.mxu0 0.0
  %2126 = vmatprep.subr.mxu0 0.0
  %2127 = vmatpush2.msra.mxu0 0.0
  %2128 = vmatprep.mubr.f32.mxu0 0.0
  %2129 = vmatmul.mubr.f32.gmra.mxu0 %v529
  %v2130 = vpop.f32.mrf.mxu0
  %v2131 = vadd.f32 0.0, %v2130
  %v2132 = vpop.f32.mrf.mxu0
  %2133 = vmatprep.mubr.f32.mxu0 0.0
  %2134 = vmatmul.mubr.f32.gmra.mxu0 %v532
  %v2135 = vpop.f32.mrf.mxu0
  %v2136 = vadd.f32 0.0, %v2135
  %v2137 = vpop.f32.mrf.mxu0
  %2138 = vmatprep.mubr.f32.mxu0 0.0
  %2139 = vmatmul.mubr.f32.gmra.mxu0 %v535
  %v2140 = vpop.f32.mrf.mxu0
  %v2141 = vadd.f32 0.0, %v2140
  %v2142 = vpop.f32.mrf.mxu0
  %2143 = vmatprep.mubr.f32.mxu0 0.0
  %2144 = vmatmul.mubr.f32.gmra.mxu0 %v538
  %v2145 = vpop.f32.mrf.mxu0
  %v2146 = vadd.f32 0.0, %v2145
  %v2147 = vpop.f32.mrf.mxu0
  %2148 = vmatprep.mubr.f32.mxu0 0.0
  %2149 = vmatmul.mubr.f32.gmra.mxu0 %v541
  %v2150 = vpop.f32.mrf.mxu0
  %v2151 = vadd.f32 0.0, %v2150
  %v2152 = vpop.f32.mrf.mxu0
  %2153 = vmatprep.mubr.f32.mxu0 0.0
  %2154 = vmatmul.mubr.f32.gmra.mxu0 %v544
  %v2155 = vpop.f32.mrf.mxu0
  %v2156 = vadd.f32 0.0, %v2155
  %v2157 = vpop.f32.mrf.mxu0
  %2158 = vmatprep.mubr.f32.mxu0 0.0
  %2159 = vmatmul.mubr.f32.gmra.mxu0 %v547
  %v2160 = vpop.f32.mrf.mxu0
  %v2161 = vadd.f32 0.0, %v2160
  %v2162 = vpop.f32.mrf.mxu0
  %2163 = vmatprep.mubr.f32.mxu0 0.0
  %2164 = vmatmul.mubr.f32.gmra.mxu0 %v550
  %v2165 = vpop.f32.mrf.mxu0
  %v2166 = vadd.f32 0.0, %v2165
  %v2167 = vpop.f32.mrf.mxu0
  %2168 = vmatprep.mubr.f32.mxu0 0.0
  %2169 = vmatmul.mubr.f32.gmra.mxu0 %v553
  %v2170 = vpop.f32.mrf.mxu0
  %v2171 = vadd.f32 0.0, %v2170
  %v2172 = vpop.f32.mrf.mxu0
  %2173 = vmatprep.mubr.f32.mxu0 0.0
  %2174 = vmatmul.mubr.f32.gmra.mxu0 %v556
  %v2175 = vpop.f32.mrf.mxu0
  %v2176 = vadd.f32 0.0, %v2175
  %v2177 = vpop.f32.mrf.mxu0
  %2178 = vmatprep.mubr.f32.mxu0 0.0
  %2179 = vmatmul.mubr.f32.gmra.mxu0 %v559
  %v2180 = vpop.f32.mrf.mxu0
  %v2181 = vadd.f32 0.0, %v2180
  %v2182 = vpop.f32.mrf.mxu0
  %2183 = vmatprep.mubr.f32.mxu0 0.0
  %2184 = vmatmul.mubr.f32.gmra.mxu0 %v562
  %v2185 = vpop.f32.mrf.mxu0
  %v2186 = vadd.f32 0.0, %v2185
  %v2187 = vpop.f32.mrf.mxu0
  %2188 = vmatprep.mubr.f32.mxu0 0.0
  %2189 = vmatmul.mubr.f32.gmra.mxu0 %v565
  %v2190 = vpop.f32.mrf.mxu0
  %v2191 = vadd.f32 0.0, %v2190
  %v2192 = vpop.f32.mrf.mxu0
  %2193 = vmatprep.mubr.f32.mxu0 0.0
  %2194 = vmatmul.mubr.f32.gmra.mxu0 %v568
  %v2195 = vpop.f32.mrf.mxu0
  %v2196 = vadd.f32 0.0, %v2195
  %v2197 = vpop.f32.mrf.mxu0
  %2198 = vmatprep.mubr.f32.mxu0 0.0
  %2199 = vmatmul.mubr.f32.gmra.mxu0 %v571
  %v2200 = vpop.f32.mrf.mxu0
  %v2201 = vadd.f32 0.0, %v2200
  %v2202 = vpop.f32.mrf.mxu0
  %2203 = vmatprep.mubr.f32.mxu0 0.0
  %2204 = vmatmul.mubr.f32.gmra.mxu0 %v574
  %v2205 = vpop.f32.mrf.mxu0
  %v2206 = vadd.f32 0.0, %v2205
  %v2207 = vpop.f32.mrf.mxu0
  %2208 = vmatprep.mubr.f32.mxu0 0.0
  %2209 = vmatmul.mubr.f32.gmra.mxu0 %v577
  %v2210 = vpop.f32.mrf.mxu0
  %v2211 = vadd.f32 0.0, %v2210
  %v2212 = vpop.f32.mrf.mxu0
  %2213 = vmatprep.mubr.f32.mxu0 0.0
  %2214 = vmatmul.mubr.f32.gmra.mxu0 %v580
  %v2215 = vpop.f32.mrf.mxu0
  %v2216 = vadd.f32 0.0, %v2215
  %v2217 = vpop.f32.mrf.mxu0
  %2218 = vmatprep.mubr.f32.mxu0 0.0
  %2219 = vmatmul.mubr.f32.gmra.mxu0 %v583
  %v2220 = vpop.f32.mrf.mxu0
  %v2221 = vadd.f32 0.0, %v2220
  %v2222 = vpop.f32.mrf.mxu0
  %2223 = vmatprep.mubr.f32.mxu0 0.0
  %2224 = vmatmul.mubr.f32.gmra.mxu0 %v586
  %v2225 = vpop.f32.mrf.mxu0
  %v2226 = vadd.f32 0.0, %v2225
  %v2227 = vpop.f32.mrf.mxu0
  %2228 = vmatprep.mubr.f32.mxu0 0.0
  %2229 = vmatmul.mubr.f32.gmra.mxu0 %v589
  %v2230 = vpop.f32.mrf.mxu0
  %v2231 = vadd.f32 0.0, %v2230
  %v2232 = vpop.f32.mrf.mxu0
  %2233 = vmatprep.mubr.f32.mxu0 0.0
  %2234 = vmatmul.mubr.f32.gmra.mxu0 %v592
  %v2235 = vpop.f32.mrf.mxu0
  %v2236 = vadd.f32 0.0, %v2235
  %v2237 = vpop.f32.mrf.mxu0
  %2238 = vmatprep.mubr.f32.mxu0 0.0
  %2239 = vmatmul.mubr.f32.gmra.mxu0 %v595
  %v2240 = vpop.f32.mrf.mxu0
  %v2241 = vadd.f32 0.0, %v2240
  %v2242 = vpop.f32.mrf.mxu0
  %2243 = vmatprep.mubr.f32.mxu0 0.0
  %2244 = vmatmul.mubr.f32.gmra.mxu0 %v598
  %v2245 = vpop.f32.mrf.mxu0
  %v2246 = vadd.f32 0.0, %v2245
  %v2247 = vpop.f32.mrf.mxu0
  %2248 = vmatprep.mubr.f32.mxu0 0.0
  %2249 = vmatmul.mubr.f32.gmra.mxu0 %v601
  %v2250 = vpop.f32.mrf.mxu0
  %v2251 = vadd.f32 0.0, %v2250
  %v2252 = vpop.f32.mrf.mxu0
  %2253 = vmatprep.mubr.f32.mxu0 0.0
  %2254 = vmatmul.mubr.f32.gmra.mxu0 %v604
  %v2255 = vpop.f32.mrf.mxu0
  %v2256 = vadd.f32 0.0, %v2255
  %v2257 = vpop.f32.mrf.mxu0
  %2258 = vmatprep.mubr.f32.mxu0 0.0
  %2259 = vmatmul.mubr.f32.gmra.mxu0 %v607
  %v2260 = vpop.f32.mrf.mxu0
  %v2261 = vadd.f32 0.0, %v2260
  %v2262 = vpop.f32.mrf.mxu0
  %2263 = vmatprep.mubr.f32.mxu0 0.0
  %2264 = vmatmul.mubr.f32.gmra.mxu0 %v610
  %v2265 = vpop.f32.mrf.mxu0
  %v2266 = vadd.f32 0.0, %v2265
  %v2267 = vpop.f32.mrf.mxu0
  %2268 = vmatprep.mubr.f32.mxu0 0.0
  %2269 = vmatmul.mubr.f32.gmra.mxu0 %v613
  %v2270 = vpop.f32.mrf.mxu0
  %v2271 = vadd.f32 0.0, %v2270
  %v2272 = vpop.f32.mrf.mxu0
  %2273 = vmatprep.mubr.f32.mxu0 0.0
  %2274 = vmatmul.mubr.f32.gmra.mxu0 %v616
  %v2275 = vpop.f32.mrf.mxu0
  %v2276 = vadd.f32 0.0, %v2275
  %v2277 = vpop.f32.mrf.mxu0
  %2278 = vmatprep.mubr.f32.mxu0 0.0
  %2279 = vmatmul.mubr.f32.gmra.mxu0 %v619
  %v2280 = vpop.f32.mrf.mxu0
  %v2281 = vadd.f32 0.0, %v2280
  %v2282 = vpop.f32.mrf.mxu0
  %2283 = vmatprep.mubr.f32.mxu0 0.0
  %2284 = vmatmul.mubr.f32.gmra.mxu0 %v622
  %v2285 = vpop.f32.mrf.mxu0
  %v2286 = vadd.f32 0.0, %v2285
  %v2287 = vpop.f32.mrf.mxu0
  %2288 = vmatprep.mubr.f32.mxu0 0.0
  %2289 = vmatmul.mubr.f32.gmra.mxu0 %v625
  %v2290 = vpop.f32.mrf.mxu0
  %v2291 = vadd.f32 0.0, %v2290
  %v2292 = vpop.f32.mrf.mxu0
  %2293 = vmatprep.mubr.f32.mxu0 0.0
  %2294 = vmatmul.mubr.f32.gmra.mxu0 %v628
  %v2295 = vpop.f32.mrf.mxu0
  %v2296 = vadd.f32 0.0, %v2295
  %v2297 = vpop.f32.mrf.mxu0
  %2298 = vmatprep.mubr.f32.mxu0 0.0
  %2299 = vmatmul.mubr.f32.gmra.mxu0 %v631
  %v2300 = vpop.f32.mrf.mxu0
  %v2301 = vadd.f32 0.0, %v2300
  %v2302 = vpop.f32.mrf.mxu0
  %2303 = vmatprep.mubr.f32.mxu0 0.0
  %2304 = vmatmul.mubr.f32.gmra.mxu0 %v634
  %v2305 = vpop.f32.mrf.mxu0
  %v2306 = vadd.f32 0.0, %v2305
  %v2307 = vpop.f32.mrf.mxu0
  %2308 = vmatprep.mubr.f32.mxu0 0.0
  %2309 = vmatmul.mubr.f32.gmra.mxu0 %v637
  %v2310 = vpop.f32.mrf.mxu0
  %v2311 = vadd.f32 0.0, %v2310
  %v2312 = vpop.f32.mrf.mxu0
  %2313 = vmatprep.mubr.f32.mxu0 0.0
  %2314 = vmatmul.mubr.f32.gmra.mxu0 %v640
  %v2315 = vpop.f32.mrf.mxu0
  %v2316 = vadd.f32 0.0, %v2315
  %v2317 = vpop.f32.mrf.mxu0
  %2318 = vmatprep.mubr.f32.mxu0 0.0
  %2319 = vmatmul.mubr.f32.gmra.mxu0 %v643
  %v2320 = vpop.f32.mrf.mxu0
  %v2321 = vadd.f32 0.0, %v2320
  %v2322 = vpop.f32.mrf.mxu0
  %2323 = vmatprep.mubr.f32.mxu0 0.0
  %2324 = vmatmul.mubr.f32.gmra.mxu0 %v646
  %v2325 = vpop.f32.mrf.mxu0
  %v2326 = vadd.f32 0.0, %v2325
  %v2327 = vpop.f32.mrf.mxu0
  %2328 = vmatprep.mubr.f32.mxu0 0.0
  %2329 = vmatmul.mubr.f32.gmra.mxu0 %v649
  %v2330 = vpop.f32.mrf.mxu0
  %v2331 = vadd.f32 0.0, %v2330
  %v2332 = vpop.f32.mrf.mxu0
  %2333 = vmatprep.mubr.f32.mxu0 0.0
  %2334 = vmatmul.mubr.f32.gmra.mxu0 %v652
  %v2335 = vpop.f32.mrf.mxu0
  %v2336 = vadd.f32 0.0, %v2335
  %v2337 = vpop.f32.mrf.mxu0
  %2338 = vmatprep.mubr.f32.mxu0 0.0
  %2339 = vmatmul.mubr.f32.gmra.mxu0 %v655
  %v2340 = vpop.f32.mrf.mxu0
  %v2341 = vadd.f32 0.0, %v2340
  %v2342 = vpop.f32.mrf.mxu0
  %2343 = vmatprep.mubr.f32.mxu0 0.0
  %2344 = vmatmul.mubr.f32.gmra.mxu0 %v658
  %v2345 = vpop.f32.mrf.mxu0
  %v2346 = vadd.f32 0.0, %v2345
  %v2347 = vpop.f32.mrf.mxu0
  %2348 = vmatprep.mubr.f32.mxu0 0.0
  %2349 = vmatmul.mubr.f32.gmra.mxu0 %v661
  %v2350 = vpop.f32.mrf.mxu0
  %v2351 = vadd.f32 0.0, %v2350
  %v2352 = vpop.f32.mrf.mxu0
  %2353 = vmatprep.mubr.f32.mxu0 0.0
  %2354 = vmatmul.mubr.f32.gmra.mxu0 %v664
  %v2355 = vpop.f32.mrf.mxu0
  %v2356 = vadd.f32 0.0, %v2355
  %v2357 = vpop.f32.mrf.mxu0
  %2358 = vmatprep.mubr.f32.mxu0 0.0
  %2359 = vmatmul.mubr.f32.gmra.mxu0 %v667
  %v2360 = vpop.f32.mrf.mxu0
  %v2361 = vadd.f32 0.0, %v2360
  %v2362 = vpop.f32.mrf.mxu0
  %2363 = vmatprep.mubr.f32.mxu0 0.0
  %2364 = vmatmul.mubr.f32.gmra.mxu0 %v670
  %v2365 = vpop.f32.mrf.mxu0
  %v2366 = vadd.f32 0.0, %v2365
  %v2367 = vpop.f32.mrf.mxu0
  %2368 = vmatprep.mubr.f32.mxu0 0.0
  %2369 = vmatmul.mubr.f32.gmra.mxu0 %v673
  %v2370 = vpop.f32.mrf.mxu0
  %v2371 = vadd.f32 0.0, %v2370
  %v2372 = vpop.f32.mrf.mxu0
  %2373 = vmatprep.mubr.f32.mxu0 0.0
  %2374 = vmatmul.mubr.f32.gmra.mxu0 %v676
  %v2375 = vpop.f32.mrf.mxu0
  %v2376 = vadd.f32 0.0, %v2375
  %v2377 = vpop.f32.mrf.mxu0
  %2378 = vmatprep.mubr.f32.mxu0 0.0
  %2379 = vmatmul.mubr.f32.gmra.mxu0 %v679
  %v2380 = vpop.f32.mrf.mxu0
  %v2381 = vadd.f32 0.0, %v2380
  %v2382 = vpop.f32.mrf.mxu0
  %2383 = vmatprep.mubr.f32.mxu0 0.0
  %2384 = vmatmul.mubr.f32.gmra.mxu0 %v682
  %v2385 = vpop.f32.mrf.mxu0
  %v2386 = vadd.f32 0.0, %v2385
  %v2387 = vpop.f32.mrf.mxu0
  %2388 = vmatprep.mubr.f32.mxu0 0.0
  %2389 = vmatmul.mubr.f32.gmra.mxu0 %v685
  %v2390 = vpop.f32.mrf.mxu0
  %v2391 = vadd.f32 0.0, %v2390
  %v2392 = vpop.f32.mrf.mxu0
  %2393 = vmatprep.mubr.f32.mxu0 0.0
  %2394 = vmatmul.mubr.f32.gmra.mxu0 %v688
  %v2395 = vpop.f32.mrf.mxu0
  %v2396 = vadd.f32 0.0, %v2395
  %v2397 = vpop.f32.mrf.mxu0
  %2398 = vmatprep.mubr.f32.mxu0 0.0
  %2399 = vmatmul.mubr.f32.gmra.mxu0 %v691
  %v2400 = vpop.f32.mrf.mxu0
  %v2401 = vadd.f32 0.0, %v2400
  %v2402 = vpop.f32.mrf.mxu0
  %2403 = vmatprep.mubr.f32.mxu0 0.0
  %2404 = vmatmul.mubr.f32.gmra.mxu0 %v694
  %v2405 = vpop.f32.mrf.mxu0
  %v2406 = vadd.f32 0.0, %v2405
  %v2407 = vpop.f32.mrf.mxu0
  %2408 = vmatprep.mubr.f32.mxu0 0.0
  %2409 = vmatmul.mubr.f32.gmra.mxu0 %v697
  %v2410 = vpop.f32.mrf.mxu0
  %v2411 = vadd.f32 0.0, %v2410
  %v2412 = vpop.f32.mrf.mxu0
  %2413 = vmatprep.mubr.f32.mxu0 0.0
  %2414 = vmatmul.mubr.f32.gmra.mxu0 %v700
  %v2415 = vpop.f32.mrf.mxu0
  %v2416 = vadd.f32 0.0, %v2415
  %v2417 = vpop.f32.mrf.mxu0
  %2418 = vmatprep.mubr.f32.mxu0 0.0
  %2419 = vmatmul.mubr.f32.gmra.mxu0 %v703
  %v2420 = vpop.f32.mrf.mxu0
  %v2421 = vadd.f32 0.0, %v2420
  %v2422 = vpop.f32.mrf.mxu0
  %2423 = vmatprep.mubr.f32.mxu0 0.0
  %2424 = vmatmul.mubr.f32.gmra.mxu0 %v706
  %v2425 = vpop.f32.mrf.mxu0
  %v2426 = vadd.f32 0.0, %v2425
  %v2427 = vpop.f32.mrf.mxu0
  %2428 = vmatprep.mubr.f32.mxu0 0.0
  %2429 = vmatmul.mubr.f32.gmra.mxu0 %v709
  %v2430 = vpop.f32.mrf.mxu0
  %v2431 = vadd.f32 0.0, %v2430
  %v2432 = vpop.f32.mrf.mxu0
  %2433 = vmatprep.mubr.f32.mxu0 0.0
  %2434 = vmatmul.mubr.f32.gmra.mxu0 %v712
  %v2435 = vpop.f32.mrf.mxu0
  %v2436 = vadd.f32 0.0, %v2435
  %v2437 = vpop.f32.mrf.mxu0
  %2438 = vmatprep.mubr.f32.mxu0 0.0
  %2439 = vmatmul.mubr.f32.gmra.mxu0 %v715
  %v2440 = vpop.f32.mrf.mxu0
  %v2441 = vadd.f32 0.0, %v2440
  %v2442 = vpop.f32.mrf.mxu0
  %2443 = vmatprep.mubr.f32.mxu0 0.0
  %2444 = vmatmul.mubr.f32.gmra.mxu0 %v718
  %v2445 = vpop.f32.mrf.mxu0
  %v2446 = vadd.f32 0.0, %v2445
  %v2447 = vpop.f32.mrf.mxu0
  %2448 = vmatprep.mubr.f32.mxu0 0.0
  %2449 = vmatmul.mubr.f32.gmra.mxu0 %v721
  %v2450 = vpop.f32.mrf.mxu0
  %v2451 = vadd.f32 0.0, %v2450
  %v2452 = vpop.f32.mrf.mxu0
  %2453 = vmatprep.mubr.f32.mxu0 0.0
  %2454 = vmatmul.mubr.f32.gmra.mxu0 %v724
  %v2455 = vpop.f32.mrf.mxu0
  %v2456 = vadd.f32 0.0, %v2455
  %v2457 = vpop.f32.mrf.mxu0
  %2458 = vmatprep.mubr.f32.mxu0 0.0
  %2459 = vmatmul.mubr.f32.gmra.mxu0 %v727
  %v2460 = vpop.f32.mrf.mxu0
  %v2461 = vadd.f32 0.0, %v2460
  %v2462 = vpop.f32.mrf.mxu0
  %2463 = vmatprep.mubr.f32.mxu0 0.0
  %2464 = vmatmul.mubr.f32.gmra.mxu0 %v730
  %v2465 = vpop.f32.mrf.mxu0
  %v2466 = vadd.f32 0.0, %v2465
  %v2467 = vpop.f32.mrf.mxu0
  %2468 = vmatprep.mubr.f32.mxu0 0.0
  %2469 = vmatmul.mubr.f32.gmra.mxu0 %v733
  %v2470 = vpop.f32.mrf.mxu0
  %v2471 = vadd.f32 0.0, %v2470
  %v2472 = vpop.f32.mrf.mxu0
  %2473 = vmatprep.mubr.f32.mxu0 0.0
  %2474 = vmatmul.mubr.f32.gmra.mxu0 %v736
  %v2475 = vpop.f32.mrf.mxu0
  %v2476 = vadd.f32 0.0, %v2475
  %v2477 = vpop.f32.mrf.mxu0
  %2478 = vmatprep.mubr.f32.mxu0 0.0
  %2479 = vmatmul.mubr.f32.gmra.mxu0 %v739
  %v2480 = vpop.f32.mrf.mxu0
  %v2481 = vadd.f32 0.0, %v2480
  %v2482 = vpop.f32.mrf.mxu0
  %2483 = vmatprep.mubr.f32.mxu0 0.0
  %2484 = vmatmul.mubr.f32.gmra.mxu0 %v742
  %v2485 = vpop.f32.mrf.mxu0
  %v2486 = vadd.f32 0.0, %v2485
  %v2487 = vpop.f32.mrf.mxu0
  %2488 = vmatprep.mubr.f32.mxu0 0.0
  %2489 = vmatmul.mubr.f32.gmra.mxu0 %v745
  %v2490 = vpop.f32.mrf.mxu0
  %v2491 = vadd.f32 0.0, %v2490
  %v2492 = vpop.f32.mrf.mxu0
  %2493 = vmatprep.mubr.f32.mxu0 0.0
  %2494 = vmatmul.mubr.f32.gmra.mxu0 %v748
  %v2495 = vpop.f32.mrf.mxu0
  %v2496 = vadd.f32 0.0, %v2495
  %v2497 = vpop.f32.mrf.mxu0
  %2498 = vmatprep.mubr.f32.mxu0 0.0
  %2499 = vmatmul.mubr.f32.gmra.mxu0 %v751
  %v2500 = vpop.f32.mrf.mxu0
  %v2501 = vadd.f32 0.0, %v2500
  %v2502 = vpop.f32.mrf.mxu0
  %2503 = vmatprep.mubr.f32.mxu0 0.0
  %2504 = vmatmul.mubr.f32.gmra.mxu0 %v754
  %v2505 = vpop.f32.mrf.mxu0
  %v2506 = vadd.f32 0.0, %v2505
  %v2507 = vpop.f32.mrf.mxu0
  %2508 = vmatprep.mubr.f32.mxu0 0.0
  %2509 = vmatmul.mubr.f32.gmra.mxu0 %v757
  %v2510 = vpop.f32.mrf.mxu0
  %v2511 = vadd.f32 0.0, %v2510
  %v2512 = vpop.f32.mrf.mxu0
  %2513 = vmatprep.mubr.f32.mxu0 0.0
  %2514 = vmatmul.mubr.f32.gmra.mxu0 %v760
  %v2515 = vpop.f32.mrf.mxu0
  %v2516 = vadd.f32 0.0, %v2515
  %v2517 = vpop.f32.mrf.mxu0
  %2518 = vmatprep.mubr.f32.mxu0 0.0
  %2519 = vmatmul.mubr.f32.gmra.mxu0 %v763
  %v2520 = vpop.f32.mrf.mxu0
  %v2521 = vadd.f32 0.0, %v2520
  %v2522 = vpop.f32.mrf.mxu0
  %2523 = vmatprep.mubr.f32.mxu0 0.0
  %2524 = vmatmul.mubr.f32.gmra.mxu0 %v766
  %v2525 = vpop.f32.mrf.mxu0
  %v2526 = vadd.f32 0.0, %v2525
  %v2527 = vpop.f32.mrf.mxu0
  %2528 = vmatprep.mubr.f32.mxu0 0.0
  %2529 = vmatmul.mubr.f32.gmra.mxu0 %v769
  %v2530 = vpop.f32.mrf.mxu0
  %v2531 = vadd.f32 0.0, %v2530
  %v2532 = vpop.f32.mrf.mxu0
  %2533 = vmatprep.mubr.f32.mxu0 0.0
  %2534 = vmatmul.mubr.f32.gmra.mxu0 %v772
  %v2535 = vpop.f32.mrf.mxu0
  %v2536 = vadd.f32 0.0, %v2535
  %v2537 = vpop.f32.mrf.mxu0
  %2538 = vmatprep.mubr.f32.mxu0 0.0
  %2539 = vmatmul.mubr.f32.gmra.mxu0 %v775
  %v2540 = vpop.f32.mrf.mxu0
  %v2541 = vadd.f32 0.0, %v2540
  %v2542 = vpop.f32.mrf.mxu0
  %2543 = vmatprep.mubr.f32.mxu0 0.0
  %2544 = vmatmul.mubr.f32.gmra.mxu0 %v778
  %v2545 = vpop.f32.mrf.mxu0
  %v2546 = vadd.f32 0.0, %v2545
  %v2547 = vpop.f32.mrf.mxu0
  %2548 = vmatprep.mubr.f32.mxu0 0.0
  %2549 = vmatmul.mubr.f32.gmra.mxu0 %v781
  %v2550 = vpop.f32.mrf.mxu0
  %v2551 = vadd.f32 0.0, %v2550
  %v2552 = vpop.f32.mrf.mxu0
  %2553 = vmatprep.mubr.f32.mxu0 0.0
  %2554 = vmatmul.mubr.f32.gmra.mxu0 %v784
  %v2555 = vpop.f32.mrf.mxu0
  %v2556 = vadd.f32 0.0, %v2555
  %v2557 = vpop.f32.mrf.mxu0
  %2558 = vmatprep.mubr.f32.mxu0 0.0
  %2559 = vmatmul.mubr.f32.gmra.mxu0 %v787
  %v2560 = vpop.f32.mrf.mxu0
  %v2561 = vadd.f32 0.0, %v2560
  %v2562 = vpop.f32.mrf.mxu0
  %2563 = vmatprep.mubr.f32.mxu0 0.0
  %2564 = vmatmul.mubr.f32.gmra.mxu0 %v790
  %v2565 = vpop.f32.mrf.mxu0
  %v2566 = vadd.f32 0.0, %v2565
  %v2567 = vpop.f32.mrf.mxu0
  %2568 = vmatprep.mubr.f32.mxu0 0.0
  %2569 = vmatmul.mubr.f32.gmra.mxu0 %v793
  %v2570 = vpop.f32.mrf.mxu0
  %v2571 = vadd.f32 0.0, %v2570
  %v2572 = vpop.f32.mrf.mxu0
  %2573 = vmatprep.mubr.f32.mxu0 0.0
  %2574 = vmatmul.mubr.f32.gmra.mxu0 %v796
  %v2575 = vpop.f32.mrf.mxu0
  %v2576 = vadd.f32 0.0, %v2575
  %v2577 = vpop.f32.mrf.mxu0
  %2578 = vmatprep.mubr.f32.mxu0 0.0
  %2579 = vmatmul.mubr.f32.gmra.mxu0 %v799
  %v2580 = vpop.f32.mrf.mxu0
  %v2581 = vadd.f32 0.0, %v2580
  %v2582 = vpop.f32.mrf.mxu0
  %2583 = vmatprep.mubr.f32.mxu0 0.0
  %2584 = vmatmul.mubr.f32.gmra.mxu0 %v802
  %v2585 = vpop.f32.mrf.mxu0
  %v2586 = vadd.f32 0.0, %v2585
  %v2587 = vpop.f32.mrf.mxu0
  %2588 = vmatprep.mubr.f32.mxu0 0.0
  %2589 = vmatmul.mubr.f32.gmra.mxu0 %v805
  %v2590 = vpop.f32.mrf.mxu0
  %v2591 = vadd.f32 0.0, %v2590
  %v2592 = vpop.f32.mrf.mxu0
  %2593 = vmatprep.mubr.f32.mxu0 0.0
  %2594 = vmatmul.mubr.f32.gmra.mxu0 %v808
  %v2595 = vpop.f32.mrf.mxu0
  %v2596 = vadd.f32 0.0, %v2595
  %v2597 = vpop.f32.mrf.mxu0
  %2598 = vmatprep.mubr.f32.mxu0 0.0
  %2599 = vmatmul.mubr.f32.gmra.mxu0 %v811
  %v2600 = vpop.f32.mrf.mxu0
  %v2601 = vadd.f32 0.0, %v2600
  %v2602 = vpop.f32.mrf.mxu0
  %2603 = vmatprep.mubr.f32.mxu0 0.0
  %2604 = vmatmul.mubr.f32.gmra.mxu0 %v814
  %v2605 = vpop.f32.mrf.mxu0
  %v2606 = vadd.f32 0.0, %v2605
  %v2607 = vpop.f32.mrf.mxu0
  %2608 = vmatprep.mubr.f32.mxu0 0.0
  %2609 = vmatmul.mubr.f32.gmra.mxu0 %v817
  %v2610 = vpop.f32.mrf.mxu0
  %v2611 = vadd.f32 0.0, %v2610
  %v2612 = vpop.f32.mrf.mxu0
  %2613 = vmatprep.mubr.f32.mxu0 0.0
  %2614 = vmatmul.mubr.f32.gmra.mxu0 %v820
  %v2615 = vpop.f32.mrf.mxu0
  %v2616 = vadd.f32 0.0, %v2615
  %v2617 = vpop.f32.mrf.mxu0
  %2618 = vmatprep.mubr.f32.mxu0 0.0
  %2619 = vmatmul.mubr.f32.gmra.mxu0 %v823
  %v2620 = vpop.f32.mrf.mxu0
  %v2621 = vadd.f32 0.0, %v2620
  %v2622 = vpop.f32.mrf.mxu0
  %2623 = vmatprep.mubr.f32.mxu0 0.0
  %2624 = vmatmul.mubr.f32.gmra.mxu0 %v826
  %v2625 = vpop.f32.mrf.mxu0
  %v2626 = vadd.f32 0.0, %v2625
  %v2627 = vpop.f32.mrf.mxu0
  %2628 = vmatprep.mubr.f32.mxu0 0.0
  %2629 = vmatmul.mubr.f32.gmra.mxu0 %v829
  %v2630 = vpop.f32.mrf.mxu0
  %v2631 = vadd.f32 0.0, %v2630
  %v2632 = vpop.f32.mrf.mxu0
  %2633 = vmatprep.mubr.f32.mxu0 0.0
  %2634 = vmatmul.mubr.f32.gmra.mxu0 %v832
  %v2635 = vpop.f32.mrf.mxu0
  %v2636 = vadd.f32 0.0, %v2635
  %v2637 = vpop.f32.mrf.mxu0
  %2638 = vmatprep.mubr.f32.mxu0 0.0
  %2639 = vmatmul.mubr.f32.gmra.mxu0 %v835
  %v2640 = vpop.f32.mrf.mxu0
  %v2641 = vadd.f32 0.0, %v2640
  %v2642 = vpop.f32.mrf.mxu0
  %2643 = vmatprep.mubr.f32.mxu0 0.0
  %2644 = vmatmul.mubr.f32.gmra.mxu0 %v838
  %v2645 = vpop.f32.mrf.mxu0
  %v2646 = vadd.f32 0.0, %v2645
  %v2647 = vpop.f32.mrf.mxu0
  %2648 = vmatprep.mubr.f32.mxu0 0.0
  %2649 = vmatmul.mubr.f32.gmra.mxu0 %v841
  %v2650 = vpop.f32.mrf.mxu0
  %v2651 = vadd.f32 0.0, %v2650
  %v2652 = vpop.f32.mrf.mxu0
  %2653 = vmatprep.mubr.f32.mxu0 0.0
  %2654 = vmatmul.mubr.f32.gmra.mxu0 %v844
  %v2655 = vpop.f32.mrf.mxu0
  %v2656 = vadd.f32 0.0, %v2655
  %v2657 = vpop.f32.mrf.mxu0
  %2658 = vmatprep.mubr.f32.mxu0 0.0
  %2659 = vmatmul.mubr.f32.gmra.mxu0 %v847
  %v2660 = vpop.f32.mrf.mxu0
  %v2661 = vadd.f32 0.0, %v2660
  %v2662 = vpop.f32.mrf.mxu0
  %2663 = vmatprep.mubr.f32.mxu0 0.0
  %2664 = vmatmul.mubr.f32.gmra.mxu0 %v850
  %v2665 = vpop.f32.mrf.mxu0
  %v2666 = vadd.f32 0.0, %v2665
  %v2667 = vpop.f32.mrf.mxu0
  %2668 = vmatprep.mubr.f32.mxu0 0.0
  %2669 = vmatmul.mubr.f32.gmra.mxu0 %v853
  %v2670 = vpop.f32.mrf.mxu0
  %v2671 = vadd.f32 0.0, %v2670
  %v2672 = vpop.f32.mrf.mxu0
  %2673 = vmatprep.mubr.f32.mxu0 0.0
  %2674 = vmatmul.mubr.f32.gmra.mxu0 %v856
  %v2675 = vpop.f32.mrf.mxu0
  %v2676 = vadd.f32 0.0, %v2675
  %v2677 = vpop.f32.mrf.mxu0
  %2678 = vmatprep.mubr.f32.mxu0 0.0
  %2679 = vmatmul.mubr.f32.gmra.mxu0 %v859
  %v2680 = vpop.f32.mrf.mxu0
  %v2681 = vadd.f32 0.0, %v2680
  %v2682 = vpop.f32.mrf.mxu0
  %2683 = vmatprep.mubr.f32.mxu0 0.0
  %2684 = vmatmul.mubr.f32.gmra.mxu0 %v862
  %v2685 = vpop.f32.mrf.mxu0
  %v2686 = vadd.f32 0.0, %v2685
  %v2687 = vpop.f32.mrf.mxu0
  %2688 = vmatprep.mubr.f32.mxu0 0.0
  %2689 = vmatmul.mubr.f32.gmra.mxu0 %v865
  %v2690 = vpop.f32.mrf.mxu0
  %v2691 = vadd.f32 0.0, %v2690
  %v2692 = vpop.f32.mrf.mxu0
  %2693 = vmatprep.mubr.f32.mxu0 0.0
  %2694 = vmatmul.mubr.f32.gmra.mxu0 %v868
  %v2695 = vpop.f32.mrf.mxu0
  %v2696 = vadd.f32 0.0, %v2695
  %v2697 = vpop.f32.mrf.mxu0
  %2698 = vmatprep.mubr.f32.mxu0 0.0
  %2699 = vmatmul.mubr.f32.gmra.mxu0 %v871
  %v2700 = vpop.f32.mrf.mxu0
  %v2701 = vadd.f32 0.0, %v2700
  %v2702 = vpop.f32.mrf.mxu0
  %2703 = vmatprep.mubr.f32.mxu0 0.0
  %2704 = vmatmul.mubr.f32.gmra.mxu0 %v874
  %v2705 = vpop.f32.mrf.mxu0
  %v2706 = vadd.f32 0.0, %v2705
  %v2707 = vpop.f32.mrf.mxu0
  %2708 = vmatprep.mubr.f32.mxu0 0.0
  %2709 = vmatmul.mubr.f32.gmra.mxu0 %v877
  %v2710 = vpop.f32.mrf.mxu0
  %v2711 = vadd.f32 0.0, %v2710
  %v2712 = vpop.f32.mrf.mxu0
  %2713 = vmatprep.mubr.f32.mxu0 0.0
  %2714 = vmatmul.mubr.f32.gmra.mxu0 %v880
  %v2715 = vpop.f32.mrf.mxu0
  %v2716 = vadd.f32 0.0, %v2715
  %v2717 = vpop.f32.mrf.mxu0
  %2718 = vmatprep.mubr.f32.mxu0 0.0
  %2719 = vmatmul.mubr.f32.gmra.mxu0 %v883
  %v2720 = vpop.f32.mrf.mxu0
  %v2721 = vadd.f32 0.0, %v2720
  %v2722 = vpop.f32.mrf.mxu0
  %2723 = vmatprep.mubr.f32.mxu0 0.0
  %2724 = vmatmul.mubr.f32.gmra.mxu0 %v886
  %v2725 = vpop.f32.mrf.mxu0
  %v2726 = vadd.f32 0.0, %v2725
  %v2727 = vpop.f32.mrf.mxu0
  %2728 = vmatprep.mubr.f32.mxu0 0.0
  %2729 = vmatmul.mubr.f32.gmra.mxu0 %v889
  %v2730 = vpop.f32.mrf.mxu0
  %v2731 = vadd.f32 0.0, %v2730
  %v2732 = vpop.f32.mrf.mxu0
  %2733 = vmatprep.mubr.f32.mxu0 0.0
  %2734 = vmatmul.mubr.f32.gmra.mxu0 %v892
  %v2735 = vpop.f32.mrf.mxu0
  %v2736 = vadd.f32 0.0, %v2735
  %v2737 = vpop.f32.mrf.mxu0
  %2738 = vmatprep.mubr.f32.mxu0 0.0
  %2739 = vmatmul.mubr.f32.gmra.mxu0 %v895
  %v2740 = vpop.f32.mrf.mxu0
  %v2741 = vadd.f32 0.0, %v2740
  %v2742 = vpop.f32.mrf.mxu0
  %2743 = vmatprep.mubr.f32.mxu0 0.0
  %2744 = vmatmul.mubr.f32.gmra.mxu0 %v898
  %v2745 = vpop.f32.mrf.mxu0
  %v2746 = vadd.f32 0.0, %v2745
  %v2747 = vpop.f32.mrf.mxu0
  %2748 = vmatprep.mubr.f32.mxu0 0.0
  %2749 = vmatmul.mubr.f32.gmra.mxu0 %v901
  %v2750 = vpop.f32.mrf.mxu0
  %v2751 = vadd.f32 0.0, %v2750
  %v2752 = vpop.f32.mrf.mxu0
  %2753 = vmatprep.mubr.f32.mxu0 0.0
  %2754 = vmatmul.mubr.f32.gmra.mxu0 %v904
  %v2755 = vpop.f32.mrf.mxu0
  %v2756 = vadd.f32 0.0, %v2755
  %v2757 = vpop.f32.mrf.mxu0
  %2758 = vmatprep.mubr.f32.mxu0 0.0
  %2759 = vmatmul.mubr.f32.gmra.mxu0 %v907
  %v2760 = vpop.f32.mrf.mxu0
  %v2761 = vadd.f32 0.0, %v2760
  %v2762 = vpop.f32.mrf.mxu0
  %2763 = vmatprep.mubr.f32.mxu0 0.0
  %2764 = vmatmul.mubr.f32.gmra.mxu0 %v910
  %v2765 = vpop.f32.mrf.mxu0
  %v2766 = vadd.f32 0.0, %v2765
  %v2767 = vpop.f32.mrf.mxu0
  %2768 = vmatprep.mubr.f32.mxu0 0.0
  %2769 = vmatmul.mubr.f32.gmra.mxu0 %v913
  %v2770 = vpop.f32.mrf.mxu0
  %v2771 = vadd.f32 0.0, %v2770
  %v2772 = vpop.f32.mrf.mxu0
  %2773 = vmatprep.mubr.f32.mxu0 0.0
  %2774 = vmatmul.mubr.f32.gmra.mxu0 %v916
  %v2775 = vpop.f32.mrf.mxu0
  %v2776 = vadd.f32 0.0, %v2775
  %v2777 = vpop.f32.mrf.mxu0
  %2778 = vmatprep.mubr.f32.mxu0 0.0
  %2779 = vmatmul.mubr.f32.gmra.mxu0 %v919
  %v2780 = vpop.f32.mrf.mxu0
  %v2781 = vadd.f32 0.0, %v2780
  %v2782 = vpop.f32.mrf.mxu0
  %2783 = vmatprep.mubr.f32.mxu0 0.0
  %2784 = vmatmul.mubr.f32.gmra.mxu0 %v922
  %v2785 = vpop.f32.mrf.mxu0
  %v2786 = vadd.f32 0.0, %v2785
  %v2787 = vpop.f32.mrf.mxu0
  %2788 = vmatprep.mubr.f32.mxu0 0.0
  %2789 = vmatmul.mubr.f32.gmra.mxu0 %v925
  %v2790 = vpop.f32.mrf.mxu0
  %v2791 = vadd.f32 0.0, %v2790
  %v2792 = vpop.f32.mrf.mxu0
  %2793 = vmatprep.mubr.f32.mxu0 0.0
  %2794 = vmatmul.mubr.f32.gmra.mxu0 %v928
  %v2795 = vpop.f32.mrf.mxu0
  %v2796 = vadd.f32 0.0, %v2795
  %v2797 = vpop.f32.mrf.mxu0
  %2798 = vmatprep.mubr.f32.mxu0 0.0
  %2799 = vmatmul.mubr.f32.gmra.mxu0 %v931
  %v2800 = vpop.f32.mrf.mxu0
  %v2801 = vadd.f32 0.0, %v2800
  %v2802 = vpop.f32.mrf.mxu0
  %2803 = vmatprep.mubr.f32.mxu0 0.0
  %2804 = vmatmul.mubr.f32.gmra.mxu0 %v934
  %v2805 = vpop.f32.mrf.mxu0
  %v2806 = vadd.f32 0.0, %v2805
  %v2807 = vpop.f32.mrf.mxu0
  %2808 = vmatprep.mubr.f32.mxu0 0.0
  %2809 = vmatmul.mubr.f32.gmra.mxu0 %v937
  %v2810 = vpop.f32.mrf.mxu0
  %v2811 = vadd.f32 0.0, %v2810
  %v2812 = vpop.f32.mrf.mxu0
  %2813 = vmatprep.mubr.f32.mxu0 0.0
  %2814 = vmatmul.mubr.f32.gmra.mxu0 %v940
  %v2815 = vpop.f32.mrf.mxu0
  %v2816 = vadd.f32 0.0, %v2815
  %v2817 = vpop.f32.mrf.mxu0
  %2818 = vmatprep.mubr.f32.mxu0 0.0
  %2819 = vmatmul.mubr.f32.gmra.mxu0 %v943
  %v2820 = vpop.f32.mrf.mxu0
  %v2821 = vadd.f32 0.0, %v2820
  %v2822 = vpop.f32.mrf.mxu0
  %2823 = vmatprep.mubr.f32.mxu0 0.0
  %2824 = vmatmul.mubr.f32.gmra.mxu0 %v946
  %v2825 = vpop.f32.mrf.mxu0
  %v2826 = vadd.f32 0.0, %v2825
  %v2827 = vpop.f32.mrf.mxu0
  %2828 = vmatprep.mubr.f32.mxu0 0.0
  %2829 = vmatmul.mubr.f32.gmra.mxu0 %v949
  %v2830 = vpop.f32.mrf.mxu0
  %v2831 = vadd.f32 0.0, %v2830
  %v2832 = vpop.f32.mrf.mxu0
  %2833 = vmatprep.mubr.f32.mxu0 0.0
  %2834 = vmatmul.mubr.f32.gmra.mxu0 %v952
  %v2835 = vpop.f32.mrf.mxu0
  %v2836 = vadd.f32 0.0, %v2835
  %v2837 = vpop.f32.mrf.mxu0
  %2838 = vmatprep.mubr.f32.mxu0 0.0
  %2839 = vmatmul.mubr.f32.gmra.mxu0 %v955
  %v2840 = vpop.f32.mrf.mxu0
  %v2841 = vadd.f32 0.0, %v2840
  %v2842 = vpop.f32.mrf.mxu0
  %2843 = vmatprep.mubr.f32.mxu0 0.0
  %2844 = vmatmul.mubr.f32.gmra.mxu0 %v958
  %v2845 = vpop.f32.mrf.mxu0
  %v2846 = vadd.f32 0.0, %v2845
  %v2847 = vpop.f32.mrf.mxu0
  %2848 = vmatprep.mubr.f32.mxu0 0.0
  %2849 = vmatmul.mubr.f32.gmra.mxu0 %v961
  %v2850 = vpop.f32.mrf.mxu0
  %v2851 = vadd.f32 0.0, %v2850
  %v2852 = vpop.f32.mrf.mxu0
  %2853 = vmatprep.mubr.f32.mxu0 0.0
  %2854 = vmatmul.mubr.f32.gmra.mxu0 %v964
  %v2855 = vpop.f32.mrf.mxu0
  %v2856 = vadd.f32 0.0, %v2855
  %v2857 = vpop.f32.mrf.mxu0
  %2858 = vmatprep.mubr.f32.mxu0 0.0
  %2859 = vmatmul.mubr.f32.gmra.mxu0 %v967
  %v2860 = vpop.f32.mrf.mxu0
  %v2861 = vadd.f32 0.0, %v2860
  %v2862 = vpop.f32.mrf.mxu0
  %2863 = vmatprep.mubr.f32.mxu0 0.0
  %2864 = vmatmul.mubr.f32.gmra.mxu0 %v970
  %v2865 = vpop.f32.mrf.mxu0
  %v2866 = vadd.f32 0.0, %v2865
  %v2867 = vpop.f32.mrf.mxu0
  %2868 = vmatprep.mubr.f32.mxu0 0.0
  %2869 = vmatmul.mubr.f32.gmra.mxu0 %v973
  %v2870 = vpop.f32.mrf.mxu0
  %v2871 = vadd.f32 0.0, %v2870
  %v2872 = vpop.f32.mrf.mxu0
  %2873 = vmatprep.mubr.f32.mxu0 0.0
  %2874 = vmatmul.mubr.f32.gmra.mxu0 %v976
  %v2875 = vpop.f32.mrf.mxu0
  %v2876 = vadd.f32 0.0, %v2875
  %v2877 = vpop.f32.mrf.mxu0
  %2878 = vmatprep.mubr.f32.mxu0 0.0
  %2879 = vmatmul.mubr.f32.gmra.mxu0 %v979
  %v2880 = vpop.f32.mrf.mxu0
  %v2881 = vadd.f32 0.0, %v2880
  %v2882 = vpop.f32.mrf.mxu0
  %2883 = vmatprep.mubr.f32.mxu0 0.0
  %2884 = vmatmul.mubr.f32.gmra.mxu0 %v982
  %v2885 = vpop.f32.mrf.mxu0
  %v2886 = vadd.f32 0.0, %v2885
  %v2887 = vpop.f32.mrf.mxu0
  %2888 = vmatprep.mubr.f32.mxu0 0.0
  %2889 = vmatmul.mubr.f32.gmra.mxu0 %v985
  %v2890 = vpop.f32.mrf.mxu0
  %v2891 = vadd.f32 0.0, %v2890
  %v2892 = vpop.f32.mrf.mxu0
  %2893 = vmatprep.mubr.f32.mxu0 0.0
  %2894 = vmatmul.mubr.f32.gmra.mxu0 %v988
  %v2895 = vpop.f32.mrf.mxu0
  %v2896 = vadd.f32 0.0, %v2895
  %v2897 = vpop.f32.mrf.mxu0
  %2898 = vmatprep.mubr.f32.mxu0 0.0
  %2899 = vmatmul.mubr.f32.gmra.mxu0 %v991
  %v2900 = vpop.f32.mrf.mxu0
  %v2901 = vadd.f32 0.0, %v2900
  %v2902 = vpop.f32.mrf.mxu0
  %2903 = vmatprep.mubr.f32.mxu0 0.0
  %2904 = vmatmul.mubr.f32.gmra.mxu0 %v994
  %v2905 = vpop.f32.mrf.mxu0
  %v2906 = vadd.f32 0.0, %v2905
  %v2907 = vpop.f32.mrf.mxu0
  %2908 = vmatprep.mubr.f32.mxu0 0.0
  %2909 = vmatmul.mubr.f32.gmra.mxu0 %v997
  %v2910 = vpop.f32.mrf.mxu0
  %v2911 = vadd.f32 0.0, %v2910
  %v2912 = vpop.f32.mrf.mxu0
  %2913 = vmatprep.mubr.f32.mxu0 0.0
  %2914 = vmatmul.mubr.f32.gmra.mxu0 %v1000
  %v2915 = vpop.f32.mrf.mxu0
  %v2916 = vadd.f32 0.0, %v2915
  %v2917 = vpop.f32.mrf.mxu0
  %2918 = vmatprep.mubr.f32.mxu0 0.0
  %2919 = vmatmul.mubr.f32.gmra.mxu0 %v1003
  %v2920 = vpop.f32.mrf.mxu0
  %v2921 = vadd.f32 0.0, %v2920
  %v2922 = vpop.f32.mrf.mxu0
  %2923 = vmatprep.mubr.f32.mxu0 0.0
  %2924 = vmatmul.mubr.f32.gmra.mxu0 %v1006
  %v2925 = vpop.f32.mrf.mxu0
  %v2926 = vadd.f32 0.0, %v2925
  %v2927 = vpop.f32.mrf.mxu0
  %2928 = vmatprep.mubr.f32.mxu0 0.0
  %2929 = vmatmul.mubr.f32.gmra.mxu0 %v1009
  %v2930 = vpop.f32.mrf.mxu0
  %v2931 = vadd.f32 0.0, %v2930
  %v2932 = vpop.f32.mrf.mxu0
  %2933 = vmatprep.mubr.f32.mxu0 0.0
  %2934 = vmatmul.mubr.f32.gmra.mxu0 %v1012
  %v2935 = vpop.f32.mrf.mxu0
  %v2936 = vadd.f32 0.0, %v2935
  %v2937 = vpop.f32.mrf.mxu0
  %2938 = vmatprep.mubr.f32.mxu0 0.0
  %2939 = vmatmul.mubr.f32.gmra.mxu0 %v1015
  %v2940 = vpop.f32.mrf.mxu0
  %v2941 = vadd.f32 0.0, %v2940
  %v2942 = vpop.f32.mrf.mxu0
  %2943 = vmatprep.mubr.f32.mxu0 0.0
  %2944 = vmatmul.mubr.f32.gmra.mxu0 %v1018
  %v2945 = vpop.f32.mrf.mxu0
  %v2946 = vadd.f32 0.0, %v2945
  %v2947 = vpop.f32.mrf.mxu0
  %2948 = vmatprep.mubr.f32.mxu0 0.0
  %2949 = vmatmul.mubr.f32.gmra.mxu0 %v1021
  %v2950 = vpop.f32.mrf.mxu0
  %v2951 = vadd.f32 0.0, %v2950
  %v2952 = vpop.f32.mrf.mxu0
  %2953 = vmatprep.mubr.f32.mxu0 0.0
  %2954 = vmatmul.mubr.f32.gmra.mxu0 %v1024
  %v2955 = vpop.f32.mrf.mxu0
  %v2956 = vadd.f32 0.0, %v2955
  %v2957 = vpop.f32.mrf.mxu0
  %2958 = vmatprep.mubr.f32.mxu0 0.0
  %2959 = vmatmul.mubr.f32.gmra.mxu0 %v1027
  %v2960 = vpop.f32.mrf.mxu0
  %v2961 = vadd.f32 0.0, %v2960
  %v2962 = vpop.f32.mrf.mxu0
  %2963 = vmatprep.mubr.f32.mxu0 0.0
  %2964 = vmatmul.mubr.f32.gmra.mxu0 %v1030
  %v2965 = vpop.f32.mrf.mxu0
  %v2966 = vadd.f32 0.0, %v2965
  %v2967 = vpop.f32.mrf.mxu0
  %2968 = vmatprep.mubr.f32.mxu0 0.0
  %2969 = vmatmul.mubr.f32.gmra.mxu0 %v1033
  %v2970 = vpop.f32.mrf.mxu0
  %v2971 = vadd.f32 0.0, %v2970
  %v2972 = vpop.f32.mrf.mxu0
  %2973 = vmatprep.mubr.f32.mxu0 0.0
  %2974 = vmatmul.mubr.f32.gmra.mxu0 %v1036
  %v2975 = vpop.f32.mrf.mxu0
  %v2976 = vadd.f32 0.0, %v2975
  %v2977 = vpop.f32.mrf.mxu0
  %2978 = vmatprep.mubr.f32.mxu0 0.0
  %2979 = vmatmul.mubr.f32.gmra.mxu0 %v1039
  %v2980 = vpop.f32.mrf.mxu0
  %v2981 = vadd.f32 0.0, %v2980
  %v2982 = vpop.f32.mrf.mxu0
  %2983 = vmatprep.mubr.f32.mxu0 0.0
  %2984 = vmatmul.mubr.f32.gmra.mxu0 %v1042
  %v2985 = vpop.f32.mrf.mxu0
  %v2986 = vadd.f32 0.0, %v2985
  %v2987 = vpop.f32.mrf.mxu0
  %2988 = vmatprep.mubr.f32.mxu0 0.0
  %2989 = vmatmul.mubr.f32.gmra.mxu0 %v1045
  %v2990 = vpop.f32.mrf.mxu0
  %v2991 = vadd.f32 0.0, %v2990
  %v2992 = vpop.f32.mrf.mxu0
  %2993 = vmatprep.mubr.f32.mxu0 0.0
  %2994 = vmatmul.mubr.f32.gmra.mxu0 %v1048
  %v2995 = vpop.f32.mrf.mxu0
  %v2996 = vadd.f32 0.0, %v2995
  %v2997 = vpop.f32.mrf.mxu0
  %2998 = vmatprep.mubr.f32.mxu0 0.0
  %2999 = vmatmul.mubr.f32.gmra.mxu0 %v1051
  %v3000 = vpop.f32.mrf.mxu0
  %v3001 = vadd.f32 0.0, %v3000
  %v3002 = vpop.f32.mrf.mxu0
  %3003 = vmatprep.mubr.f32.mxu0 0.0
  %3004 = vmatmul.mubr.f32.gmra.mxu0 %v1054
  %v3005 = vpop.f32.mrf.mxu0
  %v3006 = vadd.f32 0.0, %v3005
  %v3007 = vpop.f32.mrf.mxu0
  %3008 = vmatprep.mubr.f32.mxu0 0.0
  %3009 = vmatmul.mubr.f32.gmra.mxu0 %v1057
  %v3010 = vpop.f32.mrf.mxu0
  %v3011 = vadd.f32 0.0, %v3010
  %v3012 = vpop.f32.mrf.mxu0
  %3013 = vmatprep.mubr.f32.mxu0 0.0
  %3014 = vmatmul.mubr.f32.gmra.mxu0 %v1060
  %v3015 = vpop.f32.mrf.mxu0
  %v3016 = vadd.f32 0.0, %v3015
  %v3017 = vpop.f32.mrf.mxu0
  %3018 = vmatprep.mubr.f32.mxu0 0.0
  %3019 = vmatmul.mubr.f32.gmra.mxu0 %v1063
  %v3020 = vpop.f32.mrf.mxu0
  %v3021 = vadd.f32 0.0, %v3020
  %v3022 = vpop.f32.mrf.mxu0
  %3023 = vmatprep.mubr.f32.mxu0 0.0
  %3024 = vmatmul.mubr.f32.gmra.mxu0 %v1066
  %v3025 = vpop.f32.mrf.mxu0
  %v3026 = vadd.f32 0.0, %v3025
  %v3027 = vpop.f32.mrf.mxu0
  %3028 = vmatprep.mubr.f32.mxu0 0.0
  %3029 = vmatmul.mubr.f32.gmra.mxu0 %v1069
  %v3030 = vpop.f32.mrf.mxu0
  %v3031 = vadd.f32 0.0, %v3030
  %v3032 = vpop.f32.mrf.mxu0
  %3033 = vmatprep.mubr.f32.mxu0 0.0
  %3034 = vmatmul.mubr.f32.gmra.mxu0 %v1072
  %v3035 = vpop.f32.mrf.mxu0
  %v3036 = vadd.f32 0.0, %v3035
  %v3037 = vpop.f32.mrf.mxu0
  %3038 = vmatprep.mubr.f32.mxu0 0.0
  %3039 = vmatmul.mubr.f32.gmra.mxu0 %v1075
  %v3040 = vpop.f32.mrf.mxu0
  %v3041 = vadd.f32 0.0, %v3040
  %v3042 = vpop.f32.mrf.mxu0
  %3043 = vmatprep.mubr.f32.mxu0 0.0
  %3044 = vmatmul.mubr.f32.gmra.mxu0 %v1078
  %v3045 = vpop.f32.mrf.mxu0
  %v3046 = vadd.f32 0.0, %v3045
  %v3047 = vpop.f32.mrf.mxu0
  %3048 = vmatprep.mubr.f32.mxu0 0.0
  %3049 = vmatmul.mubr.f32.gmra.mxu0 %v1081
  %v3050 = vpop.f32.mrf.mxu0
  %v3051 = vadd.f32 0.0, %v3050
  %v3052 = vpop.f32.mrf.mxu0
  %3053 = vmatprep.mubr.f32.mxu0 0.0
  %3054 = vmatmul.mubr.f32.gmra.mxu0 %v1084
  %v3055 = vpop.f32.mrf.mxu0
  %v3056 = vadd.f32 0.0, %v3055
  %v3057 = vpop.f32.mrf.mxu0
  %3058 = vmatprep.mubr.f32.mxu0 0.0
  %3059 = vmatmul.mubr.f32.gmra.mxu0 %v1087
  %v3060 = vpop.f32.mrf.mxu0
  %v3061 = vadd.f32 0.0, %v3060
  %v3062 = vpop.f32.mrf.mxu0
  %3063 = vmatprep.mubr.f32.mxu0 0.0
  %3064 = vmatmul.mubr.f32.gmra.mxu0 %v1090
  %v3065 = vpop.f32.mrf.mxu0
  %v3066 = vadd.f32 0.0, %v3065
  %v3067 = vpop.f32.mrf.mxu0
  %3068 = vmatprep.mubr.f32.mxu0 0.0
  %3069 = vmatmul.mubr.f32.gmra.mxu0 %v1093
  %v3070 = vpop.f32.mrf.mxu0
  %v3071 = vadd.f32 0.0, %v3070
  %v3072 = vpop.f32.mrf.mxu0
  %3073 = vmatprep.mubr.f32.mxu0 0.0
  %3074 = vmatmul.mubr.f32.gmra.mxu0 %v1096
  %v3075 = vpop.f32.mrf.mxu0
  %v3076 = vadd.f32 0.0, %v3075
  %v3077 = vpop.f32.mrf.mxu0
  %3078 = vmatprep.mubr.f32.mxu0 0.0
  %3079 = vmatmul.mubr.f32.gmra.mxu0 %v1099
  %v3080 = vpop.f32.mrf.mxu0
  %v3081 = vadd.f32 0.0, %v3080
  %v3082 = vpop.f32.mrf.mxu0
  %3083 = vmatprep.mubr.f32.mxu0 0.0
  %3084 = vmatmul.mubr.f32.gmra.mxu0 %v1102
  %v3085 = vpop.f32.mrf.mxu0
  %v3086 = vadd.f32 0.0, %v3085
  %v3087 = vpop.f32.mrf.mxu0
  %3088 = vmatprep.mubr.f32.mxu0 0.0
  %3089 = vmatmul.mubr.f32.gmra.mxu0 %v1105
  %v3090 = vpop.f32.mrf.mxu0
  %v3091 = vadd.f32 0.0, %v3090
  %v3092 = vpop.f32.mrf.mxu0
  %3093 = vmatprep.mubr.f32.mxu0 0.0
  %3094 = vmatmul.mubr.f32.gmra.mxu0 %v1108
  %v3095 = vpop.f32.mrf.mxu0
  %v3096 = vadd.f32 0.0, %v3095
  %v3097 = vpop.f32.mrf.mxu0
  %3098 = vmatprep.mubr.f32.mxu0 0.0
  %3099 = vmatmul.mubr.f32.gmra.mxu0 %v1111
  %v3100 = vpop.f32.mrf.mxu0
  %v3101 = vadd.f32 0.0, %v3100
  %v3102 = vpop.f32.mrf.mxu0
  %3103 = vmatprep.mubr.f32.mxu0 0.0
  %3104 = vmatmul.mubr.f32.gmra.mxu0 %v1114
  %v3105 = vpop.f32.mrf.mxu0
  %v3106 = vadd.f32 0.0, %v3105
  %v3107 = vpop.f32.mrf.mxu0
  %3108 = vmatprep.mubr.f32.mxu0 0.0
  %3109 = vmatmul.mubr.f32.gmra.mxu0 %v1117
  %v3110 = vpop.f32.mrf.mxu0
  %v3111 = vadd.f32 0.0, %v3110
  %v3112 = vpop.f32.mrf.mxu0
  %3113 = vmatprep.mubr.f32.mxu0 0.0
  %3114 = vmatmul.mubr.f32.gmra.mxu0 %v1120
  %v3115 = vpop.f32.mrf.mxu0
  %v3116 = vadd.f32 0.0, %v3115
  %v3117 = vpop.f32.mrf.mxu0
  %3118 = vmatprep.mubr.f32.mxu0 0.0
  %3119 = vmatmul.mubr.f32.gmra.mxu0 %v1123
  %v3120 = vpop.f32.mrf.mxu0
  %v3121 = vadd.f32 0.0, %v3120
  %v3122 = vpop.f32.mrf.mxu0
  %3123 = vmatprep.mubr.f32.mxu0 0.0
  %3124 = vmatmul.mubr.f32.gmra.mxu0 %v1126
  %v3125 = vpop.f32.mrf.mxu0
  %v3126 = vadd.f32 0.0, %v3125
  %v3127 = vpop.f32.mrf.mxu0
  %3128 = vmatprep.mubr.f32.mxu0 0.0
  %3129 = vmatmul.mubr.f32.gmra.mxu0 %v1129
  %v3130 = vpop.f32.mrf.mxu0
  %v3131 = vadd.f32 0.0, %v3130
  %v3132 = vpop.f32.mrf.mxu0
  %3133 = vmatprep.mubr.f32.mxu0 0.0
  %3134 = vmatmul.mubr.f32.gmra.mxu0 %v1132
  %v3135 = vpop.f32.mrf.mxu0
  %v3136 = vadd.f32 0.0, %v3135
  %v3137 = vpop.f32.mrf.mxu0
  %3138 = vmatprep.mubr.f32.mxu0 0.0
  %3139 = vmatmul.mubr.f32.gmra.mxu0 %v1135
  %v3140 = vpop.f32.mrf.mxu0
  %v3141 = vadd.f32 0.0, %v3140
  %v3142 = vpop.f32.mrf.mxu0
  %3143 = vmatprep.mubr.f32.mxu0 0.0
  %3144 = vmatmul.mubr.f32.gmra.mxu0 %v1138
  %v3145 = vpop.f32.mrf.mxu0
  %v3146 = vadd.f32 0.0, %v3145
  %v3147 = vpop.f32.mrf.mxu0
  %3148 = vmatprep.mubr.f32.mxu0 0.0
  %3149 = vmatmul.mubr.f32.gmra.mxu0 %v1141
  %v3150 = vpop.f32.mrf.mxu0
  %v3151 = vadd.f32 0.0, %v3150
  %v3152 = vpop.f32.mrf.mxu0
  %3153 = vmatprep.mubr.f32.mxu0 0.0
  %3154 = vmatmul.mubr.f32.gmra.mxu0 %v1144
  %v3155 = vpop.f32.mrf.mxu0
  %v3156 = vadd.f32 0.0, %v3155
  %v3157 = vpop.f32.mrf.mxu0
  %3158 = vmatprep.mubr.f32.mxu0 0.0
  %3159 = vmatmul.mubr.f32.gmra.mxu0 %v1147
  %v3160 = vpop.f32.mrf.mxu0
  %v3161 = vadd.f32 0.0, %v3160
  %v3162 = vpop.f32.mrf.mxu0
  %3163 = vmatprep.mubr.f32.mxu0 0.0
  %3164 = vmatmul.mubr.f32.gmra.mxu0 %v1150
  %v3165 = vpop.f32.mrf.mxu0
  %v3166 = vadd.f32 0.0, %v3165
  %v3167 = vpop.f32.mrf.mxu0
  %3168 = vmatprep.mubr.f32.mxu0 0.0
  %3169 = vmatmul.mubr.f32.gmra.mxu0 %v1153
  %v3170 = vpop.f32.mrf.mxu0
  %v3171 = vadd.f32 0.0, %v3170
  %v3172 = vpop.f32.mrf.mxu0
  %3173 = vmatprep.mubr.f32.mxu0 0.0
  %3174 = vmatmul.mubr.f32.gmra.mxu0 %v1156
  %v3175 = vpop.f32.mrf.mxu0
  %v3176 = vadd.f32 0.0, %v3175
  %v3177 = vpop.f32.mrf.mxu0
  %3178 = vmatprep.mubr.f32.mxu0 0.0
  %3179 = vmatmul.mubr.f32.gmra.mxu0 %v1159
  %v3180 = vpop.f32.mrf.mxu0
  %v3181 = vadd.f32 0.0, %v3180
  %v3182 = vpop.f32.mrf.mxu0
  %3183 = vmatprep.mubr.f32.mxu0 0.0
  %3184 = vmatmul.mubr.f32.gmra.mxu0 %v1162
  %v3185 = vpop.f32.mrf.mxu0
  %v3186 = vadd.f32 0.0, %v3185
  %v3187 = vpop.f32.mrf.mxu0
  %3188 = vmatprep.mubr.f32.mxu0 0.0
  %3189 = vmatmul.mubr.f32.gmra.mxu0 %v1165
  %v3190 = vpop.f32.mrf.mxu0
  %v3191 = vadd.f32 0.0, %v3190
  %v3192 = vpop.f32.mrf.mxu0
  %3193 = vmatprep.mubr.f32.mxu0 0.0
  %3194 = vmatmul.mubr.f32.gmra.mxu0 %v1168
  %v3195 = vpop.f32.mrf.mxu0
  %v3196 = vadd.f32 0.0, %v3195
  %v3197 = vpop.f32.mrf.mxu0
  %3198 = vmatprep.mubr.f32.mxu0 0.0
  %3199 = vmatmul.mubr.f32.gmra.mxu0 %v1171
  %v3200 = vpop.f32.mrf.mxu0
  %v3201 = vadd.f32 0.0, %v3200
  %v3202 = vpop.f32.mrf.mxu0
  %3203 = vmatprep.mubr.f32.mxu0 0.0
  %3204 = vmatmul.mubr.f32.gmra.mxu0 %v1174
  %v3205 = vpop.f32.mrf.mxu0
  %v3206 = vadd.f32 0.0, %v3205
  %v3207 = vpop.f32.mrf.mxu0
  %3208 = vmatprep.mubr.f32.mxu0 0.0
  %3209 = vmatmul.mubr.f32.gmra.mxu0 %v1177
  %v3210 = vpop.f32.mrf.mxu0
  %v3211 = vadd.f32 0.0, %v3210
  %v3212 = vpop.f32.mrf.mxu0
  %3213 = vmatprep.mubr.f32.mxu0 0.0
  %3214 = vmatmul.mubr.f32.gmra.mxu0 %v1180
  %v3215 = vpop.f32.mrf.mxu0
  %v3216 = vadd.f32 0.0, %v3215
  %v3217 = vpop.f32.mrf.mxu0
  %3218 = vmatprep.mubr.f32.mxu0 0.0
  %3219 = vmatmul.mubr.f32.gmra.mxu0 %v1183
  %v3220 = vpop.f32.mrf.mxu0
  %v3221 = vadd.f32 0.0, %v3220
  %v3222 = vpop.f32.mrf.mxu0
  %3223 = vmatprep.mubr.f32.mxu0 0.0
  %3224 = vmatmul.mubr.f32.gmra.mxu0 %v1186
  %v3225 = vpop.f32.mrf.mxu0
  %v3226 = vadd.f32 0.0, %v3225
  %v3227 = vpop.f32.mrf.mxu0
  %3228 = vmatprep.mubr.f32.mxu0 0.0
  %3229 = vmatmul.mubr.f32.gmra.mxu0 %v1189
  %v3230 = vpop.f32.mrf.mxu0
  %v3231 = vadd.f32 0.0, %v3230
  %v3232 = vpop.f32.mrf.mxu0
  %3233 = vmatprep.mubr.f32.mxu0 0.0
  %3234 = vmatmul.mubr.f32.gmra.mxu0 %v1192
  %v3235 = vpop.f32.mrf.mxu0
  %v3236 = vadd.f32 0.0, %v3235
  %v3237 = vpop.f32.mrf.mxu0
  %3238 = vmatprep.mubr.f32.mxu0 0.0
  %3239 = vmatmul.mubr.f32.gmra.mxu0 %v1195
  %v3240 = vpop.f32.mrf.mxu0
  %v3241 = vadd.f32 0.0, %v3240
  %v3242 = vpop.f32.mrf.mxu0
  %3243 = vmatprep.mubr.f32.mxu0 0.0
  %3244 = vmatmul.mubr.f32.gmra.mxu0 %v1198
  %v3245 = vpop.f32.mrf.mxu0
  %v3246 = vadd.f32 0.0, %v3245
  %v3247 = vpop.f32.mrf.mxu0
  %3248 = vmatprep.mubr.f32.mxu0 0.0
  %3249 = vmatmul.mubr.f32.gmra.mxu0 %v1201
  %v3250 = vpop.f32.mrf.mxu0
  %v3251 = vadd.f32 0.0, %v3250
  %v3252 = vpop.f32.mrf.mxu0
  %3253 = vmatprep.mubr.f32.mxu0 0.0
  %3254 = vmatmul.mubr.f32.gmra.mxu0 %v1204
  %v3255 = vpop.f32.mrf.mxu0
  %v3256 = vadd.f32 0.0, %v3255
  %v3257 = vpop.f32.mrf.mxu0
  %3258 = vmatprep.mubr.f32.mxu0 0.0
  %3259 = vmatmul.mubr.f32.gmra.mxu0 %v1207
  %v3260 = vpop.f32.mrf.mxu0
  %v3261 = vadd.f32 0.0, %v3260
  %v3262 = vpop.f32.mrf.mxu0
  %3263 = vmatprep.mubr.f32.mxu0 0.0
  %3264 = vmatmul.mubr.f32.gmra.mxu0 %v1210
  %v3265 = vpop.f32.mrf.mxu0
  %v3266 = vadd.f32 0.0, %v3265
  %v3267 = vpop.f32.mrf.mxu0
  %3268 = vmatprep.mubr.f32.mxu0 0.0
  %3269 = vmatmul.mubr.f32.gmra.mxu0 %v1213
  %v3270 = vpop.f32.mrf.mxu0
  %v3271 = vadd.f32 0.0, %v3270
  %v3272 = vpop.f32.mrf.mxu0
  %3273 = vmatprep.mubr.f32.mxu0 0.0
  %3274 = vmatmul.mubr.f32.gmra.mxu0 %v1216
  %v3275 = vpop.f32.mrf.mxu0
  %v3276 = vadd.f32 0.0, %v3275
  %v3277 = vpop.f32.mrf.mxu0
  %3278 = vmatprep.mubr.f32.mxu0 0.0
  %3279 = vmatmul.mubr.f32.gmra.mxu0 %v1219
  %v3280 = vpop.f32.mrf.mxu0
  %v3281 = vadd.f32 0.0, %v3280
  %v3282 = vpop.f32.mrf.mxu0
  %3283 = vmatprep.mubr.f32.mxu0 0.0
  %3284 = vmatmul.mubr.f32.gmra.mxu0 %v1222
  %v3285 = vpop.f32.mrf.mxu0
  %v3286 = vadd.f32 0.0, %v3285
  %v3287 = vpop.f32.mrf.mxu0
  %3288 = vmatprep.mubr.f32.mxu0 0.0
  %3289 = vmatmul.mubr.f32.gmra.mxu0 %v1225
  %v3290 = vpop.f32.mrf.mxu0
  %v3291 = vadd.f32 0.0, %v3290
  %v3292 = vpop.f32.mrf.mxu0
  %3293 = vmatprep.mubr.f32.mxu0 0.0
  %3294 = vmatmul.mubr.f32.gmra.mxu0 %v1228
  %v3295 = vpop.f32.mrf.mxu0
  %v3296 = vadd.f32 0.0, %v3295
  %v3297 = vpop.f32.mrf.mxu0
  %3298 = vmatprep.mubr.f32.mxu0 0.0
  %3299 = vmatmul.mubr.f32.gmra.mxu0 %v1231
  %v3300 = vpop.f32.mrf.mxu0
  %v3301 = vadd.f32 0.0, %v3300
  %v3302 = vpop.f32.mrf.mxu0
  %3303 = vmatprep.mubr.f32.mxu0 0.0
  %3304 = vmatmul.mubr.f32.gmra.mxu0 %v1234
  %v3305 = vpop.f32.mrf.mxu0
  %v3306 = vadd.f32 0.0, %v3305
  %v3307 = vpop.f32.mrf.mxu0
  %3308 = vmatprep.mubr.f32.mxu0 0.0
  %3309 = vmatmul.mubr.f32.gmra.mxu0 %v1237
  %v3310 = vpop.f32.mrf.mxu0
  %v3311 = vadd.f32 0.0, %v3310
  %v3312 = vpop.f32.mrf.mxu0
  %3313 = vmatprep.mubr.f32.mxu0 0.0
  %3314 = vmatmul.mubr.f32.gmra.mxu0 %v1240
  %v3315 = vpop.f32.mrf.mxu0
  %v3316 = vadd.f32 0.0, %v3315
  %v3317 = vpop.f32.mrf.mxu0
  %3318 = vmatprep.mubr.f32.mxu0 0.0
  %3319 = vmatmul.mubr.f32.gmra.mxu0 %v1243
  %v3320 = vpop.f32.mrf.mxu0
  %v3321 = vadd.f32 0.0, %v3320
  %v3322 = vpop.f32.mrf.mxu0
  %3323 = vmatprep.mubr.f32.mxu0 0.0
  %3324 = vmatmul.mubr.f32.gmra.mxu0 %v1246
  %v3325 = vpop.f32.mrf.mxu0
  %v3326 = vadd.f32 0.0, %v3325
  %v3327 = vpop.f32.mrf.mxu0
  %3328 = vmatprep.mubr.f32.mxu0 0.0
  %3329 = vmatmul.mubr.f32.gmra.mxu0 %v1249
  %v3330 = vpop.f32.mrf.mxu0
  %v3331 = vadd.f32 0.0, %v3330
  %v3332 = vpop.f32.mrf.mxu0
  %3333 = vmatprep.mubr.f32.mxu0 0.0
  %3334 = vmatmul.mubr.f32.gmra.mxu0 %v1252
  %v3335 = vpop.f32.mrf.mxu0
  %v3336 = vadd.f32 0.0, %v3335
  %v3337 = vpop.f32.mrf.mxu0
  %3338 = vmatprep.mubr.f32.mxu0 0.0
  %3339 = vmatmul.mubr.f32.gmra.mxu0 %v1255
  %v3340 = vpop.f32.mrf.mxu0
  %v3341 = vadd.f32 0.0, %v3340
  %v3342 = vpop.f32.mrf.mxu0
  %3343 = vmatprep.mubr.f32.mxu0 0.0
  %3344 = vmatmul.mubr.f32.gmra.mxu0 %v1258
  %v3345 = vpop.f32.mrf.mxu0
  %v3346 = vadd.f32 0.0, %v3345
  %v3347 = vpop.f32.mrf.mxu0
  %3348 = vmatprep.mubr.f32.mxu0 0.0
  %3349 = vmatmul.mubr.f32.gmra.mxu0 %v1261
  %v3350 = vpop.f32.mrf.mxu0
  %v3351 = vadd.f32 0.0, %v3350
  %v3352 = vpop.f32.mrf.mxu0
  %3353 = vmatprep.mubr.f32.mxu0 0.0
  %3354 = vmatmul.mubr.f32.gmra.mxu0 %v1264
  %v3355 = vpop.f32.mrf.mxu0
  %v3356 = vadd.f32 0.0, %v3355
  %v3357 = vpop.f32.mrf.mxu0
  %3358 = vmatprep.mubr.f32.mxu0 0.0
  %3359 = vmatmul.mubr.f32.gmra.mxu0 %v1267
  %v3360 = vpop.f32.mrf.mxu0
  %v3361 = vadd.f32 0.0, %v3360
  %v3362 = vpop.f32.mrf.mxu0
  %3363 = vmatprep.mubr.f32.mxu0 0.0
  %3364 = vmatmul.mubr.f32.gmra.mxu0 %v1270
  %v3365 = vpop.f32.mrf.mxu0
  %v3366 = vadd.f32 0.0, %v3365
  %v3367 = vpop.f32.mrf.mxu0
  %3368 = vmatprep.mubr.f32.mxu0 0.0
  %3369 = vmatmul.mubr.f32.gmra.mxu0 %v1273
  %v3370 = vpop.f32.mrf.mxu0
  %v3371 = vadd.f32 0.0, %v3370
  %v3372 = vpop.f32.mrf.mxu0
  %3373 = vmatprep.mubr.f32.mxu0 0.0
  %3374 = vmatmul.mubr.f32.gmra.mxu0 %v1276
  %v3375 = vpop.f32.mrf.mxu0
  %v3376 = vadd.f32 0.0, %v3375
  %v3377 = vpop.f32.mrf.mxu0
  %3378 = vmatprep.mubr.f32.mxu0 0.0
  %3379 = vmatmul.mubr.f32.gmra.mxu0 %v1279
  %v3380 = vpop.f32.mrf.mxu0
  %v3381 = vadd.f32 0.0, %v3380
  %v3382 = vpop.f32.mrf.mxu0
  %3383 = vmatprep.mubr.f32.mxu0 0.0
  %3384 = vmatmul.mubr.f32.gmra.mxu0 %v1282
  %v3385 = vpop.f32.mrf.mxu0
  %v3386 = vadd.f32 0.0, %v3385
  %v3387 = vpop.f32.mrf.mxu0
  %3388 = vmatprep.mubr.f32.mxu0 0.0
  %3389 = vmatmul.mubr.f32.gmra.mxu0 %v1285
  %v3390 = vpop.f32.mrf.mxu0
  %v3391 = vadd.f32 0.0, %v3390
  %v3392 = vpop.f32.mrf.mxu0
  %3393 = vmatprep.mubr.f32.mxu0 0.0
  %3394 = vmatmul.mubr.f32.gmra.mxu0 %v1288
  %v3395 = vpop.f32.mrf.mxu0
  %v3396 = vadd.f32 0.0, %v3395
  %v3397 = vpop.f32.mrf.mxu0
  %3398 = vmatprep.mubr.f32.mxu0 0.0
  %3399 = vmatmul.mubr.f32.gmra.mxu0 %v1291
  %v3400 = vpop.f32.mrf.mxu0
  %v3401 = vadd.f32 0.0, %v3400
  %v3402 = vpop.f32.mrf.mxu0
  %3403 = vmatprep.mubr.f32.mxu0 0.0
  %3404 = vmatmul.mubr.f32.gmra.mxu0 %v1294
  %v3405 = vpop.f32.mrf.mxu0
  %v3406 = vadd.f32 0.0, %v3405
  %v3407 = vpop.f32.mrf.mxu0
  %3408 = vmatprep.mubr.f32.mxu0 0.0
  %3409 = vmatmul.mubr.f32.gmra.mxu0 %v1297
  %v3410 = vpop.f32.mrf.mxu0
  %v3411 = vadd.f32 0.0, %v3410
  %v3412 = vpop.f32.mrf.mxu0
  %3413 = vmatprep.mubr.f32.mxu0 0.0
  %3414 = vmatmul.mubr.f32.gmra.mxu0 %v1300
  %v3415 = vpop.f32.mrf.mxu0
  %v3416 = vadd.f32 0.0, %v3415
  %v3417 = vpop.f32.mrf.mxu0
  %3418 = vmatprep.mubr.f32.mxu0 0.0
  %3419 = vmatmul.mubr.f32.gmra.mxu0 %v1303
  %v3420 = vpop.f32.mrf.mxu0
  %v3421 = vadd.f32 0.0, %v3420
  %v3422 = vpop.f32.mrf.mxu0
  %3423 = vmatprep.mubr.f32.mxu0 0.0
  %3424 = vmatmul.mubr.f32.gmra.mxu0 %v1306
  %v3425 = vpop.f32.mrf.mxu0
  %v3426 = vadd.f32 0.0, %v3425
  %v3427 = vpop.f32.mrf.mxu0
  %3428 = vmatprep.mubr.f32.mxu0 0.0
  %3429 = vmatmul.mubr.f32.gmra.mxu0 %v1309
  %v3430 = vpop.f32.mrf.mxu0
  %v3431 = vadd.f32 0.0, %v3430
  %v3432 = vpop.f32.mrf.mxu0
  %3433 = vmatprep.mubr.f32.mxu0 0.0
  %3434 = vmatmul.mubr.f32.gmra.mxu0 %v1312
  %v3435 = vpop.f32.mrf.mxu0
  %v3436 = vadd.f32 0.0, %v3435
  %v3437 = vpop.f32.mrf.mxu0
  %3438 = vmatprep.mubr.f32.mxu0 0.0
  %3439 = vmatmul.mubr.f32.gmra.mxu0 %v1315
  %v3440 = vpop.f32.mrf.mxu0
  %v3441 = vadd.f32 0.0, %v3440
  %v3442 = vpop.f32.mrf.mxu0
  %3443 = vmatprep.mubr.f32.mxu0 0.0
  %3444 = vmatmul.mubr.f32.gmra.mxu0 %v1318
  %v3445 = vpop.f32.mrf.mxu0
  %v3446 = vadd.f32 0.0, %v3445
  %v3447 = vpop.f32.mrf.mxu0
  %3448 = vmatprep.mubr.f32.mxu0 0.0
  %3449 = vmatmul.mubr.f32.gmra.mxu0 %v1321
  %v3450 = vpop.f32.mrf.mxu0
  %v3451 = vadd.f32 0.0, %v3450
  %v3452 = vpop.f32.mrf.mxu0
  %3453 = vmatprep.mubr.f32.mxu0 0.0
  %3454 = vmatmul.mubr.f32.gmra.mxu0 %v1324
  %v3455 = vpop.f32.mrf.mxu0
  %v3456 = vadd.f32 0.0, %v3455
  %v3457 = vpop.f32.mrf.mxu0
  %3458 = vmatprep.mubr.f32.mxu0 0.0
  %3459 = vmatmul.mubr.f32.gmra.mxu0 %v1327
  %v3460 = vpop.f32.mrf.mxu0
  %v3461 = vadd.f32 0.0, %v3460
  %v3462 = vpop.f32.mrf.mxu0
  %3463 = vmatprep.mubr.f32.mxu0 0.0
  %3464 = vmatmul.mubr.f32.gmra.mxu0 %v1330
  %v3465 = vpop.f32.mrf.mxu0
  %v3466 = vadd.f32 0.0, %v3465
  %v3467 = vpop.f32.mrf.mxu0
  %3468 = vmatprep.mubr.f32.mxu0 0.0
  %3469 = vmatmul.mubr.f32.gmra.mxu0 %v1333
  %v3470 = vpop.f32.mrf.mxu0
  %v3471 = vadd.f32 0.0, %v3470
  %v3472 = vpop.f32.mrf.mxu0
  %3473 = vmatprep.mubr.f32.mxu0 0.0
  %3474 = vmatmul.mubr.f32.gmra.mxu0 %v1336
  %v3475 = vpop.f32.mrf.mxu0
  %v3476 = vadd.f32 0.0, %v3475
  %v3477 = vpop.f32.mrf.mxu0
  %3478 = vmatprep.mubr.f32.mxu0 0.0
  %3479 = vmatmul.mubr.f32.gmra.mxu0 %v1339
  %v3480 = vpop.f32.mrf.mxu0
  %v3481 = vadd.f32 0.0, %v3480
  %v3482 = vpop.f32.mrf.mxu0
  %3483 = vmatprep.mubr.f32.mxu0 0.0
  %3484 = vmatmul.mubr.f32.gmra.mxu0 %v1342
  %v3485 = vpop.f32.mrf.mxu0
  %v3486 = vadd.f32 0.0, %v3485
  %v3487 = vpop.f32.mrf.mxu0
  %3488 = vmatprep.mubr.f32.mxu0 0.0
  %3489 = vmatmul.mubr.f32.gmra.mxu0 %v1345
  %v3490 = vpop.f32.mrf.mxu0
  %v3491 = vadd.f32 0.0, %v3490
  %v3492 = vpop.f32.mrf.mxu0
  %3493 = vmatprep.mubr.f32.mxu0 0.0
  %3494 = vmatmul.mubr.f32.gmra.mxu0 %v1348
  %v3495 = vpop.f32.mrf.mxu0
  %v3496 = vadd.f32 0.0, %v3495
  %v3497 = vpop.f32.mrf.mxu0
  %3498 = vmatprep.mubr.f32.mxu0 0.0
  %3499 = vmatmul.mubr.f32.gmra.mxu0 %v1351
  %v3500 = vpop.f32.mrf.mxu0
  %v3501 = vadd.f32 0.0, %v3500
  %v3502 = vpop.f32.mrf.mxu0
  %3503 = vmatprep.mubr.f32.mxu0 0.0
  %3504 = vmatmul.mubr.f32.gmra.mxu0 %v1354
  %v3505 = vpop.f32.mrf.mxu0
  %v3506 = vadd.f32 0.0, %v3505
  %v3507 = vpop.f32.mrf.mxu0
  %3508 = vmatprep.mubr.f32.mxu0 0.0
  %3509 = vmatmul.mubr.f32.gmra.mxu0 %v1357
  %v3510 = vpop.f32.mrf.mxu0
  %v3511 = vadd.f32 0.0, %v3510
  %v3512 = vpop.f32.mrf.mxu0
  %3513 = vmatprep.mubr.f32.mxu0 0.0
  %3514 = vmatmul.mubr.f32.gmra.mxu0 %v1360
  %v3515 = vpop.f32.mrf.mxu0
  %v3516 = vadd.f32 0.0, %v3515
  %v3517 = vpop.f32.mrf.mxu0
  %3518 = vmatprep.mubr.f32.mxu0 0.0
  %3519 = vmatmul.mubr.f32.gmra.mxu0 %v1363
  %v3520 = vpop.f32.mrf.mxu0
  %v3521 = vadd.f32 0.0, %v3520
  %v3522 = vpop.f32.mrf.mxu0
  %3523 = vmatprep.mubr.f32.mxu0 0.0
  %3524 = vmatmul.mubr.f32.gmra.mxu0 %v1366
  %v3525 = vpop.f32.mrf.mxu0
  %v3526 = vadd.f32 0.0, %v3525
  %v3527 = vpop.f32.mrf.mxu0
  %3528 = vmatprep.mubr.f32.mxu0 0.0
  %3529 = vmatmul.mubr.f32.gmra.mxu0 %v1369
  %v3530 = vpop.f32.mrf.mxu0
  %v3531 = vadd.f32 0.0, %v3530
  %v3532 = vpop.f32.mrf.mxu0
  %3533 = vmatprep.mubr.f32.mxu0 0.0
  %3534 = vmatmul.mubr.f32.gmra.mxu0 %v1372
  %v3535 = vpop.f32.mrf.mxu0
  %v3536 = vadd.f32 0.0, %v3535
  %v3537 = vpop.f32.mrf.mxu0
  %3538 = vmatprep.mubr.f32.mxu0 0.0
  %3539 = vmatmul.mubr.f32.gmra.mxu0 %v1375
  %v3540 = vpop.f32.mrf.mxu0
  %v3541 = vadd.f32 0.0, %v3540
  %v3542 = vpop.f32.mrf.mxu0
  %3543 = vmatprep.mubr.f32.mxu0 0.0
  %3544 = vmatmul.mubr.f32.gmra.mxu0 %v1378
  %v3545 = vpop.f32.mrf.mxu0
  %v3546 = vadd.f32 0.0, %v3545
  %v3547 = vpop.f32.mrf.mxu0
  %3548 = vmatprep.mubr.f32.mxu0 0.0
  %3549 = vmatmul.mubr.f32.gmra.mxu0 %v1381
  %v3550 = vpop.f32.mrf.mxu0
  %v3551 = vadd.f32 0.0, %v3550
  %v3552 = vpop.f32.mrf.mxu0
  %3553 = vmatprep.mubr.f32.mxu0 0.0
  %3554 = vmatmul.mubr.f32.gmra.mxu0 %v1384
  %v3555 = vpop.f32.mrf.mxu0
  %v3556 = vadd.f32 0.0, %v3555
  %v3557 = vpop.f32.mrf.mxu0
  %3558 = vmatprep.mubr.f32.mxu0 0.0
  %3559 = vmatmul.mubr.f32.gmra.mxu0 %v1387
  %v3560 = vpop.f32.mrf.mxu0
  %v3561 = vadd.f32 0.0, %v3560
  %v3562 = vpop.f32.mrf.mxu0
  %3563 = vmatprep.mubr.f32.mxu0 0.0
  %3564 = vmatmul.mubr.f32.gmra.mxu0 %v1390
  %v3565 = vpop.f32.mrf.mxu0
  %v3566 = vadd.f32 0.0, %v3565
  %v3567 = vpop.f32.mrf.mxu0
  %3568 = vmatprep.mubr.f32.mxu0 0.0
  %3569 = vmatmul.mubr.f32.gmra.mxu0 %v1393
  %v3570 = vpop.f32.mrf.mxu0
  %v3571 = vadd.f32 0.0, %v3570
  %v3572 = vpop.f32.mrf.mxu0
  %3573 = vmatprep.mubr.f32.mxu0 0.0
  %3574 = vmatmul.mubr.f32.gmra.mxu0 %v1396
  %v3575 = vpop.f32.mrf.mxu0
  %v3576 = vadd.f32 0.0, %v3575
  %v3577 = vpop.f32.mrf.mxu0
  %3578 = vmatprep.mubr.f32.mxu0 0.0
  %3579 = vmatmul.mubr.f32.gmra.mxu0 %v1399
  %v3580 = vpop.f32.mrf.mxu0
  %v3581 = vadd.f32 0.0, %v3580
  %v3582 = vpop.f32.mrf.mxu0
  %3583 = vmatprep.mubr.f32.mxu0 0.0
  %3584 = vmatmul.mubr.f32.gmra.mxu0 %v1402
  %v3585 = vpop.f32.mrf.mxu0
  %v3586 = vadd.f32 0.0, %v3585
  %v3587 = vpop.f32.mrf.mxu0
  %3588 = vmatprep.mubr.f32.mxu0 0.0
  %3589 = vmatmul.mubr.f32.gmra.mxu0 %v1405
  %v3590 = vpop.f32.mrf.mxu0
  %v3591 = vadd.f32 0.0, %v3590
  %v3592 = vpop.f32.mrf.mxu0
  %3593 = vmatprep.mubr.f32.mxu0 0.0
  %3594 = vmatmul.mubr.f32.gmra.mxu0 %v1408
  %v3595 = vpop.f32.mrf.mxu0
  %v3596 = vadd.f32 0.0, %v3595
  %v3597 = vpop.f32.mrf.mxu0
  %3598 = vmatprep.mubr.f32.mxu0 0.0
  %3599 = vmatmul.mubr.f32.gmra.mxu0 %v1411
  %v3600 = vpop.f32.mrf.mxu0
  %v3601 = vadd.f32 0.0, %v3600
  %v3602 = vpop.f32.mrf.mxu0
  %3603 = vmatprep.mubr.f32.mxu0 0.0
  %3604 = vmatmul.mubr.f32.gmra.mxu0 %v1414
  %v3605 = vpop.f32.mrf.mxu0
  %v3606 = vadd.f32 0.0, %v3605
  %v3607 = vpop.f32.mrf.mxu0
  %3608 = vmatprep.mubr.f32.mxu0 0.0
  %3609 = vmatmul.mubr.f32.gmra.mxu0 %v1417
  %v3610 = vpop.f32.mrf.mxu0
  %v3611 = vadd.f32 0.0, %v3610
  %v3612 = vpop.f32.mrf.mxu0
  %3613 = vmatprep.mubr.f32.mxu0 0.0
  %3614 = vmatmul.mubr.f32.gmra.mxu0 %v1420
  %v3615 = vpop.f32.mrf.mxu0
  %v3616 = vadd.f32 0.0, %v3615
  %v3617 = vpop.f32.mrf.mxu0
  %3618 = vmatprep.mubr.f32.mxu0 0.0
  %3619 = vmatmul.mubr.f32.gmra.mxu0 %v1423
  %v3620 = vpop.f32.mrf.mxu0
  %v3621 = vadd.f32 0.0, %v3620
  %v3622 = vpop.f32.mrf.mxu0
  %3623 = vmatprep.mubr.f32.mxu0 0.0
  %3624 = vmatmul.mubr.f32.gmra.mxu0 %v1426
  %v3625 = vpop.f32.mrf.mxu0
  %v3626 = vadd.f32 0.0, %v3625
  %v3627 = vpop.f32.mrf.mxu0
  %3628 = vmatprep.mubr.f32.mxu0 0.0
  %3629 = vmatmul.mubr.f32.gmra.mxu0 %v1429
  %v3630 = vpop.f32.mrf.mxu0
  %v3631 = vadd.f32 0.0, %v3630
  %v3632 = vpop.f32.mrf.mxu0
  %3633 = vmatprep.mubr.f32.mxu0 0.0
  %3634 = vmatmul.mubr.f32.gmra.mxu0 %v1432
  %v3635 = vpop.f32.mrf.mxu0
  %v3636 = vadd.f32 0.0, %v3635
  %v3637 = vpop.f32.mrf.mxu0
  %3638 = vmatprep.mubr.f32.mxu0 0.0
  %3639 = vmatmul.mubr.f32.gmra.mxu0 %v1435
  %v3640 = vpop.f32.mrf.mxu0
  %v3641 = vadd.f32 0.0, %v3640
  %v3642 = vpop.f32.mrf.mxu0
  %3643 = vmatprep.mubr.f32.mxu0 0.0
  %3644 = vmatmul.mubr.f32.gmra.mxu0 %v1438
  %v3645 = vpop.f32.mrf.mxu0
  %v3646 = vadd.f32 0.0, %v3645
  %v3647 = vpop.f32.mrf.mxu0
  %3648 = vmatprep.mubr.f32.mxu0 0.0
  %3649 = vmatmul.mubr.f32.gmra.mxu0 %v1441
  %v3650 = vpop.f32.mrf.mxu0
  %v3651 = vadd.f32 0.0, %v3650
  %v3652 = vpop.f32.mrf.mxu0
  %3653 = vmatprep.mubr.f32.mxu0 0.0
  %3654 = vmatmul.mubr.f32.gmra.mxu0 %v1444
  %v3655 = vpop.f32.mrf.mxu0
  %v3656 = vadd.f32 0.0, %v3655
  %v3657 = vpop.f32.mrf.mxu0
  %3658 = vmatprep.mubr.f32.mxu0 0.0
  %3659 = vmatmul.mubr.f32.gmra.mxu0 %v1447
  %v3660 = vpop.f32.mrf.mxu0
  %v3661 = vadd.f32 0.0, %v3660
  %v3662 = vpop.f32.mrf.mxu0
  %3663 = vmatprep.mubr.f32.mxu0 0.0
  %3664 = vmatmul.mubr.f32.gmra.mxu0 %v1450
  %v3665 = vpop.f32.mrf.mxu0
  %v3666 = vadd.f32 0.0, %v3665
  %v3667 = vpop.f32.mrf.mxu0
  %3668 = vmatprep.mubr.f32.mxu0 0.0
  %3669 = vmatmul.mubr.f32.gmra.mxu0 %v1453
  %v3670 = vpop.f32.mrf.mxu0
  %v3671 = vadd.f32 0.0, %v3670
  %v3672 = vpop.f32.mrf.mxu0
  %3673 = vmatprep.mubr.f32.mxu0 0.0
  %3674 = vmatmul.mubr.f32.gmra.mxu0 %v1456
  %v3675 = vpop.f32.mrf.mxu0
  %v3676 = vadd.f32 0.0, %v3675
  %v3677 = vpop.f32.mrf.mxu0
  %3678 = vmatprep.mubr.f32.mxu0 0.0
  %3679 = vmatmul.mubr.f32.gmra.mxu0 %v1459
  %v3680 = vpop.f32.mrf.mxu0
  %v3681 = vadd.f32 0.0, %v3680
  %v3682 = vpop.f32.mrf.mxu0
  %3683 = vmatprep.mubr.f32.mxu0 0.0
  %3684 = vmatmul.mubr.f32.gmra.mxu0 %v1462
  %v3685 = vpop.f32.mrf.mxu0
  %v3686 = vadd.f32 0.0, %v3685
  %v3687 = vpop.f32.mrf.mxu0
  %3688 = vmatprep.mubr.f32.mxu0 0.0
  %3689 = vmatmul.mubr.f32.gmra.mxu0 %v1465
  %v3690 = vpop.f32.mrf.mxu0
  %v3691 = vadd.f32 0.0, %v3690
  %v3692 = vpop.f32.mrf.mxu0
  %3693 = vmatprep.mubr.f32.mxu0 0.0
  %3694 = vmatmul.mubr.f32.gmra.mxu0 %v1468
  %v3695 = vpop.f32.mrf.mxu0
  %v3696 = vadd.f32 0.0, %v3695
  %v3697 = vpop.f32.mrf.mxu0
  %3698 = vmatprep.mubr.f32.mxu0 0.0
  %3699 = vmatmul.mubr.f32.gmra.mxu0 %v1471
  %v3700 = vpop.f32.mrf.mxu0
  %v3701 = vadd.f32 0.0, %v3700
  %v3702 = vpop.f32.mrf.mxu0
  %3703 = vmatprep.mubr.f32.mxu0 0.0
  %3704 = vmatmul.mubr.f32.gmra.mxu0 %v1474
  %v3705 = vpop.f32.mrf.mxu0
  %v3706 = vadd.f32 0.0, %v3705
  %v3707 = vpop.f32.mrf.mxu0
  %3708 = vmatprep.mubr.f32.mxu0 0.0
  %3709 = vmatmul.mubr.f32.gmra.mxu0 %v1477
  %v3710 = vpop.f32.mrf.mxu0
  %v3711 = vadd.f32 0.0, %v3710
  %v3712 = vpop.f32.mrf.mxu0
  %3713 = vmatprep.mubr.f32.mxu0 0.0
  %3714 = vmatmul.mubr.f32.gmra.mxu0 %v1480
  %v3715 = vpop.f32.mrf.mxu0
  %v3716 = vadd.f32 0.0, %v3715
  %v3717 = vpop.f32.mrf.mxu0
  %3718 = vmatprep.mubr.f32.mxu0 0.0
  %3719 = vmatmul.mubr.f32.gmra.mxu0 %v1483
  %v3720 = vpop.f32.mrf.mxu0
  %v3721 = vadd.f32 0.0, %v3720
  %v3722 = vpop.f32.mrf.mxu0
  %3723 = vmatprep.mubr.f32.mxu0 0.0
  %3724 = vmatmul.mubr.f32.gmra.mxu0 %v1486
  %v3725 = vpop.f32.mrf.mxu0
  %v3726 = vadd.f32 0.0, %v3725
  %v3727 = vpop.f32.mrf.mxu0
  %3728 = vmatprep.mubr.f32.mxu0 0.0
  %3729 = vmatmul.mubr.f32.gmra.mxu0 %v1489
  %v3730 = vpop.f32.mrf.mxu0
  %v3731 = vadd.f32 0.0, %v3730
  %v3732 = vpop.f32.mrf.mxu0
  %3733 = vmatprep.mubr.f32.mxu0 0.0
  %3734 = vmatmul.mubr.f32.gmra.mxu0 %v1492
  %v3735 = vpop.f32.mrf.mxu0
  %v3736 = vadd.f32 0.0, %v3735
  %v3737 = vpop.f32.mrf.mxu0
  %3738 = vmatprep.mubr.f32.mxu0 0.0
  %3739 = vmatmul.mubr.f32.gmra.mxu0 %v1495
  %v3740 = vpop.f32.mrf.mxu0
  %v3741 = vadd.f32 0.0, %v3740
  %v3742 = vpop.f32.mrf.mxu0
  %3743 = vmatprep.mubr.f32.mxu0 0.0
  %3744 = vmatmul.mubr.f32.gmra.mxu0 %v1498
  %v3745 = vpop.f32.mrf.mxu0
  %v3746 = vadd.f32 0.0, %v3745
  %v3747 = vpop.f32.mrf.mxu0
  %3748 = vmatprep.mubr.f32.mxu0 0.0
  %3749 = vmatmul.mubr.f32.gmra.mxu0 %v1501
  %v3750 = vpop.f32.mrf.mxu0
  %v3751 = vadd.f32 0.0, %v3750
  %v3752 = vpop.f32.mrf.mxu0
  %3753 = vmatprep.mubr.f32.mxu0 0.0
  %3754 = vmatmul.mubr.f32.gmra.mxu0 %v1504
  %v3755 = vpop.f32.mrf.mxu0
  %v3756 = vadd.f32 0.0, %v3755
  %v3757 = vpop.f32.mrf.mxu0
  %3758 = vmatprep.mubr.f32.mxu0 0.0
  %3759 = vmatmul.mubr.f32.gmra.mxu0 %v1507
  %v3760 = vpop.f32.mrf.mxu0
  %v3761 = vadd.f32 0.0, %v3760
  %v3762 = vpop.f32.mrf.mxu0
  %3763 = vmatprep.mubr.f32.mxu0 0.0
  %3764 = vmatmul.mubr.f32.gmra.mxu0 %v1510
  %v3765 = vpop.f32.mrf.mxu0
  %v3766 = vadd.f32 0.0, %v3765
  %v3767 = vpop.f32.mrf.mxu0
  %3768 = vmatprep.mubr.f32.mxu0 0.0
  %3769 = vmatmul.mubr.f32.gmra.mxu0 %v1513
  %v3770 = vpop.f32.mrf.mxu0
  %v3771 = vadd.f32 0.0, %v3770
  %v3772 = vpop.f32.mrf.mxu0
  %3773 = vmatprep.mubr.f32.mxu0 0.0
  %3774 = vmatmul.mubr.f32.gmra.mxu0 %v1516
  %v3775 = vpop.f32.mrf.mxu0
  %v3776 = vadd.f32 0.0, %v3775
  %v3777 = vpop.f32.mrf.mxu0
  %3778 = vmatprep.mubr.f32.mxu0 0.0
  %3779 = vmatmul.mubr.f32.gmra.mxu0 %v1519
  %v3780 = vpop.f32.mrf.mxu0
  %v3781 = vadd.f32 0.0, %v3780
  %v3782 = vpop.f32.mrf.mxu0
  %3783 = vmatprep.mubr.f32.mxu0 0.0
  %3784 = vmatmul.mubr.f32.gmra.mxu0 %v1522
  %v3785 = vpop.f32.mrf.mxu0
  %v3786 = vadd.f32 0.0, %v3785
  %v3787 = vpop.f32.mrf.mxu0
  %3788 = vmatprep.mubr.f32.mxu0 0.0
  %3789 = vmatmul.mubr.f32.gmra.mxu0 %v1525
  %v3790 = vpop.f32.mrf.mxu0
  %v3791 = vadd.f32 0.0, %v3790
  %v3792 = vpop.f32.mrf.mxu0
  %3793 = vmatprep.mubr.f32.mxu0 0.0
  %3794 = vmatmul.mubr.f32.gmra.mxu0 %v1528
  %v3795 = vpop.f32.mrf.mxu0
  %v3796 = vadd.f32 0.0, %v3795
  %v3797 = vpop.f32.mrf.mxu0
  %3798 = vmatprep.mubr.f32.mxu0 0.0
  %3799 = vmatmul.mubr.f32.gmra.mxu0 %v1531
  %v3800 = vpop.f32.mrf.mxu0
  %v3801 = vadd.f32 0.0, %v3800
  %v3802 = vpop.f32.mrf.mxu0
  %3803 = vmatprep.mubr.f32.mxu0 0.0
  %3804 = vmatmul.mubr.f32.gmra.mxu0 %v1534
  %v3805 = vpop.f32.mrf.mxu0
  %v3806 = vadd.f32 0.0, %v3805
  %v3807 = vpop.f32.mrf.mxu0
  %3808 = vmatprep.mubr.f32.mxu0 0.0
  %3809 = vmatmul.mubr.f32.gmra.mxu0 %v1537
  %v3810 = vpop.f32.mrf.mxu0
  %v3811 = vadd.f32 0.0, %v3810
  %v3812 = vpop.f32.mrf.mxu0
  %3813 = vmatprep.mubr.f32.mxu0 0.0
  %3814 = vmatmul.mubr.f32.gmra.mxu0 %v1540
  %v3815 = vpop.f32.mrf.mxu0
  %v3816 = vadd.f32 0.0, %v3815
  %v3817 = vpop.f32.mrf.mxu0
  %3818 = vmatprep.mubr.f32.mxu0 0.0
  %3819 = vmatmul.mubr.f32.gmra.mxu0 %v1543
  %v3820 = vpop.f32.mrf.mxu0
  %v3821 = vadd.f32 0.0, %v3820
  %v3822 = vpop.f32.mrf.mxu0
  %3823 = vmatprep.mubr.f32.mxu0 0.0
  %3824 = vmatmul.mubr.f32.gmra.mxu0 %v1546
  %v3825 = vpop.f32.mrf.mxu0
  %v3826 = vadd.f32 0.0, %v3825
  %v3827 = vpop.f32.mrf.mxu0
  %3828 = vmatprep.mubr.f32.mxu0 0.0
  %3829 = vmatmul.mubr.f32.gmra.mxu0 %v1549
  %v3830 = vpop.f32.mrf.mxu0
  %v3831 = vadd.f32 0.0, %v3830
  %v3832 = vpop.f32.mrf.mxu0
  %3833 = vmatprep.mubr.f32.mxu0 0.0
  %3834 = vmatmul.mubr.f32.gmra.mxu0 %v1552
  %v3835 = vpop.f32.mrf.mxu0
  %v3836 = vadd.f32 0.0, %v3835
  %v3837 = vpop.f32.mrf.mxu0
  %3838 = vmatprep.mubr.f32.mxu0 0.0
  %3839 = vmatmul.mubr.f32.gmra.mxu0 %v1555
  %v3840 = vpop.f32.mrf.mxu0
  %v3841 = vadd.f32 0.0, %v3840
  %v3842 = vpop.f32.mrf.mxu0
  %3843 = vmatprep.mubr.f32.mxu0 0.0
  %3844 = vmatmul.mubr.f32.gmra.mxu0 %v1558
  %v3845 = vpop.f32.mrf.mxu0
  %v3846 = vadd.f32 0.0, %v3845
  %v3847 = vpop.f32.mrf.mxu0
  %3848 = vmatprep.mubr.f32.mxu0 0.0
  %3849 = vmatmul.mubr.f32.gmra.mxu0 %v1561
  %v3850 = vpop.f32.mrf.mxu0
  %v3851 = vadd.f32 0.0, %v3850
  %v3852 = vpop.f32.mrf.mxu0
  %3853 = vmatprep.mubr.f32.mxu0 0.0
  %3854 = vmatmul.mubr.f32.gmra.mxu0 %v1564
  %v3855 = vpop.f32.mrf.mxu0
  %v3856 = vadd.f32 0.0, %v3855
  %v3857 = vpop.f32.mrf.mxu0
  %3858 = vmatprep.mubr.f32.mxu0 0.0
  %3859 = vmatmul.mubr.f32.gmra.mxu0 %v1567
  %v3860 = vpop.f32.mrf.mxu0
  %v3861 = vadd.f32 0.0, %v3860
  %v3862 = vpop.f32.mrf.mxu0
  %3863 = vmatprep.mubr.f32.mxu0 0.0
  %3864 = vmatmul.mubr.f32.gmra.mxu0 %v1570
  %v3865 = vpop.f32.mrf.mxu0
  %v3866 = vadd.f32 0.0, %v3865
  %v3867 = vpop.f32.mrf.mxu0
  %3868 = vmatprep.mubr.f32.mxu0 0.0
  %3869 = vmatmul.mubr.f32.gmra.mxu0 %v1573
  %v3870 = vpop.f32.mrf.mxu0
  %v3871 = vadd.f32 0.0, %v3870
  %v3872 = vpop.f32.mrf.mxu0
  %3873 = vmatprep.mubr.f32.mxu0 0.0
  %3874 = vmatmul.mubr.f32.gmra.mxu0 %v1576
  %v3875 = vpop.f32.mrf.mxu0
  %v3876 = vadd.f32 0.0, %v3875
  %v3877 = vpop.f32.mrf.mxu0
  %3878 = vmatprep.mubr.f32.mxu0 0.0
  %3879 = vmatmul.mubr.f32.gmra.mxu0 %v1579
  %v3880 = vpop.f32.mrf.mxu0
  %v3881 = vadd.f32 0.0, %v3880
  %v3882 = vpop.f32.mrf.mxu0
  %3883 = vmatprep.mubr.f32.mxu0 0.0
  %3884 = vmatmul.mubr.f32.gmra.mxu0 %v1582
  %v3885 = vpop.f32.mrf.mxu0
  %v3886 = vadd.f32 0.0, %v3885
  %v3887 = vpop.f32.mrf.mxu0
  %3888 = vmatprep.mubr.f32.mxu0 0.0
  %3889 = vmatmul.mubr.f32.gmra.mxu0 %v1585
  %v3890 = vpop.f32.mrf.mxu0
  %v3891 = vadd.f32 0.0, %v3890
  %v3892 = vpop.f32.mrf.mxu0
  %3893 = vmatprep.mubr.f32.mxu0 0.0
  %3894 = vmatmul.mubr.f32.gmra.mxu0 %v1588
  %v3895 = vpop.f32.mrf.mxu0
  %v3896 = vadd.f32 0.0, %v3895
  %v3897 = vpop.f32.mrf.mxu0
  %3898 = vmatprep.mubr.f32.mxu0 0.0
  %3899 = vmatmul.mubr.f32.gmra.mxu0 %v1591
  %v3900 = vpop.f32.mrf.mxu0
  %v3901 = vadd.f32 0.0, %v3900
  %v3902 = vpop.f32.mrf.mxu0
  %3903 = vmatprep.mubr.f32.mxu0 0.0
  %3904 = vmatmul.mubr.f32.gmra.mxu0 %v1594
  %v3905 = vpop.f32.mrf.mxu0
  %v3906 = vadd.f32 0.0, %v3905
  %v3907 = vpop.f32.mrf.mxu0
  %3908 = vmatprep.mubr.f32.mxu0 0.0
  %3909 = vmatmul.mubr.f32.gmra.mxu0 %v1597
  %v3910 = vpop.f32.mrf.mxu0
  %v3911 = vadd.f32 0.0, %v3910
  %v3912 = vpop.f32.mrf.mxu0
  %3913 = vmatprep.mubr.f32.mxu0 0.0
  %3914 = vmatmul.mubr.f32.gmra.mxu0 %v1600
  %v3915 = vpop.f32.mrf.mxu0
  %v3916 = vadd.f32 0.0, %v3915
  %v3917 = vpop.f32.mrf.mxu0
  %3918 = vmatprep.mubr.f32.mxu0 0.0
  %3919 = vmatmul.mubr.f32.gmra.mxu0 %v1603
  %v3920 = vpop.f32.mrf.mxu0
  %v3921 = vadd.f32 0.0, %v3920
  %v3922 = vpop.f32.mrf.mxu0
  %3923 = vmatprep.mubr.f32.mxu0 0.0
  %3924 = vmatmul.mubr.f32.gmra.mxu0 %v1606
  %v3925 = vpop.f32.mrf.mxu0
  %v3926 = vadd.f32 0.0, %v3925
  %v3927 = vpop.f32.mrf.mxu0
  %3928 = vmatprep.mubr.f32.mxu0 0.0
  %3929 = vmatmul.mubr.f32.gmra.mxu0 %v1609
  %v3930 = vpop.f32.mrf.mxu0
  %v3931 = vadd.f32 0.0, %v3930
  %v3932 = vpop.f32.mrf.mxu0
  %3933 = vmatprep.mubr.f32.mxu0 0.0
  %3934 = vmatmul.mubr.f32.gmra.mxu0 %v1612
  %v3935 = vpop.f32.mrf.mxu0
  %v3936 = vadd.f32 0.0, %v3935
  %v3937 = vpop.f32.mrf.mxu0
  %3938 = vmatprep.mubr.f32.mxu0 0.0
  %3939 = vmatmul.mubr.f32.gmra.mxu0 %v1615
  %v3940 = vpop.f32.mrf.mxu0
  %v3941 = vadd.f32 0.0, %v3940
  %v3942 = vpop.f32.mrf.mxu0
  %3943 = vmatprep.mubr.f32.mxu0 0.0
  %3944 = vmatmul.mubr.f32.gmra.mxu0 %v1618
  %v3945 = vpop.f32.mrf.mxu0
  %v3946 = vadd.f32 0.0, %v3945
  %v3947 = vpop.f32.mrf.mxu0
  %3948 = vmatprep.mubr.f32.mxu0 0.0
  %3949 = vmatmul.mubr.f32.gmra.mxu0 %v1621
  %v3950 = vpop.f32.mrf.mxu0
  %v3951 = vadd.f32 0.0, %v3950
  %v3952 = vpop.f32.mrf.mxu0
  %3953 = vmatprep.mubr.f32.mxu0 0.0
  %3954 = vmatmul.mubr.f32.gmra.mxu0 %v1624
  %v3955 = vpop.f32.mrf.mxu0
  %v3956 = vadd.f32 0.0, %v3955
  %v3957 = vpop.f32.mrf.mxu0
  %3958 = vmatprep.mubr.f32.mxu0 0.0
  %3959 = vmatmul.mubr.f32.gmra.mxu0 %v1627
  %v3960 = vpop.f32.mrf.mxu0
  %v3961 = vadd.f32 0.0, %v3960
  %v3962 = vpop.f32.mrf.mxu0
  %3963 = vmatprep.mubr.f32.mxu0 0.0
  %3964 = vmatmul.mubr.f32.gmra.mxu0 %v1630
  %v3965 = vpop.f32.mrf.mxu0
  %v3966 = vadd.f32 0.0, %v3965
  %v3967 = vpop.f32.mrf.mxu0
  %3968 = vmatprep.mubr.f32.mxu0 0.0
  %3969 = vmatmul.mubr.f32.gmra.mxu0 %v1633
  %v3970 = vpop.f32.mrf.mxu0
  %v3971 = vadd.f32 0.0, %v3970
  %v3972 = vpop.f32.mrf.mxu0
  %3973 = vmatprep.mubr.f32.mxu0 0.0
  %3974 = vmatmul.mubr.f32.gmra.mxu0 %v1636
  %v3975 = vpop.f32.mrf.mxu0
  %v3976 = vadd.f32 0.0, %v3975
  %v3977 = vpop.f32.mrf.mxu0
  %3978 = vmatprep.mubr.f32.mxu0 0.0
  %3979 = vmatmul.mubr.f32.gmra.mxu0 %v1639
  %v3980 = vpop.f32.mrf.mxu0
  %v3981 = vadd.f32 0.0, %v3980
  %v3982 = vpop.f32.mrf.mxu0
  %3983 = vmatprep.mubr.f32.mxu0 0.0
  %3984 = vmatmul.mubr.f32.gmra.mxu0 %v1642
  %v3985 = vpop.f32.mrf.mxu0
  %v3986 = vadd.f32 0.0, %v3985
  %v3987 = vpop.f32.mrf.mxu0
  %3988 = vmatprep.mubr.f32.mxu0 0.0
  %3989 = vmatmul.mubr.f32.gmra.mxu0 %v1645
  %v3990 = vpop.f32.mrf.mxu0
  %v3991 = vadd.f32 0.0, %v3990
  %v3992 = vpop.f32.mrf.mxu0
  %3993 = vmatprep.mubr.f32.mxu0 0.0
  %3994 = vmatmul.mubr.f32.gmra.mxu0 %v1648
  %v3995 = vpop.f32.mrf.mxu0
  %v3996 = vadd.f32 0.0, %v3995
  %v3997 = vpop.f32.mrf.mxu0
  %3998 = vmatprep.mubr.f32.mxu0 0.0
  %3999 = vmatmul.mubr.f32.gmra.mxu0 %v1651
  %v4000 = vpop.f32.mrf.mxu0
  %v4001 = vadd.f32 0.0, %v4000
  %v4002 = vpop.f32.mrf.mxu0
  %4003 = vmatprep.mubr.f32.mxu0 0.0
  %4004 = vmatmul.mubr.f32.gmra.mxu0 %v1654
  %v4005 = vpop.f32.mrf.mxu0
  %v4006 = vadd.f32 0.0, %v4005
  %v4007 = vpop.f32.mrf.mxu0
  %4008 = vmatprep.mubr.f32.mxu0 0.0
  %4009 = vmatmul.mubr.f32.gmra.mxu0 %v1657
  %v4010 = vpop.f32.mrf.mxu0
  %v4011 = vadd.f32 0.0, %v4010
  %v4012 = vpop.f32.mrf.mxu0
  %4013 = vmatprep.mubr.f32.mxu0 0.0
  %4014 = vmatmul.mubr.f32.gmra.mxu0 %v1660
  %v4015 = vpop.f32.mrf.mxu0
  %v4016 = vadd.f32 0.0, %v4015
  %v4017 = vpop.f32.mrf.mxu0
  %4018 = vmatprep.mubr.f32.mxu0 0.0
  %4019 = vmatmul.mubr.f32.gmra.mxu0 %v1663
  %v4020 = vpop.f32.mrf.mxu0
  %v4021 = vadd.f32 0.0, %v4020
  %v4022 = vpop.f32.mrf.mxu0
  %4023 = vmatprep.mubr.f32.mxu0 0.0
  %4024 = vmatmul.mubr.f32.gmra.mxu0 %v1666
  %v4025 = vpop.f32.mrf.mxu0
  %v4026 = vadd.f32 0.0, %v4025
  %v4027 = vpop.f32.mrf.mxu0
  %4028 = vmatprep.mubr.f32.mxu0 0.0
  %4029 = vmatmul.mubr.f32.gmra.mxu0 %v1669
  %v4030 = vpop.f32.mrf.mxu0
  %v4031 = vadd.f32 0.0, %v4030
  %v4032 = vpop.f32.mrf.mxu0
  %4033 = vmatprep.mubr.f32.mxu0 0.0
  %4034 = vmatmul.mubr.f32.gmra.mxu0 %v1672
  %v4035 = vpop.f32.mrf.mxu0
  %v4036 = vadd.f32 0.0, %v4035
  %v4037 = vpop.f32.mrf.mxu0
  %4038 = vmatprep.mubr.f32.mxu0 0.0
  %4039 = vmatmul.mubr.f32.gmra.mxu0 %v1675
  %v4040 = vpop.f32.mrf.mxu0
  %v4041 = vadd.f32 0.0, %v4040
  %v4042 = vpop.f32.mrf.mxu0
  %4043 = vmatprep.mubr.f32.mxu0 0.0
  %4044 = vmatmul.mubr.f32.gmra.mxu0 %v1678
  %v4045 = vpop.f32.mrf.mxu0
  %v4046 = vadd.f32 0.0, %v4045
  %v4047 = vpop.f32.mrf.mxu0
  %4048 = vmatprep.mubr.f32.mxu0 0.0
  %4049 = vmatmul.mubr.f32.gmra.mxu0 %v1681
  %v4050 = vpop.f32.mrf.mxu0
  %v4051 = vadd.f32 0.0, %v4050
  %v4052 = vpop.f32.mrf.mxu0
  %4053 = vmatprep.mubr.f32.mxu0 0.0
  %4054 = vmatmul.mubr.f32.gmra.mxu0 %v1684
  %v4055 = vpop.f32.mrf.mxu0
  %v4056 = vadd.f32 0.0, %v4055
  %v4057 = vpop.f32.mrf.mxu0
  %4058 = vmatprep.mubr.f32.mxu0 0.0
  %4059 = vmatmul.mubr.f32.gmra.mxu0 %v1687
  %v4060 = vpop.f32.mrf.mxu0
  %v4061 = vadd.f32 0.0, %v4060
  %v4062 = vpop.f32.mrf.mxu0
  %4063 = vmatprep.mubr.f32.mxu0 0.0
  %4064 = vmatmul.mubr.f32.gmra.mxu0 %v1690
  %v4065 = vpop.f32.mrf.mxu0
  %v4066 = vadd.f32 0.0, %v4065
  %v4067 = vpop.f32.mrf.mxu0
  %4068 = vmatprep.mubr.f32.mxu0 0.0
  %4069 = vmatmul.mubr.f32.gmra.mxu0 %v1693
  %v4070 = vpop.f32.mrf.mxu0
  %v4071 = vadd.f32 0.0, %v4070
  %v4072 = vpop.f32.mrf.mxu0
  %4073 = vmatprep.mubr.f32.mxu0 0.0
  %4074 = vmatmul.mubr.f32.gmra.mxu0 %v1696
  %v4075 = vpop.f32.mrf.mxu0
  %v4076 = vadd.f32 0.0, %v4075
  %v4077 = vpop.f32.mrf.mxu0
  %4078 = vmatprep.mubr.f32.mxu0 0.0
  %4079 = vmatmul.mubr.f32.gmra.mxu0 %v1699
  %v4080 = vpop.f32.mrf.mxu0
  %v4081 = vadd.f32 0.0, %v4080
  %v4082 = vpop.f32.mrf.mxu0
  %4083 = vmatprep.mubr.f32.mxu0 0.0
  %4084 = vmatmul.mubr.f32.gmra.mxu0 %v1702
  %v4085 = vpop.f32.mrf.mxu0
  %v4086 = vadd.f32 0.0, %v4085
  %v4087 = vpop.f32.mrf.mxu0
  %4088 = vmatprep.mubr.f32.mxu0 0.0
  %4089 = vmatmul.mubr.f32.gmra.mxu0 %v1705
  %v4090 = vpop.f32.mrf.mxu0
  %v4091 = vadd.f32 0.0, %v4090
  %v4092 = vpop.f32.mrf.mxu0
  %4093 = vmatprep.mubr.f32.mxu0 0.0
  %4094 = vmatmul.mubr.f32.gmra.mxu0 %v1708
  %v4095 = vpop.f32.mrf.mxu0
  %v4096 = vadd.f32 0.0, %v4095
  %v4097 = vpop.f32.mrf.mxu0
  %4098 = vmatprep.mubr.f32.mxu0 0.0
  %4099 = vmatmul.mubr.f32.gmra.mxu0 %v1711
  %v4100 = vpop.f32.mrf.mxu0
  %v4101 = vadd.f32 0.0, %v4100
  %v4102 = vpop.f32.mrf.mxu0
  %4103 = vmatprep.mubr.f32.mxu0 0.0
  %4104 = vmatmul.mubr.f32.gmra.mxu0 %v1714
  %v4105 = vpop.f32.mrf.mxu0
  %v4106 = vadd.f32 0.0, %v4105
  %v4107 = vpop.f32.mrf.mxu0
  %4108 = vmatprep.mubr.f32.mxu0 0.0
  %4109 = vmatmul.mubr.f32.gmra.mxu0 %v1717
  %v4110 = vpop.f32.mrf.mxu0
  %v4111 = vadd.f32 0.0, %v4110
  %v4112 = vpop.f32.mrf.mxu0
  %4113 = vmatprep.mubr.f32.mxu0 0.0
  %4114 = vmatmul.mubr.f32.gmra.mxu0 %v1720
  %v4115 = vpop.f32.mrf.mxu0
  %v4116 = vadd.f32 0.0, %v4115
  %v4117 = vpop.f32.mrf.mxu0
  %4118 = vmatprep.mubr.f32.mxu0 0.0
  %4119 = vmatmul.mubr.f32.gmra.mxu0 %v1723
  %v4120 = vpop.f32.mrf.mxu0
  %v4121 = vadd.f32 0.0, %v4120
  %v4122 = vpop.f32.mrf.mxu0
  %4123 = vmatprep.mubr.f32.mxu0 0.0
  %4124 = vmatmul.mubr.f32.gmra.mxu0 %v1726
  %v4125 = vpop.f32.mrf.mxu0
  %v4126 = vadd.f32 0.0, %v4125
  %v4127 = vpop.f32.mrf.mxu0
  %4128 = vmatprep.mubr.f32.mxu0 0.0
  %4129 = vmatmul.mubr.f32.gmra.mxu0 %v1729
  %v4130 = vpop.f32.mrf.mxu0
  %v4131 = vadd.f32 0.0, %v4130
  %v4132 = vpop.f32.mrf.mxu0
  %4133 = vmatprep.mubr.f32.mxu0 0.0
  %4134 = vmatmul.mubr.f32.gmra.mxu0 %v1732
  %v4135 = vpop.f32.mrf.mxu0
  %v4136 = vadd.f32 0.0, %v4135
  %v4137 = vpop.f32.mrf.mxu0
  %4138 = vmatprep.mubr.f32.mxu0 0.0
  %4139 = vmatmul.mubr.f32.gmra.mxu0 %v1735
  %v4140 = vpop.f32.mrf.mxu0
  %v4141 = vadd.f32 0.0, %v4140
  %v4142 = vpop.f32.mrf.mxu0
  %4143 = vmatprep.mubr.f32.mxu0 0.0
  %4144 = vmatmul.mubr.f32.gmra.mxu0 %v1738
  %v4145 = vpop.f32.mrf.mxu0
  %v4146 = vadd.f32 0.0, %v4145
  %v4147 = vpop.f32.mrf.mxu0
  %4148 = vmatprep.mubr.f32.mxu0 0.0
  %4149 = vmatmul.mubr.f32.gmra.mxu0 %v1741
  %v4150 = vpop.f32.mrf.mxu0
  %v4151 = vadd.f32 0.0, %v4150
  %v4152 = vpop.f32.mrf.mxu0
  %4153 = vmatprep.mubr.f32.mxu0 0.0
  %4154 = vmatmul.mubr.f32.gmra.mxu0 %v1744
  %v4155 = vpop.f32.mrf.mxu0
  %v4156 = vadd.f32 0.0, %v4155
  %v4157 = vpop.f32.mrf.mxu0
  %4158 = vmatprep.mubr.f32.mxu0 0.0
  %4159 = vmatmul.mubr.f32.gmra.mxu0 %v1747
  %v4160 = vpop.f32.mrf.mxu0
  %v4161 = vadd.f32 0.0, %v4160
  %v4162 = vpop.f32.mrf.mxu0
  %4163 = vmatprep.mubr.f32.mxu0 0.0
  %4164 = vmatmul.mubr.f32.gmra.mxu0 %v1750
  %v4165 = vpop.f32.mrf.mxu0
  %v4166 = vadd.f32 0.0, %v4165
  %v4167 = vpop.f32.mrf.mxu0
  %4168 = vmatprep.mubr.f32.mxu0 0.0
  %4169 = vmatmul.mubr.f32.gmra.mxu0 %v1753
  %v4170 = vpop.f32.mrf.mxu0
  %v4171 = vadd.f32 0.0, %v4170
  %v4172 = vpop.f32.mrf.mxu0
  %4173 = vmatprep.mubr.f32.mxu0 0.0
  %4174 = vmatmul.mubr.f32.gmra.mxu0 %v1756
  %v4175 = vpop.f32.mrf.mxu0
  %v4176 = vadd.f32 0.0, %v4175
  %v4177 = vpop.f32.mrf.mxu0
  %4178 = vmatprep.mubr.f32.mxu0 0.0
  %4179 = vmatmul.mubr.f32.gmra.mxu0 %v1759
  %v4180 = vpop.f32.mrf.mxu0
  %v4181 = vadd.f32 0.0, %v4180
  %v4182 = vpop.f32.mrf.mxu0
  %4183 = vmatprep.mubr.f32.mxu0 0.0
  %4184 = vmatmul.mubr.f32.gmra.mxu0 %v1762
  %v4185 = vpop.f32.mrf.mxu0
  %v4186 = vadd.f32 0.0, %v4185
  %v4187 = vpop.f32.mrf.mxu0
  %4188 = vmatprep.mubr.f32.mxu0 0.0
  %4189 = vmatmul.mubr.f32.gmra.mxu0 %v1765
  %v4190 = vpop.f32.mrf.mxu0
  %v4191 = vadd.f32 0.0, %v4190
  %v4192 = vpop.f32.mrf.mxu0
  %4193 = vmatprep.mubr.f32.mxu0 0.0
  %4194 = vmatmul.mubr.f32.gmra.mxu0 %v1768
  %v4195 = vpop.f32.mrf.mxu0
  %v4196 = vadd.f32 0.0, %v4195
  %v4197 = vpop.f32.mrf.mxu0
  %4198 = vmatprep.mubr.f32.mxu0 0.0
  %4199 = vmatmul.mubr.f32.gmra.mxu0 %v1771
  %v4200 = vpop.f32.mrf.mxu0
  %v4201 = vadd.f32 0.0, %v4200
  %v4202 = vpop.f32.mrf.mxu0
  %4203 = vmatprep.mubr.f32.mxu0 0.0
  %4204 = vmatmul.mubr.f32.gmra.mxu0 %v1774
  %v4205 = vpop.f32.mrf.mxu0
  %v4206 = vadd.f32 0.0, %v4205
  %v4207 = vpop.f32.mrf.mxu0
  %4208 = vmatprep.mubr.f32.mxu0 0.0
  %4209 = vmatmul.mubr.f32.gmra.mxu0 %v1777
  %v4210 = vpop.f32.mrf.mxu0
  %v4211 = vadd.f32 0.0, %v4210
  %v4212 = vpop.f32.mrf.mxu0
  %4213 = vmatprep.mubr.f32.mxu0 0.0
  %4214 = vmatmul.mubr.f32.gmra.mxu0 %v1780
  %v4215 = vpop.f32.mrf.mxu0
  %v4216 = vadd.f32 0.0, %v4215
  %v4217 = vpop.f32.mrf.mxu0
  %4218 = vmatprep.mubr.f32.mxu0 0.0
  %4219 = vmatmul.mubr.f32.gmra.mxu0 %v1783
  %v4220 = vpop.f32.mrf.mxu0
  %v4221 = vadd.f32 0.0, %v4220
  %v4222 = vpop.f32.mrf.mxu0
  %4223 = vmatprep.mubr.f32.mxu0 0.0
  %4224 = vmatmul.mubr.f32.gmra.mxu0 %v1786
  %v4225 = vpop.f32.mrf.mxu0
  %v4226 = vadd.f32 0.0, %v4225
  %v4227 = vpop.f32.mrf.mxu0
  %4228 = vmatprep.mubr.f32.mxu0 0.0
  %4229 = vmatmul.mubr.f32.gmra.mxu0 %v1789
  %v4230 = vpop.f32.mrf.mxu0
  %v4231 = vadd.f32 0.0, %v4230
  %v4232 = vpop.f32.mrf.mxu0
  %4233 = vmatprep.mubr.f32.mxu0 0.0
  %4234 = vmatmul.mubr.f32.gmra.mxu0 %v1792
  %v4235 = vpop.f32.mrf.mxu0
  %v4236 = vadd.f32 0.0, %v4235
  %v4237 = vpop.f32.mrf.mxu0
  %4238 = vmatprep.mubr.f32.mxu0 0.0
  %4239 = vmatmul.mubr.f32.gmra.mxu0 %v1795
  %v4240 = vpop.f32.mrf.mxu0
  %v4241 = vadd.f32 0.0, %v4240
  %v4242 = vpop.f32.mrf.mxu0
  %4243 = vmatprep.mubr.f32.mxu0 0.0
  %4244 = vmatmul.mubr.f32.gmra.mxu0 %v1798
  %v4245 = vpop.f32.mrf.mxu0
  %v4246 = vadd.f32 0.0, %v4245
  %v4247 = vpop.f32.mrf.mxu0
  %4248 = vmatprep.mubr.f32.mxu0 0.0
  %4249 = vmatmul.mubr.f32.gmra.mxu0 %v1801
  %v4250 = vpop.f32.mrf.mxu0
  %v4251 = vadd.f32 0.0, %v4250
  %v4252 = vpop.f32.mrf.mxu0
  %4253 = vmatprep.mubr.f32.mxu0 0.0
  %4254 = vmatmul.mubr.f32.gmra.mxu0 %v1804
  %v4255 = vpop.f32.mrf.mxu0
  %v4256 = vadd.f32 0.0, %v4255
  %v4257 = vpop.f32.mrf.mxu0
  %4258 = vmatprep.mubr.f32.mxu0 0.0
  %4259 = vmatmul.mubr.f32.gmra.mxu0 %v1807
  %v4260 = vpop.f32.mrf.mxu0
  %v4261 = vadd.f32 0.0, %v4260
  %v4262 = vpop.f32.mrf.mxu0
  %4263 = vmatprep.mubr.f32.mxu0 0.0
  %4264 = vmatmul.mubr.f32.gmra.mxu0 %v1810
  %v4265 = vpop.f32.mrf.mxu0
  %v4266 = vadd.f32 0.0, %v4265
  %v4267 = vpop.f32.mrf.mxu0
  %4268 = vmatprep.mubr.f32.mxu0 0.0
  %4269 = vmatmul.mubr.f32.gmra.mxu0 %v1813
  %v4270 = vpop.f32.mrf.mxu0
  %v4271 = vadd.f32 0.0, %v4270
  %v4272 = vpop.f32.mrf.mxu0
  %4273 = vmatprep.mubr.f32.mxu0 0.0
  %4274 = vmatmul.mubr.f32.gmra.mxu0 %v1816
  %v4275 = vpop.f32.mrf.mxu0
  %v4276 = vadd.f32 0.0, %v4275
  %v4277 = vpop.f32.mrf.mxu0
  %4278 = vmatprep.mubr.f32.mxu0 0.0
  %4279 = vmatmul.mubr.f32.gmra.mxu0 %v1819
  %v4280 = vpop.f32.mrf.mxu0
  %v4281 = vadd.f32 0.0, %v4280
  %v4282 = vpop.f32.mrf.mxu0
  %4283 = vmatprep.mubr.f32.mxu0 0.0
  %4284 = vmatmul.mubr.f32.gmra.mxu0 %v1822
  %v4285 = vpop.f32.mrf.mxu0
  %v4286 = vadd.f32 0.0, %v4285
  %v4287 = vpop.f32.mrf.mxu0
  %4288 = vmatprep.mubr.f32.mxu0 0.0
  %4289 = vmatmul.mubr.f32.gmra.mxu0 %v1825
  %v4290 = vpop.f32.mrf.mxu0
  %v4291 = vadd.f32 0.0, %v4290
  %v4292 = vpop.f32.mrf.mxu0
  %4293 = vmatprep.mubr.f32.mxu0 0.0
  %4294 = vmatmul.mubr.f32.gmra.mxu0 %v1828
  %v4295 = vpop.f32.mrf.mxu0
  %v4296 = vadd.f32 0.0, %v4295
  %v4297 = vpop.f32.mrf.mxu0
  %4298 = vmatprep.mubr.f32.mxu0 0.0
  %4299 = vmatmul.mubr.f32.gmra.mxu0 %v1831
  %v4300 = vpop.f32.mrf.mxu0
  %v4301 = vadd.f32 0.0, %v4300
  %v4302 = vpop.f32.mrf.mxu0
  %4303 = vmatprep.mubr.f32.mxu0 0.0
  %4304 = vmatmul.mubr.f32.gmra.mxu0 %v1834
  %v4305 = vpop.f32.mrf.mxu0
  %v4306 = vadd.f32 0.0, %v4305
  %v4307 = vpop.f32.mrf.mxu0
  %4308 = vmatprep.mubr.f32.mxu0 0.0
  %4309 = vmatmul.mubr.f32.gmra.mxu0 %v1837
  %v4310 = vpop.f32.mrf.mxu0
  %v4311 = vadd.f32 0.0, %v4310
  %v4312 = vpop.f32.mrf.mxu0
  %4313 = vmatprep.mubr.f32.mxu0 0.0
  %4314 = vmatmul.mubr.f32.gmra.mxu0 %v1840
  %v4315 = vpop.f32.mrf.mxu0
  %v4316 = vadd.f32 0.0, %v4315
  %v4317 = vpop.f32.mrf.mxu0
  %4318 = vmatprep.mubr.f32.mxu0 0.0
  %4319 = vmatmul.mubr.f32.gmra.mxu0 %v1843
  %v4320 = vpop.f32.mrf.mxu0
  %v4321 = vadd.f32 0.0, %v4320
  %v4322 = vpop.f32.mrf.mxu0
  %4323 = vmatprep.mubr.f32.mxu0 0.0
  %4324 = vmatmul.mubr.f32.gmra.mxu0 %v1846
  %v4325 = vpop.f32.mrf.mxu0
  %v4326 = vadd.f32 0.0, %v4325
  %v4327 = vpop.f32.mrf.mxu0
  %4328 = vmatprep.mubr.f32.mxu0 0.0
  %4329 = vmatmul.mubr.f32.gmra.mxu0 %v1849
  %v4330 = vpop.f32.mrf.mxu0
  %v4331 = vadd.f32 0.0, %v4330
  %v4332 = vpop.f32.mrf.mxu0
  %4333 = vmatprep.mubr.f32.mxu0 0.0
  %4334 = vmatmul.mubr.f32.gmra.mxu0 %v1852
  %v4335 = vpop.f32.mrf.mxu0
  %v4336 = vadd.f32 0.0, %v4335
  %v4337 = vpop.f32.mrf.mxu0
  %4338 = vmatprep.mubr.f32.mxu0 0.0
  %4339 = vmatmul.mubr.f32.gmra.mxu0 %v1855
  %v4340 = vpop.f32.mrf.mxu0
  %v4341 = vadd.f32 0.0, %v4340
  %v4342 = vpop.f32.mrf.mxu0
  %4343 = vmatprep.mubr.f32.mxu0 0.0
  %4344 = vmatmul.mubr.f32.gmra.mxu0 %v1858
  %v4345 = vpop.f32.mrf.mxu0
  %v4346 = vadd.f32 0.0, %v4345
  %v4347 = vpop.f32.mrf.mxu0
  %4348 = vmatprep.mubr.f32.mxu0 0.0
  %4349 = vmatmul.mubr.f32.gmra.mxu0 %v1861
  %v4350 = vpop.f32.mrf.mxu0
  %v4351 = vadd.f32 0.0, %v4350
  %v4352 = vpop.f32.mrf.mxu0
  %4353 = vmatprep.mubr.f32.mxu0 0.0
  %4354 = vmatmul.mubr.f32.gmra.mxu0 %v1864
  %v4355 = vpop.f32.mrf.mxu0
  %v4356 = vadd.f32 0.0, %v4355
  %v4357 = vpop.f32.mrf.mxu0
  %4358 = vmatprep.mubr.f32.mxu0 0.0
  %4359 = vmatmul.mubr.f32.gmra.mxu0 %v1867
  %v4360 = vpop.f32.mrf.mxu0
  %v4361 = vadd.f32 0.0, %v4360
  %v4362 = vpop.f32.mrf.mxu0
  %4363 = vmatprep.mubr.f32.mxu0 0.0
  %4364 = vmatmul.mubr.f32.gmra.mxu0 %v1870
  %v4365 = vpop.f32.mrf.mxu0
  %v4366 = vadd.f32 0.0, %v4365
  %v4367 = vpop.f32.mrf.mxu0
  %4368 = vmatprep.mubr.f32.mxu0 0.0
  %4369 = vmatmul.mubr.f32.gmra.mxu0 %v1873
  %v4370 = vpop.f32.mrf.mxu0
  %v4371 = vadd.f32 0.0, %v4370
  %v4372 = vpop.f32.mrf.mxu0
  %4373 = vmatprep.mubr.f32.mxu0 0.0
  %4374 = vmatmul.mubr.f32.gmra.mxu0 %v1876
  %v4375 = vpop.f32.mrf.mxu0
  %v4376 = vadd.f32 0.0, %v4375
  %v4377 = vpop.f32.mrf.mxu0
  %4378 = vmatprep.mubr.f32.mxu0 0.0
  %4379 = vmatmul.mubr.f32.gmra.mxu0 %v1879
  %v4380 = vpop.f32.mrf.mxu0
  %v4381 = vadd.f32 0.0, %v4380
  %v4382 = vpop.f32.mrf.mxu0
  %4383 = vmatprep.mubr.f32.mxu0 0.0
  %4384 = vmatmul.mubr.f32.gmra.mxu0 %v1882
  %v4385 = vpop.f32.mrf.mxu0
  %v4386 = vadd.f32 0.0, %v4385
  %v4387 = vpop.f32.mrf.mxu0
  %4388 = vmatprep.mubr.f32.mxu0 0.0
  %4389 = vmatmul.mubr.f32.gmra.mxu0 %v1885
  %v4390 = vpop.f32.mrf.mxu0
  %v4391 = vadd.f32 0.0, %v4390
  %v4392 = vpop.f32.mrf.mxu0
  %4393 = vmatprep.mubr.f32.mxu0 0.0
  %4394 = vmatmul.mubr.f32.gmra.mxu0 %v1888
  %v4395 = vpop.f32.mrf.mxu0
  %v4396 = vadd.f32 0.0, %v4395
  %v4397 = vpop.f32.mrf.mxu0
  %4398 = vmatprep.mubr.f32.mxu0 0.0
  %4399 = vmatmul.mubr.f32.gmra.mxu0 %v1891
  %v4400 = vpop.f32.mrf.mxu0
  %v4401 = vadd.f32 0.0, %v4400
  %v4402 = vpop.f32.mrf.mxu0
  %4403 = vmatprep.mubr.f32.mxu0 0.0
  %4404 = vmatmul.mubr.f32.gmra.mxu0 %v1894
  %v4405 = vpop.f32.mrf.mxu0
  %v4406 = vadd.f32 0.0, %v4405
  %v4407 = vpop.f32.mrf.mxu0
  %4408 = vmatprep.mubr.f32.mxu0 0.0
  %4409 = vmatmul.mubr.f32.gmra.mxu0 %v1897
  %v4410 = vpop.f32.mrf.mxu0
  %v4411 = vadd.f32 0.0, %v4410
  %v4412 = vpop.f32.mrf.mxu0
  %4413 = vmatprep.mubr.f32.mxu0 0.0
  %4414 = vmatmul.mubr.f32.gmra.mxu0 %v1900
  %v4415 = vpop.f32.mrf.mxu0
  %v4416 = vadd.f32 0.0, %v4415
  %v4417 = vpop.f32.mrf.mxu0
  %4418 = vmatprep.mubr.f32.mxu0 0.0
  %4419 = vmatmul.mubr.f32.gmra.mxu0 %v1903
  %v4420 = vpop.f32.mrf.mxu0
  %v4421 = vadd.f32 0.0, %v4420
  %v4422 = vpop.f32.mrf.mxu0
  %4423 = vmatprep.mubr.f32.mxu0 0.0
  %4424 = vmatmul.mubr.f32.gmra.mxu0 %v1906
  %v4425 = vpop.f32.mrf.mxu0
  %v4426 = vadd.f32 0.0, %v4425
  %v4427 = vpop.f32.mrf.mxu0
  %4428 = vmatprep.mubr.f32.mxu0 0.0
  %4429 = vmatmul.mubr.f32.gmra.mxu0 %v1909
  %v4430 = vpop.f32.mrf.mxu0
  %v4431 = vadd.f32 0.0, %v4430
  %v4432 = vpop.f32.mrf.mxu0
  %4433 = vmatprep.mubr.f32.mxu0 0.0
  %4434 = vmatmul.mubr.f32.gmra.mxu0 %v1912
  %v4435 = vpop.f32.mrf.mxu0
  %v4436 = vadd.f32 0.0, %v4435
  %v4437 = vpop.f32.mrf.mxu0
  %4438 = vmatprep.mubr.f32.mxu0 0.0
  %4439 = vmatmul.mubr.f32.gmra.mxu0 %v1915
  %v4440 = vpop.f32.mrf.mxu0
  %v4441 = vadd.f32 0.0, %v4440
  %v4442 = vpop.f32.mrf.mxu0
  %4443 = vmatprep.mubr.f32.mxu0 0.0
  %4444 = vmatmul.mubr.f32.gmra.mxu0 %v1918
  %v4445 = vpop.f32.mrf.mxu0
  %v4446 = vadd.f32 0.0, %v4445
  %v4447 = vpop.f32.mrf.mxu0
  %4448 = vmatprep.mubr.f32.mxu0 0.0
  %4449 = vmatmul.mubr.f32.gmra.mxu0 %v1921
  %v4450 = vpop.f32.mrf.mxu0
  %v4451 = vadd.f32 0.0, %v4450
  %v4452 = vpop.f32.mrf.mxu0
  %4453 = vmatprep.mubr.f32.mxu0 0.0
  %4454 = vmatmul.mubr.f32.gmra.mxu0 %v1924
  %v4455 = vpop.f32.mrf.mxu0
  %v4456 = vadd.f32 0.0, %v4455
  %v4457 = vpop.f32.mrf.mxu0
  %4458 = vmatprep.mubr.f32.mxu0 0.0
  %4459 = vmatmul.mubr.f32.gmra.mxu0 %v1927
  %v4460 = vpop.f32.mrf.mxu0
  %v4461 = vadd.f32 0.0, %v4460
  %v4462 = vpop.f32.mrf.mxu0
  %4463 = vmatprep.mubr.f32.mxu0 0.0
  %4464 = vmatmul.mubr.f32.gmra.mxu0 %v1930
  %v4465 = vpop.f32.mrf.mxu0
  %v4466 = vadd.f32 0.0, %v4465
  %v4467 = vpop.f32.mrf.mxu0
  %4468 = vmatprep.mubr.f32.mxu0 0.0
  %4469 = vmatmul.mubr.f32.gmra.mxu0 %v1933
  %v4470 = vpop.f32.mrf.mxu0
  %v4471 = vadd.f32 0.0, %v4470
  %v4472 = vpop.f32.mrf.mxu0
  %4473 = vmatprep.mubr.f32.mxu0 0.0
  %4474 = vmatmul.mubr.f32.gmra.mxu0 %v1936
  %v4475 = vpop.f32.mrf.mxu0
  %v4476 = vadd.f32 0.0, %v4475
  %v4477 = vpop.f32.mrf.mxu0
  %4478 = vmatprep.mubr.f32.mxu0 0.0
  %4479 = vmatmul.mubr.f32.gmra.mxu0 %v1939
  %v4480 = vpop.f32.mrf.mxu0
  %v4481 = vadd.f32 0.0, %v4480
  %v4482 = vpop.f32.mrf.mxu0
  %4483 = vmatprep.mubr.f32.mxu0 0.0
  %4484 = vmatmul.mubr.f32.gmra.mxu0 %v1942
  %v4485 = vpop.f32.mrf.mxu0
  %v4486 = vadd.f32 0.0, %v4485
  %v4487 = vpop.f32.mrf.mxu0
  %4488 = vmatprep.mubr.f32.mxu0 0.0
  %4489 = vmatmul.mubr.f32.gmra.mxu0 %v1945
  %v4490 = vpop.f32.mrf.mxu0
  %v4491 = vadd.f32 0.0, %v4490
  %v4492 = vpop.f32.mrf.mxu0
  %4493 = vmatprep.mubr.f32.mxu0 0.0
  %4494 = vmatmul.mubr.f32.gmra.mxu0 %v1948
  %v4495 = vpop.f32.mrf.mxu0
  %v4496 = vadd.f32 0.0, %v4495
  %v4497 = vpop.f32.mrf.mxu0
  %4498 = vmatprep.mubr.f32.mxu0 0.0
  %4499 = vmatmul.mubr.f32.gmra.mxu0 %v1951
  %v4500 = vpop.f32.mrf.mxu0
  %v4501 = vadd.f32 0.0, %v4500
  %v4502 = vpop.f32.mrf.mxu0
  %4503 = vmatprep.mubr.f32.mxu0 0.0
  %4504 = vmatmul.mubr.f32.gmra.mxu0 %v1954
  %v4505 = vpop.f32.mrf.mxu0
  %v4506 = vadd.f32 0.0, %v4505
  %v4507 = vpop.f32.mrf.mxu0
  %4508 = vmatprep.mubr.f32.mxu0 0.0
  %4509 = vmatmul.mubr.f32.gmra.mxu0 %v1957
  %v4510 = vpop.f32.mrf.mxu0
  %v4511 = vadd.f32 0.0, %v4510
  %v4512 = vpop.f32.mrf.mxu0
  %4513 = vmatprep.mubr.f32.mxu0 0.0
  %4514 = vmatmul.mubr.f32.gmra.mxu0 %v1960
  %v4515 = vpop.f32.mrf.mxu0
  %v4516 = vadd.f32 0.0, %v4515
  %v4517 = vpop.f32.mrf.mxu0
  %4518 = vmatprep.mubr.f32.mxu0 0.0
  %4519 = vmatmul.mubr.f32.gmra.mxu0 %v1963
  %v4520 = vpop.f32.mrf.mxu0
  %v4521 = vadd.f32 0.0, %v4520
  %v4522 = vpop.f32.mrf.mxu0
  %4523 = vmatprep.mubr.f32.mxu0 0.0
  %4524 = vmatmul.mubr.f32.gmra.mxu0 %v1966
  %v4525 = vpop.f32.mrf.mxu0
  %v4526 = vadd.f32 0.0, %v4525
  %v4527 = vpop.f32.mrf.mxu0
  %4528 = vmatprep.mubr.f32.mxu0 0.0
  %4529 = vmatmul.mubr.f32.gmra.mxu0 %v1969
  %v4530 = vpop.f32.mrf.mxu0
  %v4531 = vadd.f32 0.0, %v4530
  %v4532 = vpop.f32.mrf.mxu0
  %4533 = vmatprep.mubr.f32.mxu0 0.0
  %4534 = vmatmul.mubr.f32.gmra.mxu0 %v1972
  %v4535 = vpop.f32.mrf.mxu0
  %v4536 = vadd.f32 0.0, %v4535
  %v4537 = vpop.f32.mrf.mxu0
  %4538 = vmatprep.mubr.f32.mxu0 0.0
  %4539 = vmatmul.mubr.f32.gmra.mxu0 %v1975
  %v4540 = vpop.f32.mrf.mxu0
  %v4541 = vadd.f32 0.0, %v4540
  %v4542 = vpop.f32.mrf.mxu0
  %4543 = vmatprep.mubr.f32.mxu0 0.0
  %4544 = vmatmul.mubr.f32.gmra.mxu0 %v1978
  %v4545 = vpop.f32.mrf.mxu0
  %v4546 = vadd.f32 0.0, %v4545
  %v4547 = vpop.f32.mrf.mxu0
  %4548 = vmatprep.mubr.f32.mxu0 0.0
  %4549 = vmatmul.mubr.f32.gmra.mxu0 %v1981
  %v4550 = vpop.f32.mrf.mxu0
  %v4551 = vadd.f32 0.0, %v4550
  %v4552 = vpop.f32.mrf.mxu0
  %4553 = vmatprep.mubr.f32.mxu0 0.0
  %4554 = vmatmul.mubr.f32.gmra.mxu0 %v1984
  %v4555 = vpop.f32.mrf.mxu0
  %v4556 = vadd.f32 0.0, %v4555
  %v4557 = vpop.f32.mrf.mxu0
  %4558 = vmatprep.mubr.f32.mxu0 0.0
  %4559 = vmatmul.mubr.f32.gmra.mxu0 %v1987
  %v4560 = vpop.f32.mrf.mxu0
  %v4561 = vadd.f32 0.0, %v4560
  %v4562 = vpop.f32.mrf.mxu0
  %4563 = vmatprep.mubr.f32.mxu0 0.0
  %4564 = vmatmul.mubr.f32.gmra.mxu0 %v1990
  %v4565 = vpop.f32.mrf.mxu0
  %v4566 = vadd.f32 0.0, %v4565
  %v4567 = vpop.f32.mrf.mxu0
  %4568 = vmatprep.mubr.f32.mxu0 0.0
  %4569 = vmatmul.mubr.f32.gmra.mxu0 %v1993
  %v4570 = vpop.f32.mrf.mxu0
  %v4571 = vadd.f32 0.0, %v4570
  %v4572 = vpop.f32.mrf.mxu0
  %4573 = vmatprep.mubr.f32.mxu0 0.0
  %4574 = vmatmul.mubr.f32.gmra.mxu0 %v1996
  %v4575 = vpop.f32.mrf.mxu0
  %v4576 = vadd.f32 0.0, %v4575
  %v4577 = vpop.f32.mrf.mxu0
  %4578 = vmatprep.mubr.f32.mxu0 0.0
  %4579 = vmatmul.mubr.f32.gmra.mxu0 %v1999
  %v4580 = vpop.f32.mrf.mxu0
  %v4581 = vadd.f32 0.0, %v4580
  %v4582 = vpop.f32.mrf.mxu0
  %4583 = vmatprep.mubr.f32.mxu0 0.0
  %4584 = vmatmul.mubr.f32.gmra.mxu0 %v2002
  %v4585 = vpop.f32.mrf.mxu0
  %v4586 = vadd.f32 0.0, %v4585
  %v4587 = vpop.f32.mrf.mxu0
  %4588 = vmatprep.mubr.f32.mxu0 0.0
  %4589 = vmatmul.mubr.f32.gmra.mxu0 %v2005
  %v4590 = vpop.f32.mrf.mxu0
  %v4591 = vadd.f32 0.0, %v4590
  %v4592 = vpop.f32.mrf.mxu0
  %4593 = vmatprep.mubr.f32.mxu0 0.0
  %4594 = vmatmul.mubr.f32.gmra.mxu0 %v2008
  %v4595 = vpop.f32.mrf.mxu0
  %v4596 = vadd.f32 0.0, %v4595
  %v4597 = vpop.f32.mrf.mxu0
  %4598 = vmatprep.mubr.f32.mxu0 0.0
  %4599 = vmatmul.mubr.f32.gmra.mxu0 %v2011
  %v4600 = vpop.f32.mrf.mxu0
  %v4601 = vadd.f32 0.0, %v4600
  %v4602 = vpop.f32.mrf.mxu0
  %4603 = vmatprep.mubr.f32.mxu0 0.0
  %4604 = vmatmul.mubr.f32.gmra.mxu0 %v2014
  %v4605 = vpop.f32.mrf.mxu0
  %v4606 = vadd.f32 0.0, %v4605
  %v4607 = vpop.f32.mrf.mxu0
  %4608 = vmatprep.mubr.f32.mxu0 0.0
  %4609 = vmatmul.mubr.f32.gmra.mxu0 %v2017
  %v4610 = vpop.f32.mrf.mxu0
  %v4611 = vadd.f32 0.0, %v4610
  %v4612 = vpop.f32.mrf.mxu0
  %4613 = vmatprep.mubr.f32.mxu0 0.0
  %4614 = vmatmul.mubr.f32.gmra.mxu0 %v2020
  %v4615 = vpop.f32.mrf.mxu0
  %v4616 = vadd.f32 0.0, %v4615
  %v4617 = vpop.f32.mrf.mxu0
  %4618 = vmatprep.mubr.f32.mxu0 0.0
  %4619 = vmatmul.mubr.f32.gmra.mxu0 %v2023
  %v4620 = vpop.f32.mrf.mxu0
  %v4621 = vadd.f32 0.0, %v4620
  %v4622 = vpop.f32.mrf.mxu0
  %4623 = vmatprep.mubr.f32.mxu0 0.0
  %4624 = vmatmul.mubr.f32.gmra.mxu0 %v2026
  %v4625 = vpop.f32.mrf.mxu0
  %v4626 = vadd.f32 0.0, %v4625
  %v4627 = vpop.f32.mrf.mxu0
  %4628 = vmatprep.mubr.f32.mxu0 0.0
  %4629 = vmatmul.mubr.f32.gmra.mxu0 %v2029
  %v4630 = vpop.f32.mrf.mxu0
  %v4631 = vadd.f32 0.0, %v4630
  %v4632 = vpop.f32.mrf.mxu0
  %4633 = vmatprep.mubr.f32.mxu0 0.0
  %4634 = vmatmul.mubr.f32.gmra.mxu0 %v2032
  %v4635 = vpop.f32.mrf.mxu0
  %v4636 = vadd.f32 0.0, %v4635
  %v4637 = vpop.f32.mrf.mxu0
  %4638 = vmatprep.mubr.f32.mxu0 0.0
  %4639 = vmatmul.mubr.f32.gmra.mxu0 %v2035
  %v4640 = vpop.f32.mrf.mxu0
  %v4641 = vadd.f32 0.0, %v4640
  %v4642 = vpop.f32.mrf.mxu0
  %4643 = vmatprep.mubr.f32.mxu0 0.0
  %4644 = vmatmul.mubr.f32.gmra.mxu0 %v2038
  %v4645 = vpop.f32.mrf.mxu0
  %v4646 = vadd.f32 0.0, %v4645
  %v4647 = vpop.f32.mrf.mxu0
  %4648 = vmatprep.mubr.f32.mxu0 0.0
  %4649 = vmatmul.mubr.f32.gmra.mxu0 %v2041
  %v4650 = vpop.f32.mrf.mxu0
  %v4651 = vadd.f32 0.0, %v4650
  %v4652 = vpop.f32.mrf.mxu0
  %4653 = vmatprep.mubr.f32.mxu0 0.0
  %4654 = vmatmul.mubr.f32.gmra.mxu0 %v2044
  %v4655 = vpop.f32.mrf.mxu0
  %v4656 = vadd.f32 0.0, %v4655
  %v4657 = vpop.f32.mrf.mxu0
  %4658 = vmatprep.mubr.f32.mxu0 0.0
  %4659 = vmatmul.mubr.f32.gmra.mxu0 %v2047
  %v4660 = vpop.f32.mrf.mxu0
  %v4661 = vadd.f32 0.0, %v4660
  %v4662 = vpop.f32.mrf.mxu0
  %4663 = vmatprep.mubr.f32.mxu0 0.0
  %4664 = vmatmul.mubr.f32.gmra.mxu0 %v2050
  %v4665 = vpop.f32.mrf.mxu0
  %v4666 = vadd.f32 0.0, %v4665
  %v4667 = vpop.f32.mrf.mxu0
  %4668 = vmatprep.mubr.f32.mxu0 0.0
  %4669 = vmatmul.mubr.f32.gmra.mxu0 %v2053
  %v4670 = vpop.f32.mrf.mxu0
  %v4671 = vadd.f32 0.0, %v4670
  %v4672 = vpop.f32.mrf.mxu0
  %4673 = vmatprep.mubr.f32.mxu0 0.0
  %4674 = vmatmul.mubr.f32.gmra.mxu0 %v2056
  %v4675 = vpop.f32.mrf.mxu0
  %v4676 = vadd.f32 0.0, %v4675
  %v4677 = vpop.f32.mrf.mxu0
  %4678 = vmatprep.mubr.f32.mxu0 0.0
  %4679 = vmatmul.mubr.f32.gmra.mxu0 %v2059
  %v4680 = vpop.f32.mrf.mxu0
  %v4681 = vadd.f32 0.0, %v4680
  %v4682 = vpop.f32.mrf.mxu0
  %4683 = vmatprep.mubr.f32.mxu0 0.0
  %4684 = vmatmul.mubr.f32.gmra.mxu0 %v2062
  %v4685 = vpop.f32.mrf.mxu0
  %v4686 = vadd.f32 0.0, %v4685
  %v4687 = vpop.f32.mrf.mxu0
  %4688 = vdwg.mxu0
  %vm4689 = vcmask 121856
  %4690 = vst.msk [vmem:[%s2] sm:$0xff] %vm4689, %v2131
  %4691 = vst.msk [vmem:[%s2 + $0x8] sm:$0xff] %vm4689, %v2136
  %4692 = vst.msk [vmem:[%s2 + $0x10] sm:$0xff] %vm4689, %v2141
  %4693 = vst.msk [vmem:[%s2 + $0x18] sm:$0xff] %vm4689, %v2146
  %4694 = vst.msk [vmem:[%s2 + $0x20] sm:$0xff] %vm4689, %v2151
  %4695 = vst.msk [vmem:[%s2 + $0x28] sm:$0xff] %vm4689, %v2156
  %4696 = vst.msk [vmem:[%s2 + $0x30] sm:$0xff] %vm4689, %v2161
  %4697 = vst.msk [vmem:[%s2 + $0x38] sm:$0xff] %vm4689, %v2166
  %4698 = vst.msk [vmem:[%s2 + $0x40] sm:$0xff] %vm4689, %v2171
  %4699 = vst.msk [vmem:[%s2 + $0x48] sm:$0xff] %vm4689, %v2176
  %4700 = vst.msk [vmem:[%s2 + $0x50] sm:$0xff] %vm4689, %v2181
  %4701 = vst.msk [vmem:[%s2 + $0x58] sm:$0xff] %vm4689, %v2186
  %4702 = vst.msk [vmem:[%s2 + $0x60] sm:$0xff] %vm4689, %v2191
  %4703 = vst.msk [vmem:[%s2 + $0x68] sm:$0xff] %vm4689, %v2196
  %4704 = vst.msk [vmem:[%s2 + $0x70] sm:$0xff] %vm4689, %v2201
  %4705 = vst.msk [vmem:[%s2 + $0x78] sm:$0xff] %vm4689, %v2206
  %4706 = vst.msk [vmem:[%s2 + $0x80] sm:$0xff] %vm4689, %v2211
  %4707 = vst.msk [vmem:[%s2 + $0x88] sm:$0xff] %vm4689, %v2216
  %4708 = vst.msk [vmem:[%s2 + $0x90] sm:$0xff] %vm4689, %v2221
  %4709 = vst.msk [vmem:[%s2 + $0x98] sm:$0xff] %vm4689, %v2226
  %4710 = vst.msk [vmem:[%s2 + $0xa0] sm:$0xff] %vm4689, %v2231
  %4711 = vst.msk [vmem:[%s2 + $0xa8] sm:$0xff] %vm4689, %v2236
  %4712 = vst.msk [vmem:[%s2 + $0xb0] sm:$0xff] %vm4689, %v2241
  %4713 = vst.msk [vmem:[%s2 + $0xb8] sm:$0xff] %vm4689, %v2246
  %4714 = vst.msk [vmem:[%s2 + $0xc0] sm:$0xff] %vm4689, %v2251
  %4715 = vst.msk [vmem:[%s2 + $0xc8] sm:$0xff] %vm4689, %v2256
  %4716 = vst.msk [vmem:[%s2 + $0xd0] sm:$0xff] %vm4689, %v2261
  %4717 = vst.msk [vmem:[%s2 + $0xd8] sm:$0xff] %vm4689, %v2266
  %4718 = vst.msk [vmem:[%s2 + $0xe0] sm:$0xff] %vm4689, %v2271
  %4719 = vst.msk [vmem:[%s2 + $0xe8] sm:$0xff] %vm4689, %v2276
  %4720 = vst.msk [vmem:[%s2 + $0xf0] sm:$0xff] %vm4689, %v2281
  %4721 = vst.msk [vmem:[%s2 + $0xf8] sm:$0xff] %vm4689, %v2286
  %4722 = vst.msk [vmem:[%s2 + $0x100] sm:$0xff] %vm4689, %v2291
  %4723 = vst.msk [vmem:[%s2 + $0x108] sm:$0xff] %vm4689, %v2296
  %4724 = vst.msk [vmem:[%s2 + $0x110] sm:$0xff] %vm4689, %v2301
  %4725 = vst.msk [vmem:[%s2 + $0x118] sm:$0xff] %vm4689, %v2306
  %4726 = vst.msk [vmem:[%s2 + $0x120] sm:$0xff] %vm4689, %v2311
  %4727 = vst.msk [vmem:[%s2 + $0x128] sm:$0xff] %vm4689, %v2316
  %4728 = vst.msk [vmem:[%s2 + $0x130] sm:$0xff] %vm4689, %v2321
  %4729 = vst.msk [vmem:[%s2 + $0x138] sm:$0xff] %vm4689, %v2326
  %4730 = vst.msk [vmem:[%s2 + $0x140] sm:$0xff] %vm4689, %v2331
  %4731 = vst.msk [vmem:[%s2 + $0x148] sm:$0xff] %vm4689, %v2336
  %4732 = vst.msk [vmem:[%s2 + $0x150] sm:$0xff] %vm4689, %v2341
  %4733 = vst.msk [vmem:[%s2 + $0x158] sm:$0xff] %vm4689, %v2346
  %4734 = vst.msk [vmem:[%s2 + $0x160] sm:$0xff] %vm4689, %v2351
  %4735 = vst.msk [vmem:[%s2 + $0x168] sm:$0xff] %vm4689, %v2356
  %4736 = vst.msk [vmem:[%s2 + $0x170] sm:$0xff] %vm4689, %v2361
  %4737 = vst.msk [vmem:[%s2 + $0x178] sm:$0xff] %vm4689, %v2366
  %4738 = vst.msk [vmem:[%s2 + $0x180] sm:$0xff] %vm4689, %v2371
  %4739 = vst.msk [vmem:[%s2 + $0x188] sm:$0xff] %vm4689, %v2376
  %4740 = vst.msk [vmem:[%s2 + $0x190] sm:$0xff] %vm4689, %v2381
  %4741 = vst.msk [vmem:[%s2 + $0x198] sm:$0xff] %vm4689, %v2386
  %4742 = vst.msk [vmem:[%s2 + $0x1a0] sm:$0xff] %vm4689, %v2391
  %4743 = vst.msk [vmem:[%s2 + $0x1a8] sm:$0xff] %vm4689, %v2396
  %4744 = vst.msk [vmem:[%s2 + $0x1b0] sm:$0xff] %vm4689, %v2401
  %4745 = vst.msk [vmem:[%s2 + $0x1b8] sm:$0xff] %vm4689, %v2406
  %4746 = vst.msk [vmem:[%s2 + $0x1c0] sm:$0xff] %vm4689, %v2411
  %4747 = vst.msk [vmem:[%s2 + $0x1c8] sm:$0xff] %vm4689, %v2416
  %4748 = vst.msk [vmem:[%s2 + $0x1d0] sm:$0xff] %vm4689, %v2421
  %4749 = vst.msk [vmem:[%s2 + $0x1d8] sm:$0xff] %vm4689, %v2426
  %4750 = vst.msk [vmem:[%s2 + $0x1e0] sm:$0xff] %vm4689, %v2431
  %4751 = vst.msk [vmem:[%s2 + $0x1e8] sm:$0xff] %vm4689, %v2436
  %4752 = vst.msk [vmem:[%s2 + $0x1f0] sm:$0xff] %vm4689, %v2441
  %4753 = vst.msk [vmem:[%s2 + $0x1f8] sm:$0xff] %vm4689, %v2446
  %4754 = vst.msk [vmem:[%s2 + $0x200] sm:$0xff] %vm4689, %v2451
  %4755 = vst.msk [vmem:[%s2 + $0x208] sm:$0xff] %vm4689, %v2456
  %4756 = vst.msk [vmem:[%s2 + $0x210] sm:$0xff] %vm4689, %v2461
  %4757 = vst.msk [vmem:[%s2 + $0x218] sm:$0xff] %vm4689, %v2466
  %4758 = vst.msk [vmem:[%s2 + $0x220] sm:$0xff] %vm4689, %v2471
  %4759 = vst.msk [vmem:[%s2 + $0x228] sm:$0xff] %vm4689, %v2476
  %4760 = vst.msk [vmem:[%s2 + $0x230] sm:$0xff] %vm4689, %v2481
  %4761 = vst.msk [vmem:[%s2 + $0x238] sm:$0xff] %vm4689, %v2486
  %4762 = vst.msk [vmem:[%s2 + $0x240] sm:$0xff] %vm4689, %v2491
  %4763 = vst.msk [vmem:[%s2 + $0x248] sm:$0xff] %vm4689, %v2496
  %4764 = vst.msk [vmem:[%s2 + $0x250] sm:$0xff] %vm4689, %v2501
  %4765 = vst.msk [vmem:[%s2 + $0x258] sm:$0xff] %vm4689, %v2506
  %4766 = vst.msk [vmem:[%s2 + $0x260] sm:$0xff] %vm4689, %v2511
  %4767 = vst.msk [vmem:[%s2 + $0x268] sm:$0xff] %vm4689, %v2516
  %4768 = vst.msk [vmem:[%s2 + $0x270] sm:$0xff] %vm4689, %v2521
  %4769 = vst.msk [vmem:[%s2 + $0x278] sm:$0xff] %vm4689, %v2526
  %4770 = vst.msk [vmem:[%s2 + $0x280] sm:$0xff] %vm4689, %v2531
  %4771 = vst.msk [vmem:[%s2 + $0x288] sm:$0xff] %vm4689, %v2536
  %4772 = vst.msk [vmem:[%s2 + $0x290] sm:$0xff] %vm4689, %v2541
  %4773 = vst.msk [vmem:[%s2 + $0x298] sm:$0xff] %vm4689, %v2546
  %4774 = vst.msk [vmem:[%s2 + $0x2a0] sm:$0xff] %vm4689, %v2551
  %4775 = vst.msk [vmem:[%s2 + $0x2a8] sm:$0xff] %vm4689, %v2556
  %4776 = vst.msk [vmem:[%s2 + $0x2b0] sm:$0xff] %vm4689, %v2561
  %4777 = vst.msk [vmem:[%s2 + $0x2b8] sm:$0xff] %vm4689, %v2566
  %4778 = vst.msk [vmem:[%s2 + $0x2c0] sm:$0xff] %vm4689, %v2571
  %4779 = vst.msk [vmem:[%s2 + $0x2c8] sm:$0xff] %vm4689, %v2576
  %4780 = vst.msk [vmem:[%s2 + $0x2d0] sm:$0xff] %vm4689, %v2581
  %4781 = vst.msk [vmem:[%s2 + $0x2d8] sm:$0xff] %vm4689, %v2586
  %4782 = vst.msk [vmem:[%s2 + $0x2e0] sm:$0xff] %vm4689, %v2591
  %4783 = vst.msk [vmem:[%s2 + $0x2e8] sm:$0xff] %vm4689, %v2596
  %4784 = vst.msk [vmem:[%s2 + $0x2f0] sm:$0xff] %vm4689, %v2601
  %4785 = vst.msk [vmem:[%s2 + $0x2f8] sm:$0xff] %vm4689, %v2606
  %4786 = vst.msk [vmem:[%s2 + $0x300] sm:$0xff] %vm4689, %v2611
  %4787 = vst.msk [vmem:[%s2 + $0x308] sm:$0xff] %vm4689, %v2616
  %4788 = vst.msk [vmem:[%s2 + $0x310] sm:$0xff] %vm4689, %v2621
  %4789 = vst.msk [vmem:[%s2 + $0x318] sm:$0xff] %vm4689, %v2626
  %4790 = vst.msk [vmem:[%s2 + $0x320] sm:$0xff] %vm4689, %v2631
  %4791 = vst.msk [vmem:[%s2 + $0x328] sm:$0xff] %vm4689, %v2636
  %4792 = vst.msk [vmem:[%s2 + $0x330] sm:$0xff] %vm4689, %v2641
  %4793 = vst.msk [vmem:[%s2 + $0x338] sm:$0xff] %vm4689, %v2646
  %4794 = vst.msk [vmem:[%s2 + $0x340] sm:$0xff] %vm4689, %v2651
  %4795 = vst.msk [vmem:[%s2 + $0x348] sm:$0xff] %vm4689, %v2656
  %4796 = vst.msk [vmem:[%s2 + $0x350] sm:$0xff] %vm4689, %v2661
  %4797 = vst.msk [vmem:[%s2 + $0x358] sm:$0xff] %vm4689, %v2666
  %4798 = vst.msk [vmem:[%s2 + $0x360] sm:$0xff] %vm4689, %v2671
  %4799 = vst.msk [vmem:[%s2 + $0x368] sm:$0xff] %vm4689, %v2676
  %4800 = vst.msk [vmem:[%s2 + $0x370] sm:$0xff] %vm4689, %v2681
  %4801 = vst.msk [vmem:[%s2 + $0x378] sm:$0xff] %vm4689, %v2686
  %4802 = vst.msk [vmem:[%s2 + $0x380] sm:$0xff] %vm4689, %v2691
  %4803 = vst.msk [vmem:[%s2 + $0x388] sm:$0xff] %vm4689, %v2696
  %4804 = vst.msk [vmem:[%s2 + $0x390] sm:$0xff] %vm4689, %v2701
  %4805 = vst.msk [vmem:[%s2 + $0x398] sm:$0xff] %vm4689, %v2706
  %4806 = vst.msk [vmem:[%s2 + $0x3a0] sm:$0xff] %vm4689, %v2711
  %4807 = vst.msk [vmem:[%s2 + $0x3a8] sm:$0xff] %vm4689, %v2716
  %4808 = vst.msk [vmem:[%s2 + $0x3b0] sm:$0xff] %vm4689, %v2721
  %4809 = vst.msk [vmem:[%s2 + $0x3b8] sm:$0xff] %vm4689, %v2726
  %4810 = vst.msk [vmem:[%s2 + $0x3c0] sm:$0xff] %vm4689, %v2731
  %4811 = vst.msk [vmem:[%s2 + $0x3c8] sm:$0xff] %vm4689, %v2736
  %4812 = vst.msk [vmem:[%s2 + $0x3d0] sm:$0xff] %vm4689, %v2741
  %4813 = vst.msk [vmem:[%s2 + $0x3d8] sm:$0xff] %vm4689, %v2746
  %4814 = vst.msk [vmem:[%s2 + $0x3e0] sm:$0xff] %vm4689, %v2751
  %4815 = vst.msk [vmem:[%s2 + $0x3e8] sm:$0xff] %vm4689, %v2756
  %4816 = vst.msk [vmem:[%s2 + $0x3f0] sm:$0xff] %vm4689, %v2761
  %4817 = vst.msk [vmem:[%s2 + $0x3f8] sm:$0xff] %vm4689, %v2766
  %4818 = vst.msk [vmem:[%s2 + $0x400] sm:$0xff] %vm4689, %v2771
  %4819 = vst.msk [vmem:[%s2 + $0x408] sm:$0xff] %vm4689, %v2776
  %4820 = vst.msk [vmem:[%s2 + $0x410] sm:$0xff] %vm4689, %v2781
  %4821 = vst.msk [vmem:[%s2 + $0x418] sm:$0xff] %vm4689, %v2786
  %4822 = vst.msk [vmem:[%s2 + $0x420] sm:$0xff] %vm4689, %v2791
  %4823 = vst.msk [vmem:[%s2 + $0x428] sm:$0xff] %vm4689, %v2796
  %4824 = vst.msk [vmem:[%s2 + $0x430] sm:$0xff] %vm4689, %v2801
  %4825 = vst.msk [vmem:[%s2 + $0x438] sm:$0xff] %vm4689, %v2806
  %4826 = vst.msk [vmem:[%s2 + $0x440] sm:$0xff] %vm4689, %v2811
  %4827 = vst.msk [vmem:[%s2 + $0x448] sm:$0xff] %vm4689, %v2816
  %4828 = vst.msk [vmem:[%s2 + $0x450] sm:$0xff] %vm4689, %v2821
  %4829 = vst.msk [vmem:[%s2 + $0x458] sm:$0xff] %vm4689, %v2826
  %4830 = vst.msk [vmem:[%s2 + $0x460] sm:$0xff] %vm4689, %v2831
  %4831 = vst.msk [vmem:[%s2 + $0x468] sm:$0xff] %vm4689, %v2836
  %4832 = vst.msk [vmem:[%s2 + $0x470] sm:$0xff] %vm4689, %v2841
  %4833 = vst.msk [vmem:[%s2 + $0x478] sm:$0xff] %vm4689, %v2846
  %4834 = vst.msk [vmem:[%s2 + $0x480] sm:$0xff] %vm4689, %v2851
  %4835 = vst.msk [vmem:[%s2 + $0x488] sm:$0xff] %vm4689, %v2856
  %4836 = vst.msk [vmem:[%s2 + $0x490] sm:$0xff] %vm4689, %v2861
  %4837 = vst.msk [vmem:[%s2 + $0x498] sm:$0xff] %vm4689, %v2866
  %4838 = vst.msk [vmem:[%s2 + $0x4a0] sm:$0xff] %vm4689, %v2871
  %4839 = vst.msk [vmem:[%s2 + $0x4a8] sm:$0xff] %vm4689, %v2876
  %4840 = vst.msk [vmem:[%s2 + $0x4b0] sm:$0xff] %vm4689, %v2881
  %4841 = vst.msk [vmem:[%s2 + $0x4b8] sm:$0xff] %vm4689, %v2886
  %4842 = vst.msk [vmem:[%s2 + $0x4c0] sm:$0xff] %vm4689, %v2891
  %4843 = vst.msk [vmem:[%s2 + $0x4c8] sm:$0xff] %vm4689, %v2896
  %4844 = vst.msk [vmem:[%s2 + $0x4d0] sm:$0xff] %vm4689, %v2901
  %4845 = vst.msk [vmem:[%s2 + $0x4d8] sm:$0xff] %vm4689, %v2906
  %4846 = vst.msk [vmem:[%s2 + $0x4e0] sm:$0xff] %vm4689, %v2911
  %4847 = vst.msk [vmem:[%s2 + $0x4e8] sm:$0xff] %vm4689, %v2916
  %4848 = vst.msk [vmem:[%s2 + $0x4f0] sm:$0xff] %vm4689, %v2921
  %4849 = vst.msk [vmem:[%s2 + $0x4f8] sm:$0xff] %vm4689, %v2926
  %4850 = vst.msk [vmem:[%s2 + $0x500] sm:$0xff] %vm4689, %v2931
  %4851 = vst.msk [vmem:[%s2 + $0x508] sm:$0xff] %vm4689, %v2936
  %4852 = vst.msk [vmem:[%s2 + $0x510] sm:$0xff] %vm4689, %v2941
  %4853 = vst.msk [vmem:[%s2 + $0x518] sm:$0xff] %vm4689, %v2946
  %4854 = vst.msk [vmem:[%s2 + $0x520] sm:$0xff] %vm4689, %v2951
  %4855 = vst.msk [vmem:[%s2 + $0x528] sm:$0xff] %vm4689, %v2956
  %4856 = vst.msk [vmem:[%s2 + $0x530] sm:$0xff] %vm4689, %v2961
  %4857 = vst.msk [vmem:[%s2 + $0x538] sm:$0xff] %vm4689, %v2966
  %4858 = vst.msk [vmem:[%s2 + $0x540] sm:$0xff] %vm4689, %v2971
  %4859 = vst.msk [vmem:[%s2 + $0x548] sm:$0xff] %vm4689, %v2976
  %4860 = vst.msk [vmem:[%s2 + $0x550] sm:$0xff] %vm4689, %v2981
  %4861 = vst.msk [vmem:[%s2 + $0x558] sm:$0xff] %vm4689, %v2986
  %4862 = vst.msk [vmem:[%s2 + $0x560] sm:$0xff] %vm4689, %v2991
  %4863 = vst.msk [vmem:[%s2 + $0x568] sm:$0xff] %vm4689, %v2996
  %4864 = vst.msk [vmem:[%s2 + $0x570] sm:$0xff] %vm4689, %v3001
  %4865 = vst.msk [vmem:[%s2 + $0x578] sm:$0xff] %vm4689, %v3006
  %4866 = vst.msk [vmem:[%s2 + $0x580] sm:$0xff] %vm4689, %v3011
  %4867 = vst.msk [vmem:[%s2 + $0x588] sm:$0xff] %vm4689, %v3016
  %4868 = vst.msk [vmem:[%s2 + $0x590] sm:$0xff] %vm4689, %v3021
  %4869 = vst.msk [vmem:[%s2 + $0x598] sm:$0xff] %vm4689, %v3026
  %4870 = vst.msk [vmem:[%s2 + $0x5a0] sm:$0xff] %vm4689, %v3031
  %4871 = vst.msk [vmem:[%s2 + $0x5a8] sm:$0xff] %vm4689, %v3036
  %4872 = vst.msk [vmem:[%s2 + $0x5b0] sm:$0xff] %vm4689, %v3041
  %4873 = vst.msk [vmem:[%s2 + $0x5b8] sm:$0xff] %vm4689, %v3046
  %4874 = vst.msk [vmem:[%s2 + $0x5c0] sm:$0xff] %vm4689, %v3051
  %4875 = vst.msk [vmem:[%s2 + $0x5c8] sm:$0xff] %vm4689, %v3056
  %4876 = vst.msk [vmem:[%s2 + $0x5d0] sm:$0xff] %vm4689, %v3061
  %4877 = vst.msk [vmem:[%s2 + $0x5d8] sm:$0xff] %vm4689, %v3066
  %4878 = vst.msk [vmem:[%s2 + $0x5e0] sm:$0xff] %vm4689, %v3071
  %4879 = vst.msk [vmem:[%s2 + $0x5e8] sm:$0xff] %vm4689, %v3076
  %4880 = vst.msk [vmem:[%s2 + $0x5f0] sm:$0xff] %vm4689, %v3081
  %4881 = vst.msk [vmem:[%s2 + $0x5f8] sm:$0xff] %vm4689, %v3086
  %4882 = vst.msk [vmem:[%s2 + $0x600] sm:$0xff] %vm4689, %v3091
  %4883 = vst.msk [vmem:[%s2 + $0x608] sm:$0xff] %vm4689, %v3096
  %4884 = vst.msk [vmem:[%s2 + $0x610] sm:$0xff] %vm4689, %v3101
  %4885 = vst.msk [vmem:[%s2 + $0x618] sm:$0xff] %vm4689, %v3106
  %4886 = vst.msk [vmem:[%s2 + $0x620] sm:$0xff] %vm4689, %v3111
  %4887 = vst.msk [vmem:[%s2 + $0x628] sm:$0xff] %vm4689, %v3116
  %4888 = vst.msk [vmem:[%s2 + $0x630] sm:$0xff] %vm4689, %v3121
  %4889 = vst.msk [vmem:[%s2 + $0x638] sm:$0xff] %vm4689, %v3126
  %4890 = vst.msk [vmem:[%s2 + $0x640] sm:$0xff] %vm4689, %v3131
  %4891 = vst.msk [vmem:[%s2 + $0x648] sm:$0xff] %vm4689, %v3136
  %4892 = vst.msk [vmem:[%s2 + $0x650] sm:$0xff] %vm4689, %v3141
  %4893 = vst.msk [vmem:[%s2 + $0x658] sm:$0xff] %vm4689, %v3146
  %4894 = vst.msk [vmem:[%s2 + $0x660] sm:$0xff] %vm4689, %v3151
  %4895 = vst.msk [vmem:[%s2 + $0x668] sm:$0xff] %vm4689, %v3156
  %4896 = vst.msk [vmem:[%s2 + $0x670] sm:$0xff] %vm4689, %v3161
  %4897 = vst.msk [vmem:[%s2 + $0x678] sm:$0xff] %vm4689, %v3166
  %4898 = vst.msk [vmem:[%s2 + $0x680] sm:$0xff] %vm4689, %v3171
  %4899 = vst.msk [vmem:[%s2 + $0x688] sm:$0xff] %vm4689, %v3176
  %4900 = vst.msk [vmem:[%s2 + $0x690] sm:$0xff] %vm4689, %v3181
  %4901 = vst.msk [vmem:[%s2 + $0x698] sm:$0xff] %vm4689, %v3186
  %4902 = vst.msk [vmem:[%s2 + $0x6a0] sm:$0xff] %vm4689, %v3191
  %4903 = vst.msk [vmem:[%s2 + $0x6a8] sm:$0xff] %vm4689, %v3196
  %4904 = vst.msk [vmem:[%s2 + $0x6b0] sm:$0xff] %vm4689, %v3201
  %4905 = vst.msk [vmem:[%s2 + $0x6b8] sm:$0xff] %vm4689, %v3206
  %4906 = vst.msk [vmem:[%s2 + $0x6c0] sm:$0xff] %vm4689, %v3211
  %4907 = vst.msk [vmem:[%s2 + $0x6c8] sm:$0xff] %vm4689, %v3216
  %4908 = vst.msk [vmem:[%s2 + $0x6d0] sm:$0xff] %vm4689, %v3221
  %4909 = vst.msk [vmem:[%s2 + $0x6d8] sm:$0xff] %vm4689, %v3226
  %4910 = vst.msk [vmem:[%s2 + $0x6e0] sm:$0xff] %vm4689, %v3231
  %4911 = vst.msk [vmem:[%s2 + $0x6e8] sm:$0xff] %vm4689, %v3236
  %4912 = vst.msk [vmem:[%s2 + $0x6f0] sm:$0xff] %vm4689, %v3241
  %4913 = vst.msk [vmem:[%s2 + $0x6f8] sm:$0xff] %vm4689, %v3246
  %4914 = vst.msk [vmem:[%s2 + $0x700] sm:$0xff] %vm4689, %v3251
  %4915 = vst.msk [vmem:[%s2 + $0x708] sm:$0xff] %vm4689, %v3256
  %4916 = vst.msk [vmem:[%s2 + $0x710] sm:$0xff] %vm4689, %v3261
  %4917 = vst.msk [vmem:[%s2 + $0x718] sm:$0xff] %vm4689, %v3266
  %4918 = vst.msk [vmem:[%s2 + $0x720] sm:$0xff] %vm4689, %v3271
  %4919 = vst.msk [vmem:[%s2 + $0x728] sm:$0xff] %vm4689, %v3276
  %4920 = vst.msk [vmem:[%s2 + $0x730] sm:$0xff] %vm4689, %v3281
  %4921 = vst.msk [vmem:[%s2 + $0x738] sm:$0xff] %vm4689, %v3286
  %4922 = vst.msk [vmem:[%s2 + $0x740] sm:$0xff] %vm4689, %v3291
  %4923 = vst.msk [vmem:[%s2 + $0x748] sm:$0xff] %vm4689, %v3296
  %4924 = vst.msk [vmem:[%s2 + $0x750] sm:$0xff] %vm4689, %v3301
  %4925 = vst.msk [vmem:[%s2 + $0x758] sm:$0xff] %vm4689, %v3306
  %4926 = vst.msk [vmem:[%s2 + $0x760] sm:$0xff] %vm4689, %v3311
  %4927 = vst.msk [vmem:[%s2 + $0x768] sm:$0xff] %vm4689, %v3316
  %4928 = vst.msk [vmem:[%s2 + $0x770] sm:$0xff] %vm4689, %v3321
  %4929 = vst.msk [vmem:[%s2 + $0x778] sm:$0xff] %vm4689, %v3326
  %4930 = vst.msk [vmem:[%s2 + $0x780] sm:$0xff] %vm4689, %v3331
  %4931 = vst.msk [vmem:[%s2 + $0x788] sm:$0xff] %vm4689, %v3336
  %4932 = vst.msk [vmem:[%s2 + $0x790] sm:$0xff] %vm4689, %v3341
  %4933 = vst.msk [vmem:[%s2 + $0x798] sm:$0xff] %vm4689, %v3346
  %4934 = vst.msk [vmem:[%s2 + $0x7a0] sm:$0xff] %vm4689, %v3351
  %4935 = vst.msk [vmem:[%s2 + $0x7a8] sm:$0xff] %vm4689, %v3356
  %4936 = vst.msk [vmem:[%s2 + $0x7b0] sm:$0xff] %vm4689, %v3361
  %4937 = vst.msk [vmem:[%s2 + $0x7b8] sm:$0xff] %vm4689, %v3366
  %4938 = vst.msk [vmem:[%s2 + $0x7c0] sm:$0xff] %vm4689, %v3371
  %4939 = vst.msk [vmem:[%s2 + $0x7c8] sm:$0xff] %vm4689, %v3376
  %4940 = vst.msk [vmem:[%s2 + $0x7d0] sm:$0xff] %vm4689, %v3381
  %4941 = vst.msk [vmem:[%s2 + $0x7d8] sm:$0xff] %vm4689, %v3386
  %4942 = vst.msk [vmem:[%s2 + $0x7e0] sm:$0xff] %vm4689, %v3391
  %4943 = vst.msk [vmem:[%s2 + $0x7e8] sm:$0xff] %vm4689, %v3396
  %4944 = vst.msk [vmem:[%s2 + $0x7f0] sm:$0xff] %vm4689, %v3401
  %4945 = vst.msk [vmem:[%s2 + $0x7f8] sm:$0xff] %vm4689, %v3406
  %4946 = vst.msk [vmem:[%s2 + $0x800] sm:$0xff] %vm4689, %v3411
  %4947 = vst.msk [vmem:[%s2 + $0x808] sm:$0xff] %vm4689, %v3416
  %4948 = vst.msk [vmem:[%s2 + $0x810] sm:$0xff] %vm4689, %v3421
  %4949 = vst.msk [vmem:[%s2 + $0x818] sm:$0xff] %vm4689, %v3426
  %4950 = vst.msk [vmem:[%s2 + $0x820] sm:$0xff] %vm4689, %v3431
  %4951 = vst.msk [vmem:[%s2 + $0x828] sm:$0xff] %vm4689, %v3436
  %4952 = vst.msk [vmem:[%s2 + $0x830] sm:$0xff] %vm4689, %v3441
  %4953 = vst.msk [vmem:[%s2 + $0x838] sm:$0xff] %vm4689, %v3446
  %4954 = vst.msk [vmem:[%s2 + $0x840] sm:$0xff] %vm4689, %v3451
  %4955 = vst.msk [vmem:[%s2 + $0x848] sm:$0xff] %vm4689, %v3456
  %4956 = vst.msk [vmem:[%s2 + $0x850] sm:$0xff] %vm4689, %v3461
  %4957 = vst.msk [vmem:[%s2 + $0x858] sm:$0xff] %vm4689, %v3466
  %4958 = vst.msk [vmem:[%s2 + $0x860] sm:$0xff] %vm4689, %v3471
  %4959 = vst.msk [vmem:[%s2 + $0x868] sm:$0xff] %vm4689, %v3476
  %4960 = vst.msk [vmem:[%s2 + $0x870] sm:$0xff] %vm4689, %v3481
  %4961 = vst.msk [vmem:[%s2 + $0x878] sm:$0xff] %vm4689, %v3486
  %4962 = vst.msk [vmem:[%s2 + $0x880] sm:$0xff] %vm4689, %v3491
  %4963 = vst.msk [vmem:[%s2 + $0x888] sm:$0xff] %vm4689, %v3496
  %4964 = vst.msk [vmem:[%s2 + $0x890] sm:$0xff] %vm4689, %v3501
  %4965 = vst.msk [vmem:[%s2 + $0x898] sm:$0xff] %vm4689, %v3506
  %4966 = vst.msk [vmem:[%s2 + $0x8a0] sm:$0xff] %vm4689, %v3511
  %4967 = vst.msk [vmem:[%s2 + $0x8a8] sm:$0xff] %vm4689, %v3516
  %4968 = vst.msk [vmem:[%s2 + $0x8b0] sm:$0xff] %vm4689, %v3521
  %4969 = vst.msk [vmem:[%s2 + $0x8b8] sm:$0xff] %vm4689, %v3526
  %4970 = vst.msk [vmem:[%s2 + $0x8c0] sm:$0xff] %vm4689, %v3531
  %4971 = vst.msk [vmem:[%s2 + $0x8c8] sm:$0xff] %vm4689, %v3536
  %4972 = vst.msk [vmem:[%s2 + $0x8d0] sm:$0xff] %vm4689, %v3541
  %4973 = vst.msk [vmem:[%s2 + $0x8d8] sm:$0xff] %vm4689, %v3546
  %4974 = vst.msk [vmem:[%s2 + $0x8e0] sm:$0xff] %vm4689, %v3551
  %4975 = vst.msk [vmem:[%s2 + $0x8e8] sm:$0xff] %vm4689, %v3556
  %4976 = vst.msk [vmem:[%s2 + $0x8f0] sm:$0xff] %vm4689, %v3561
  %4977 = vst.msk [vmem:[%s2 + $0x8f8] sm:$0xff] %vm4689, %v3566
  %4978 = vst.msk [vmem:[%s2 + $0x900] sm:$0xff] %vm4689, %v3571
  %4979 = vst.msk [vmem:[%s2 + $0x908] sm:$0xff] %vm4689, %v3576
  %4980 = vst.msk [vmem:[%s2 + $0x910] sm:$0xff] %vm4689, %v3581
  %4981 = vst.msk [vmem:[%s2 + $0x918] sm:$0xff] %vm4689, %v3586
  %4982 = vst.msk [vmem:[%s2 + $0x920] sm:$0xff] %vm4689, %v3591
  %4983 = vst.msk [vmem:[%s2 + $0x928] sm:$0xff] %vm4689, %v3596
  %4984 = vst.msk [vmem:[%s2 + $0x930] sm:$0xff] %vm4689, %v3601
  %4985 = vst.msk [vmem:[%s2 + $0x938] sm:$0xff] %vm4689, %v3606
  %4986 = vst.msk [vmem:[%s2 + $0x940] sm:$0xff] %vm4689, %v3611
  %4987 = vst.msk [vmem:[%s2 + $0x948] sm:$0xff] %vm4689, %v3616
  %4988 = vst.msk [vmem:[%s2 + $0x950] sm:$0xff] %vm4689, %v3621
  %4989 = vst.msk [vmem:[%s2 + $0x958] sm:$0xff] %vm4689, %v3626
  %4990 = vst.msk [vmem:[%s2 + $0x960] sm:$0xff] %vm4689, %v3631
  %4991 = vst.msk [vmem:[%s2 + $0x968] sm:$0xff] %vm4689, %v3636
  %4992 = vst.msk [vmem:[%s2 + $0x970] sm:$0xff] %vm4689, %v3641
  %4993 = vst.msk [vmem:[%s2 + $0x978] sm:$0xff] %vm4689, %v3646
  %4994 = vst.msk [vmem:[%s2 + $0x980] sm:$0xff] %vm4689, %v3651
  %4995 = vst.msk [vmem:[%s2 + $0x988] sm:$0xff] %vm4689, %v3656
  %4996 = vst.msk [vmem:[%s2 + $0x990] sm:$0xff] %vm4689, %v3661
  %4997 = vst.msk [vmem:[%s2 + $0x998] sm:$0xff] %vm4689, %v3666
  %4998 = vst.msk [vmem:[%s2 + $0x9a0] sm:$0xff] %vm4689, %v3671
  %4999 = vst.msk [vmem:[%s2 + $0x9a8] sm:$0xff] %vm4689, %v3676
  %5000 = vst.msk [vmem:[%s2 + $0x9b0] sm:$0xff] %vm4689, %v3681
  %5001 = vst.msk [vmem:[%s2 + $0x9b8] sm:$0xff] %vm4689, %v3686
  %5002 = vst.msk [vmem:[%s2 + $0x9c0] sm:$0xff] %vm4689, %v3691
  %5003 = vst.msk [vmem:[%s2 + $0x9c8] sm:$0xff] %vm4689, %v3696
  %5004 = vst.msk [vmem:[%s2 + $0x9d0] sm:$0xff] %vm4689, %v3701
  %5005 = vst.msk [vmem:[%s2 + $0x9d8] sm:$0xff] %vm4689, %v3706
  %5006 = vst.msk [vmem:[%s2 + $0x9e0] sm:$0xff] %vm4689, %v3711
  %5007 = vst.msk [vmem:[%s2 + $0x9e8] sm:$0xff] %vm4689, %v3716
  %5008 = vst.msk [vmem:[%s2 + $0x9f0] sm:$0xff] %vm4689, %v3721
  %5009 = vst.msk [vmem:[%s2 + $0x9f8] sm:$0xff] %vm4689, %v3726
  %5010 = vst.msk [vmem:[%s2 + $0xa00] sm:$0xff] %vm4689, %v3731
  %5011 = vst.msk [vmem:[%s2 + $0xa08] sm:$0xff] %vm4689, %v3736
  %5012 = vst.msk [vmem:[%s2 + $0xa10] sm:$0xff] %vm4689, %v3741
  %5013 = vst.msk [vmem:[%s2 + $0xa18] sm:$0xff] %vm4689, %v3746
  %5014 = vst.msk [vmem:[%s2 + $0xa20] sm:$0xff] %vm4689, %v3751
  %5015 = vst.msk [vmem:[%s2 + $0xa28] sm:$0xff] %vm4689, %v3756
  %5016 = vst.msk [vmem:[%s2 + $0xa30] sm:$0xff] %vm4689, %v3761
  %5017 = vst.msk [vmem:[%s2 + $0xa38] sm:$0xff] %vm4689, %v3766
  %5018 = vst.msk [vmem:[%s2 + $0xa40] sm:$0xff] %vm4689, %v3771
  %5019 = vst.msk [vmem:[%s2 + $0xa48] sm:$0xff] %vm4689, %v3776
  %5020 = vst.msk [vmem:[%s2 + $0xa50] sm:$0xff] %vm4689, %v3781
  %5021 = vst.msk [vmem:[%s2 + $0xa58] sm:$0xff] %vm4689, %v3786
  %5022 = vst.msk [vmem:[%s2 + $0xa60] sm:$0xff] %vm4689, %v3791
  %5023 = vst.msk [vmem:[%s2 + $0xa68] sm:$0xff] %vm4689, %v3796
  %5024 = vst.msk [vmem:[%s2 + $0xa70] sm:$0xff] %vm4689, %v3801
  %5025 = vst.msk [vmem:[%s2 + $0xa78] sm:$0xff] %vm4689, %v3806
  %5026 = vst.msk [vmem:[%s2 + $0xa80] sm:$0xff] %vm4689, %v3811
  %5027 = vst.msk [vmem:[%s2 + $0xa88] sm:$0xff] %vm4689, %v3816
  %5028 = vst.msk [vmem:[%s2 + $0xa90] sm:$0xff] %vm4689, %v3821
  %5029 = vst.msk [vmem:[%s2 + $0xa98] sm:$0xff] %vm4689, %v3826
  %5030 = vst.msk [vmem:[%s2 + $0xaa0] sm:$0xff] %vm4689, %v3831
  %5031 = vst.msk [vmem:[%s2 + $0xaa8] sm:$0xff] %vm4689, %v3836
  %5032 = vst.msk [vmem:[%s2 + $0xab0] sm:$0xff] %vm4689, %v3841
  %5033 = vst.msk [vmem:[%s2 + $0xab8] sm:$0xff] %vm4689, %v3846
  %5034 = vst.msk [vmem:[%s2 + $0xac0] sm:$0xff] %vm4689, %v3851
  %5035 = vst.msk [vmem:[%s2 + $0xac8] sm:$0xff] %vm4689, %v3856
  %5036 = vst.msk [vmem:[%s2 + $0xad0] sm:$0xff] %vm4689, %v3861
  %5037 = vst.msk [vmem:[%s2 + $0xad8] sm:$0xff] %vm4689, %v3866
  %5038 = vst.msk [vmem:[%s2 + $0xae0] sm:$0xff] %vm4689, %v3871
  %5039 = vst.msk [vmem:[%s2 + $0xae8] sm:$0xff] %vm4689, %v3876
  %5040 = vst.msk [vmem:[%s2 + $0xaf0] sm:$0xff] %vm4689, %v3881
  %5041 = vst.msk [vmem:[%s2 + $0xaf8] sm:$0xff] %vm4689, %v3886
  %5042 = vst.msk [vmem:[%s2 + $0xb00] sm:$0xff] %vm4689, %v3891
  %5043 = vst.msk [vmem:[%s2 + $0xb08] sm:$0xff] %vm4689, %v3896
  %5044 = vst.msk [vmem:[%s2 + $0xb10] sm:$0xff] %vm4689, %v3901
  %5045 = vst.msk [vmem:[%s2 + $0xb18] sm:$0xff] %vm4689, %v3906
  %5046 = vst.msk [vmem:[%s2 + $0xb20] sm:$0xff] %vm4689, %v3911
  %5047 = vst.msk [vmem:[%s2 + $0xb28] sm:$0xff] %vm4689, %v3916
  %5048 = vst.msk [vmem:[%s2 + $0xb30] sm:$0xff] %vm4689, %v3921
  %5049 = vst.msk [vmem:[%s2 + $0xb38] sm:$0xff] %vm4689, %v3926
  %5050 = vst.msk [vmem:[%s2 + $0xb40] sm:$0xff] %vm4689, %v3931
  %5051 = vst.msk [vmem:[%s2 + $0xb48] sm:$0xff] %vm4689, %v3936
  %5052 = vst.msk [vmem:[%s2 + $0xb50] sm:$0xff] %vm4689, %v3941
  %5053 = vst.msk [vmem:[%s2 + $0xb58] sm:$0xff] %vm4689, %v3946
  %5054 = vst.msk [vmem:[%s2 + $0xb60] sm:$0xff] %vm4689, %v3951
  %5055 = vst.msk [vmem:[%s2 + $0xb68] sm:$0xff] %vm4689, %v3956
  %5056 = vst.msk [vmem:[%s2 + $0xb70] sm:$0xff] %vm4689, %v3961
  %5057 = vst.msk [vmem:[%s2 + $0xb78] sm:$0xff] %vm4689, %v3966
  %5058 = vst.msk [vmem:[%s2 + $0xb80] sm:$0xff] %vm4689, %v3971
  %5059 = vst.msk [vmem:[%s2 + $0xb88] sm:$0xff] %vm4689, %v3976
  %5060 = vst.msk [vmem:[%s2 + $0xb90] sm:$0xff] %vm4689, %v3981
  %5061 = vst.msk [vmem:[%s2 + $0xb98] sm:$0xff] %vm4689, %v3986
  %5062 = vst.msk [vmem:[%s2 + $0xba0] sm:$0xff] %vm4689, %v3991
  %5063 = vst.msk [vmem:[%s2 + $0xba8] sm:$0xff] %vm4689, %v3996
  %5064 = vst.msk [vmem:[%s2 + $0xbb0] sm:$0xff] %vm4689, %v4001
  %5065 = vst.msk [vmem:[%s2 + $0xbb8] sm:$0xff] %vm4689, %v4006
  %5066 = vst.msk [vmem:[%s2 + $0xbc0] sm:$0xff] %vm4689, %v4011
  %5067 = vst.msk [vmem:[%s2 + $0xbc8] sm:$0xff] %vm4689, %v4016
  %5068 = vst.msk [vmem:[%s2 + $0xbd0] sm:$0xff] %vm4689, %v4021
  %5069 = vst.msk [vmem:[%s2 + $0xbd8] sm:$0xff] %vm4689, %v4026
  %5070 = vst.msk [vmem:[%s2 + $0xbe0] sm:$0xff] %vm4689, %v4031
  %5071 = vst.msk [vmem:[%s2 + $0xbe8] sm:$0xff] %vm4689, %v4036
  %5072 = vst.msk [vmem:[%s2 + $0xbf0] sm:$0xff] %vm4689, %v4041
  %5073 = vst.msk [vmem:[%s2 + $0xbf8] sm:$0xff] %vm4689, %v4046
  %5074 = vst.msk [vmem:[%s2 + $0xc00] sm:$0xff] %vm4689, %v4051
  %5075 = vst.msk [vmem:[%s2 + $0xc08] sm:$0xff] %vm4689, %v4056
  %5076 = vst.msk [vmem:[%s2 + $0xc10] sm:$0xff] %vm4689, %v4061
  %5077 = vst.msk [vmem:[%s2 + $0xc18] sm:$0xff] %vm4689, %v4066
  %5078 = vst.msk [vmem:[%s2 + $0xc20] sm:$0xff] %vm4689, %v4071
  %5079 = vst.msk [vmem:[%s2 + $0xc28] sm:$0xff] %vm4689, %v4076
  %5080 = vst.msk [vmem:[%s2 + $0xc30] sm:$0xff] %vm4689, %v4081
  %5081 = vst.msk [vmem:[%s2 + $0xc38] sm:$0xff] %vm4689, %v4086
  %5082 = vst.msk [vmem:[%s2 + $0xc40] sm:$0xff] %vm4689, %v4091
  %5083 = vst.msk [vmem:[%s2 + $0xc48] sm:$0xff] %vm4689, %v4096
  %5084 = vst.msk [vmem:[%s2 + $0xc50] sm:$0xff] %vm4689, %v4101
  %5085 = vst.msk [vmem:[%s2 + $0xc58] sm:$0xff] %vm4689, %v4106
  %5086 = vst.msk [vmem:[%s2 + $0xc60] sm:$0xff] %vm4689, %v4111
  %5087 = vst.msk [vmem:[%s2 + $0xc68] sm:$0xff] %vm4689, %v4116
  %5088 = vst.msk [vmem:[%s2 + $0xc70] sm:$0xff] %vm4689, %v4121
  %5089 = vst.msk [vmem:[%s2 + $0xc78] sm:$0xff] %vm4689, %v4126
  %5090 = vst.msk [vmem:[%s2 + $0xc80] sm:$0xff] %vm4689, %v4131
  %5091 = vst.msk [vmem:[%s2 + $0xc88] sm:$0xff] %vm4689, %v4136
  %5092 = vst.msk [vmem:[%s2 + $0xc90] sm:$0xff] %vm4689, %v4141
  %5093 = vst.msk [vmem:[%s2 + $0xc98] sm:$0xff] %vm4689, %v4146
  %5094 = vst.msk [vmem:[%s2 + $0xca0] sm:$0xff] %vm4689, %v4151
  %5095 = vst.msk [vmem:[%s2 + $0xca8] sm:$0xff] %vm4689, %v4156
  %5096 = vst.msk [vmem:[%s2 + $0xcb0] sm:$0xff] %vm4689, %v4161
  %5097 = vst.msk [vmem:[%s2 + $0xcb8] sm:$0xff] %vm4689, %v4166
  %5098 = vst.msk [vmem:[%s2 + $0xcc0] sm:$0xff] %vm4689, %v4171
  %5099 = vst.msk [vmem:[%s2 + $0xcc8] sm:$0xff] %vm4689, %v4176
  %5100 = vst.msk [vmem:[%s2 + $0xcd0] sm:$0xff] %vm4689, %v4181
  %5101 = vst.msk [vmem:[%s2 + $0xcd8] sm:$0xff] %vm4689, %v4186
  %5102 = vst.msk [vmem:[%s2 + $0xce0] sm:$0xff] %vm4689, %v4191
  %5103 = vst.msk [vmem:[%s2 + $0xce8] sm:$0xff] %vm4689, %v4196
  %5104 = vst.msk [vmem:[%s2 + $0xcf0] sm:$0xff] %vm4689, %v4201
  %5105 = vst.msk [vmem:[%s2 + $0xcf8] sm:$0xff] %vm4689, %v4206
  %5106 = vst.msk [vmem:[%s2 + $0xd00] sm:$0xff] %vm4689, %v4211
  %5107 = vst.msk [vmem:[%s2 + $0xd08] sm:$0xff] %vm4689, %v4216
  %5108 = vst.msk [vmem:[%s2 + $0xd10] sm:$0xff] %vm4689, %v4221
  %5109 = vst.msk [vmem:[%s2 + $0xd18] sm:$0xff] %vm4689, %v4226
  %5110 = vst.msk [vmem:[%s2 + $0xd20] sm:$0xff] %vm4689, %v4231
  %5111 = vst.msk [vmem:[%s2 + $0xd28] sm:$0xff] %vm4689, %v4236
  %5112 = vst.msk [vmem:[%s2 + $0xd30] sm:$0xff] %vm4689, %v4241
  %5113 = vst.msk [vmem:[%s2 + $0xd38] sm:$0xff] %vm4689, %v4246
  %5114 = vst.msk [vmem:[%s2 + $0xd40] sm:$0xff] %vm4689, %v4251
  %5115 = vst.msk [vmem:[%s2 + $0xd48] sm:$0xff] %vm4689, %v4256
  %5116 = vst.msk [vmem:[%s2 + $0xd50] sm:$0xff] %vm4689, %v4261
  %5117 = vst.msk [vmem:[%s2 + $0xd58] sm:$0xff] %vm4689, %v4266
  %5118 = vst.msk [vmem:[%s2 + $0xd60] sm:$0xff] %vm4689, %v4271
  %5119 = vst.msk [vmem:[%s2 + $0xd68] sm:$0xff] %vm4689, %v4276
  %5120 = vst.msk [vmem:[%s2 + $0xd70] sm:$0xff] %vm4689, %v4281
  %5121 = vst.msk [vmem:[%s2 + $0xd78] sm:$0xff] %vm4689, %v4286
  %5122 = vst.msk [vmem:[%s2 + $0xd80] sm:$0xff] %vm4689, %v4291
  %5123 = vst.msk [vmem:[%s2 + $0xd88] sm:$0xff] %vm4689, %v4296
  %5124 = vst.msk [vmem:[%s2 + $0xd90] sm:$0xff] %vm4689, %v4301
  %5125 = vst.msk [vmem:[%s2 + $0xd98] sm:$0xff] %vm4689, %v4306
  %5126 = vst.msk [vmem:[%s2 + $0xda0] sm:$0xff] %vm4689, %v4311
  %5127 = vst.msk [vmem:[%s2 + $0xda8] sm:$0xff] %vm4689, %v4316
  %5128 = vst.msk [vmem:[%s2 + $0xdb0] sm:$0xff] %vm4689, %v4321
  %5129 = vst.msk [vmem:[%s2 + $0xdb8] sm:$0xff] %vm4689, %v4326
  %5130 = vst.msk [vmem:[%s2 + $0xdc0] sm:$0xff] %vm4689, %v4331
  %5131 = vst.msk [vmem:[%s2 + $0xdc8] sm:$0xff] %vm4689, %v4336
  %5132 = vst.msk [vmem:[%s2 + $0xdd0] sm:$0xff] %vm4689, %v4341
  %5133 = vst.msk [vmem:[%s2 + $0xdd8] sm:$0xff] %vm4689, %v4346
  %5134 = vst.msk [vmem:[%s2 + $0xde0] sm:$0xff] %vm4689, %v4351
  %5135 = vst.msk [vmem:[%s2 + $0xde8] sm:$0xff] %vm4689, %v4356
  %5136 = vst.msk [vmem:[%s2 + $0xdf0] sm:$0xff] %vm4689, %v4361
  %5137 = vst.msk [vmem:[%s2 + $0xdf8] sm:$0xff] %vm4689, %v4366
  %5138 = vst.msk [vmem:[%s2 + $0xe00] sm:$0xff] %vm4689, %v4371
  %5139 = vst.msk [vmem:[%s2 + $0xe08] sm:$0xff] %vm4689, %v4376
  %5140 = vst.msk [vmem:[%s2 + $0xe10] sm:$0xff] %vm4689, %v4381
  %5141 = vst.msk [vmem:[%s2 + $0xe18] sm:$0xff] %vm4689, %v4386
  %5142 = vst.msk [vmem:[%s2 + $0xe20] sm:$0xff] %vm4689, %v4391
  %5143 = vst.msk [vmem:[%s2 + $0xe28] sm:$0xff] %vm4689, %v4396
  %5144 = vst.msk [vmem:[%s2 + $0xe30] sm:$0xff] %vm4689, %v4401
  %5145 = vst.msk [vmem:[%s2 + $0xe38] sm:$0xff] %vm4689, %v4406
  %5146 = vst.msk [vmem:[%s2 + $0xe40] sm:$0xff] %vm4689, %v4411
  %5147 = vst.msk [vmem:[%s2 + $0xe48] sm:$0xff] %vm4689, %v4416
  %5148 = vst.msk [vmem:[%s2 + $0xe50] sm:$0xff] %vm4689, %v4421
  %5149 = vst.msk [vmem:[%s2 + $0xe58] sm:$0xff] %vm4689, %v4426
  %5150 = vst.msk [vmem:[%s2 + $0xe60] sm:$0xff] %vm4689, %v4431
  %5151 = vst.msk [vmem:[%s2 + $0xe68] sm:$0xff] %vm4689, %v4436
  %5152 = vst.msk [vmem:[%s2 + $0xe70] sm:$0xff] %vm4689, %v4441
  %5153 = vst.msk [vmem:[%s2 + $0xe78] sm:$0xff] %vm4689, %v4446
  %5154 = vst.msk [vmem:[%s2 + $0xe80] sm:$0xff] %vm4689, %v4451
  %5155 = vst.msk [vmem:[%s2 + $0xe88] sm:$0xff] %vm4689, %v4456
  %5156 = vst.msk [vmem:[%s2 + $0xe90] sm:$0xff] %vm4689, %v4461
  %5157 = vst.msk [vmem:[%s2 + $0xe98] sm:$0xff] %vm4689, %v4466
  %5158 = vst.msk [vmem:[%s2 + $0xea0] sm:$0xff] %vm4689, %v4471
  %5159 = vst.msk [vmem:[%s2 + $0xea8] sm:$0xff] %vm4689, %v4476
  %5160 = vst.msk [vmem:[%s2 + $0xeb0] sm:$0xff] %vm4689, %v4481
  %5161 = vst.msk [vmem:[%s2 + $0xeb8] sm:$0xff] %vm4689, %v4486
  %5162 = vst.msk [vmem:[%s2 + $0xec0] sm:$0xff] %vm4689, %v4491
  %5163 = vst.msk [vmem:[%s2 + $0xec8] sm:$0xff] %vm4689, %v4496
  %5164 = vst.msk [vmem:[%s2 + $0xed0] sm:$0xff] %vm4689, %v4501
  %5165 = vst.msk [vmem:[%s2 + $0xed8] sm:$0xff] %vm4689, %v4506
  %5166 = vst.msk [vmem:[%s2 + $0xee0] sm:$0xff] %vm4689, %v4511
  %5167 = vst.msk [vmem:[%s2 + $0xee8] sm:$0xff] %vm4689, %v4516
  %5168 = vst.msk [vmem:[%s2 + $0xef0] sm:$0xff] %vm4689, %v4521
  %5169 = vst.msk [vmem:[%s2 + $0xef8] sm:$0xff] %vm4689, %v4526
  %5170 = vst.msk [vmem:[%s2 + $0xf00] sm:$0xff] %vm4689, %v4531
  %5171 = vst.msk [vmem:[%s2 + $0xf08] sm:$0xff] %vm4689, %v4536
  %5172 = vst.msk [vmem:[%s2 + $0xf10] sm:$0xff] %vm4689, %v4541
  %5173 = vst.msk [vmem:[%s2 + $0xf18] sm:$0xff] %vm4689, %v4546
  %5174 = vst.msk [vmem:[%s2 + $0xf20] sm:$0xff] %vm4689, %v4551
  %5175 = vst.msk [vmem:[%s2 + $0xf28] sm:$0xff] %vm4689, %v4556
  %5176 = vst.msk [vmem:[%s2 + $0xf30] sm:$0xff] %vm4689, %v4561
  %5177 = vst.msk [vmem:[%s2 + $0xf38] sm:$0xff] %vm4689, %v4566
  %5178 = vst.msk [vmem:[%s2 + $0xf40] sm:$0xff] %vm4689, %v4571
  %5179 = vst.msk [vmem:[%s2 + $0xf48] sm:$0xff] %vm4689, %v4576
  %5180 = vst.msk [vmem:[%s2 + $0xf50] sm:$0xff] %vm4689, %v4581
  %5181 = vst.msk [vmem:[%s2 + $0xf58] sm:$0xff] %vm4689, %v4586
  %5182 = vst.msk [vmem:[%s2 + $0xf60] sm:$0xff] %vm4689, %v4591
  %5183 = vst.msk [vmem:[%s2 + $0xf68] sm:$0xff] %vm4689, %v4596
  %5184 = vst.msk [vmem:[%s2 + $0xf70] sm:$0xff] %vm4689, %v4601
  %5185 = vst.msk [vmem:[%s2 + $0xf78] sm:$0xff] %vm4689, %v4606
  %5186 = vst.msk [vmem:[%s2 + $0xf80] sm:$0xff] %vm4689, %v4611
  %5187 = vst.msk [vmem:[%s2 + $0xf88] sm:$0xff] %vm4689, %v4616
  %5188 = vst.msk [vmem:[%s2 + $0xf90] sm:$0xff] %vm4689, %v4621
  %5189 = vst.msk [vmem:[%s2 + $0xf98] sm:$0xff] %vm4689, %v4626
  %5190 = vst.msk [vmem:[%s2 + $0xfa0] sm:$0xff] %vm4689, %v4631
  %5191 = vst.msk [vmem:[%s2 + $0xfa8] sm:$0xff] %vm4689, %v4636
  %5192 = vst.msk [vmem:[%s2 + $0xfb0] sm:$0xff] %vm4689, %v4641
  %5193 = vst.msk [vmem:[%s2 + $0xfb8] sm:$0xff] %vm4689, %v4646
  %5194 = vst.msk [vmem:[%s2 + $0xfc0] sm:$0xff] %vm4689, %v4651
  %5195 = vst.msk [vmem:[%s2 + $0xfc8] sm:$0xff] %vm4689, %v4656
  %5196 = vst.msk [vmem:[%s2 + $0xfd0] sm:$0xff] %vm4689, %v4661
  %5197 = vst.msk [vmem:[%s2 + $0xfd8] sm:$0xff] %vm4689, %v4666
  %5198 = vst.msk [vmem:[%s2 + $0xfe0] sm:$0xff] %vm4689, %v4671
  %5199 = vst.msk [vmem:[%s2 + $0xfe8] sm:$0xff] %vm4689, %v4676
  %5200 = vst.msk [vmem:[%s2 + $0xff0] sm:$0xff] %vm4689, %v4681
  %5201 = vst.msk [vmem:[%s2 + $0xff8] sm:$0xff] %vm4689, %v4686
  // Predicated region
  $region10: #{tpu_custom_call.1} parent=0 // pred_check
    _
  $region11: #{tpu_custom_call.1} parent=0 // pred_check_branch
    %5203 = sbr.rel (0) target = $region13
  $region12: #{tpu_custom_call.1} parent=0 // pred_region
    _
  $region13: #{tpu_custom_call.1} parent=0 // pred_fallthru
    _
  // Predicated region
  $region14: #{tpu_custom_call.1} parent=0 // pred_check
    _
  $region15: #{tpu_custom_call.1} parent=0 // pred_check_branch
    %5205 = sbr.rel (0) target = $region17
  $region16: #{tpu_custom_call.1} parent=0 // pred_region
    _
  $region17: #{tpu_custom_call.1} parent=0 // pred_fallthru
    _

</llo_original>
